<compile_context>
chip_gen: v6e
topology: v6e:2x2x1
jax: 0.10.0
libtpu: 0.0.40
codegen_flags: <defaults>
</compile_context>

<pallas_src>
import numpy as np
import jax
import jax.numpy as jnp
from jax import lax
from jax.experimental import pallas as pl
from jax.experimental.pallas import tpu as pltpu

EPS = 1e-5
_MXU_DTYPE = jnp.bfloat16  # MXU operand precision; accumulation stays f32.


# ---------------------------------------------------------------------------
# In-kernel helpers
# ---------------------------------------------------------------------------
def _stage_padded(pad_ref, interior):
    """Write `interior` (bn, D, H, W*C) into pad_ref (bn, D+2, H+2, W*C).

    Only the D/H halo border is zeroed (the interior is fully overwritten and the W axis
    needs no halo lanes -- kw padding is folded into zero rows of the banded weight)."""
    bn, Dp, Hp, WC = pad_ref.shape
    D, H = Dp - 2, Hp - 2
    zd = jnp.zeros((bn, 1, Hp, WC), jnp.float32)
    pad_ref[:, 0:1, :, :] = zd
    pad_ref[:, Dp - 1:Dp, :, :] = zd
    zh = jnp.zeros((bn, D, 1, WC), jnp.float32)
    pad_ref[:, 1:1 + D, 0:1, :] = zh
    pad_ref[:, 1:1 + D, Hp - 1:Hp, :] = zh
    pad_ref[:, 1:1 + D, 1:1 + H, :] = interior


def _conv_from_pad(pad_ref, w_ref):
    """3x3x3 conv (stride 1, SAME) as 9 accumulated per-(kd, kh) MXU contractions.

    pad_ref : (bn, D+2, H+2, W*C) f32   zero-halo padded activation (lane-aligned rows)
    w_ref   : (9, W*C, W*C)       bf16  banded weights (kw taps folded, see _build_banded_weight)
    returns : (bn*D*H, W*C)       f32   conv output rows
    """
    bn, Dp, Hp, WC = pad_ref.shape
    D, H = Dp - 2, Hp - 2
    M = bn * D * H
    acc = jnp.zeros((M, WC), jnp.float32)
    for i in range(9):                                   # static unroll, K = W*C per tap
        kd, kh = divmod(i, 3)
        slab = pad_ref[:, kd:kd + D, kh:kh + H, :].reshape(M, WC).astype(_MXU_DTYPE)
        acc = acc + jnp.dot(slab, w_ref[i], preferred_element_type=jnp.float32)
    return acc


def _store_partial_stats(st_ref, acc):
    """Per-tile BN partial statistics: row 0 = per-lane sum, row 1 = per-lane sum of squares."""
    WC = acc.shape[-1]
    s1 = jnp.sum(acc, axis=0, keepdims=True)
    s2 = jnp.sum(acc * acc, axis=0, keepdims=True)
    st_ref[...] = jnp.concatenate(
        [s1, s2, jnp.zeros((6, WC), jnp.float32)], axis=0).reshape(1, 8, WC)


# ---------------------------------------------------------------------------
# Pass 1: conv1 + BN1 partial stats
# ---------------------------------------------------------------------------
def _conv_stats_kernel(x_ref, w_ref, z_ref, st_ref, pad_ref):
    bn, D, H, WC = x_ref.shape
    _stage_padded(pad_ref, x_ref[...])
    acc = _conv_from_pad(pad_ref, w_ref)
    z_ref[...] = acc.reshape(bn, D, H, WC)
    _store_partial_stats(st_ref, acc)


# ---------------------------------------------------------------------------
# Pass 2: BN1-normalize + ReLU (fused into the restage) -> conv2 + BN2 partial stats
# ---------------------------------------------------------------------------
def _bn_relu_conv_stats_kernel(z1_ref, scale_ref, shift_ref, w_ref, z_ref, st_ref, pad_ref):
    bn, D, H, WC = z1_ref.shape
    s = scale_ref[...].reshape(1, 1, 1, WC)
    t = shift_ref[...].reshape(1, 1, 1, WC)
    h1 = jnp.maximum(z1_ref[...] * s + t, 0.0)          # BN1 + ReLU; never leaves VMEM
    _stage_padded(pad_ref, h1)
    acc = _conv_from_pad(pad_ref, w_ref)
    z_ref[...] = acc.reshape(bn, D, H, WC)
    _store_partial_stats(st_ref, acc)


# ---------------------------------------------------------------------------
# Pass 3: BN2-normalize + residual add + ReLU
# ---------------------------------------------------------------------------
def _finalize_kernel(z2_ref, x_ref, scale_ref, shift_ref, y_ref):
    WC = y_ref.shape[-1]
    s = scale_ref[...].reshape(1, 1, 1, WC)
    t = shift_ref[...].reshape(1, 1, 1, WC)
    y_ref[...] = jnp.maximum(z2_ref[...] * s + t + x_ref[...], 0.0)


# ---------------------------------------------------------------------------
# Host-side helpers
# ---------------------------------------------------------------------------
def _build_banded_weight(w27, W, dtype):
    """(27, Cin, Cout) conv weight -> (9, W*Cin, W*Cout) per-(kd,kh) banded weights.

    For tap i = kd*3 + kh: row index = w_in*Cin + c_in, col index = w_out*Cout + c_out,
    entry = w[kd, kh, w_in - w_out + 1, c_in, c_out] when |w_in - w_out| <= 1, else 0.
    Out-of-range kw taps (w_in = -1 or W) are simply absent (zero band entries), which
    realizes the W-direction zero padding without any halo lanes in the activation.
    """
    _, Cin, Cout = w27.shape
    w = w27.reshape(3, 3, 3, Cin, Cout).astype(jnp.float32)
    B = jnp.zeros((3, 3, W, Cin, W, Cout), jnp.float32)
    for kw in range(3):
        for wo in range(W):
            wi = wo + kw - 1
            if 0 <= wi < W:
                B = B.at[:, :, wi, :, wo, :].set(w[:, :, kw])
    return B.reshape(9, W * Cin, W * Cout).astype(dtype)


def _bn_scale_shift(partial_stats, gamma, beta, count, W, C):
    """Reduce per-tile (sum, sumsq) -> per-channel BN scale/shift, lane-tiled to (1, W*C)."""
    s1 = partial_stats[:, 0, :].sum(axis=0).reshape(W, C).sum(axis=0)
    s2 = partial_stats[:, 1, :].sum(axis=0).reshape(W, C).sum(axis=0)
    mean = s1 / count
    var = jnp.maximum(s2 / count - mean * mean, 0.0)      # biased batch variance (BN training)
    scale_c = gamma.astype(jnp.float32) * lax.rsqrt(var + EPS)
    shift_c = beta.astype(jnp.float32) - mean * scale_c
    WC = W * C
    return (jnp.tile(scale_c, W).reshape(1, WC),
            jnp.tile(shift_c, W).reshape(1, WC))


def _vmem_limit_bytes():
    # ~48 MiB on v7x (64 MiB physical per TC, keep pipelining headroom),
    # ~112 MiB on v5e / v6e (128 MiB physical).
    try:
        cap = int(pltpu.get_tpu_info().vmem_capacity_bytes)
    except Exception:
        cap = 64 * 1024 * 1024
    return max(32 * 1024 * 1024, min(cap - 16 * 1024 * 1024, 112 * 1024 * 1024))


@jax.jit
def conv_block_3d(x_ncdhw, params):
    """ConvBlock3D forward (stride=1, no downsample, in_channels == out_channels).
    Input/output in PyTorch NCDHW layout."""
    N, C, D, H, W = x_ncdhw.shape
    assert params["w1"].shape == (27, C, C) and params["w2"].shape == (27, C, C), (
        "kernel assumes 3x3x3 convs, stride=1, padding=1, in_channels == out_channels")
    WC = W * C

    # NCDHW -> channels-last with (W, C) packed on the lane axis (one-time boundary cost).
    x4 = jnp.transpose(x_ncdhw, (0, 2, 3, 4, 1)).astype(jnp.float32).reshape(N, D, H, WC)

    w1 = _build_banded_weight(params["w1"], W, _MXU_DTYPE)   # (9, WC, WC) bf16
    w2 = _build_banded_weight(params["w2"], W, _MXU_DTYPE)

    # One sample per grid step: bounded per-step VMEM; batch axis shards across TCs on v7x.
    bn = 1
    assert N % bn == 0
    T = N // bn

    act_spec = pl.BlockSpec((bn, D, H, WC), lambda i: (i, 0, 0, 0))
    w_spec = pl.BlockSpec((9, WC, WC), lambda i: (0, 0, 0))
    vec_spec = pl.BlockSpec((1, WC), lambda i: (0, 0))
    st_spec = pl.BlockSpec((1, 8, WC), lambda i: (i, 0, 0))
    act_shape = jax.ShapeDtypeStruct((N, D, H, WC), jnp.float32)
    st_shape = jax.ShapeDtypeStruct((T, 8, WC), jnp.float32)
    pad_scratch = pltpu.VMEM((bn, D + 2, H + 2, WC), jnp.float32)

    cparams = pltpu.CompilerParams(
        dimension_semantics=("parallel",),
        vmem_limit_bytes=_vmem_limit_bytes())
    conv_cost = pl.CostEstimate(
        flops=2 * N * D * H * 9 * WC * WC,
        transcendentals=0,
        bytes_accessed=2 * x4.size * 4 + 9 * WC * WC * 2 + T * 8 * WC * 4)

    # ---- pass 1: conv1 + BN1 partial stats ---------------------------------
    z1, st1 = pl.pallas_call(
        _conv_stats_kernel,
        out_shape=(act_shape, st_shape),
        grid_spec=pltpu.PrefetchScalarGridSpec(
            num_scalar_prefetch=0, grid=(T,),
            in_specs=[act_spec, w_spec],
            out_specs=[act_spec, st_spec],
            scratch_shapes=[pad_scratch]),
        compiler_params=cparams,
        cost_estimate=conv_cost,
    )(x4, w1)

    count = N * D * H * W
    sc1, sh1 = _bn_scale_shift(st1, params["g1"], params["b1"], count, W, C)

    # ---- pass 2: BN1 + ReLU fused into restage -> conv2 + BN2 partial stats -
    z2, st2 = pl.pallas_call(
        _bn_relu_conv_stats_kernel,
        out_shape=(act_shape, st_shape),
        grid_spec=pltpu.PrefetchScalarGridSpec(
            num_scalar_prefetch=0, grid=(T,),
            in_specs=[act_spec, vec_spec, vec_spec, w_spec],
            out_specs=[act_spec, st_spec],
            scratch_shapes=[pad_scratch]),
        compiler_params=cparams,
        cost_estimate=conv_cost,
    )(z1, sc1, sh1, w2)

    sc2, sh2 = _bn_scale_shift(st2, params["g2"], params["b2"], count, W, C)

    # ---- pass 3: BN2-normalize + residual + ReLU ----------------------------
    out4 = pl.pallas_call(
        _finalize_kernel,
        out_shape=act_shape,
        grid_spec=pltpu.PrefetchScalarGridSpec(
            num_scalar_prefetch=0, grid=(T,),
            in_specs=[act_spec, act_spec, vec_spec, vec_spec],
            out_specs=act_spec),
        compiler_params=cparams,
    )(z2, x4, sc2, sh2)

    out = out4.reshape(N, D, H, W, C)
    return jnp.transpose(out, (0, 4, 1, 2, 3))            # back to NCDHW


def conv_block_3d_reference(x_ncdhw, params):
    """Pure-JAX reference with identical precision policy (bf16 conv operands, f32 else)."""
    x = jnp.transpose(x_ncdhw, (0, 2, 3, 4, 1)).astype(jnp.float32)

    def conv(h, w27):
        cin, cout = w27.shape[1], w27.shape[2]
        w = w27.reshape(3, 3, 3, cin, cout)
        return lax.conv_general_dilated(
            h.astype(jnp.bfloat16), w.astype(jnp.bfloat16),
            window_strides=(1, 1, 1), padding="SAME",
            dimension_numbers=("NDHWC", "DHWIO", "NDHWC"),
            preferred_element_type=jnp.float32)

    def bn(h, g, bta):
        mean = h.mean(axis=(0, 1, 2, 3), keepdims=True)
        var = ((h - mean) ** 2).mean(axis=(0, 1, 2, 3), keepdims=True)
        return (h - mean) * lax.rsqrt(var + EPS) * g + bta

    h = jax.nn.relu(bn(conv(x, params["w1"]), params["g1"], params["b1"]))
    h = bn(conv(h, params["w2"]), params["g2"], params["b2"]) + x
    h = jax.nn.relu(h)
    return jnp.transpose(h, (0, 4, 1, 2, 3))


if __name__ == "__main__":
    # Small shapes consistent with the module; C=16, W=8 makes each row exactly 128 lanes wide
    # and gives a 2-step grid (one sample per step).
    N, C, D, H, W = 2, 16, 4, 8, 8
    key = jax.random.PRNGKey(0)
    k1, k2, k3, k4, k5, k6, k7 = jax.random.split(key, 7)

    # PyTorch-style input (NCDHW).
    x = jax.random.normal(k1, (N, C, D, H, W), jnp.float32)

    # Conv weights stored as (27, Cin, Cout): w[kd*9+kh*3+kw, cin, cout] is equivalent to
    # the PyTorch Conv3d weight W_pt[cout, cin, kd, kh, kw].
    params = dict(
        w1=0.1 * jax.random.normal(k2, (27, C, C), jnp.float32),
        w2=0.1 * jax.random.normal(k3, (27, C, C), jnp.float32),
        g1=1.0 + 0.1 * jax.random.normal(k4, (C,), jnp.float32),
        b1=0.1 * jax.random.normal(k5, (C,), jnp.float32),
        g2=1.0 + 0.1 * jax.random.normal(k6, (C,), jnp.float32),
        b2=0.1 * jax.random.normal(k7, (C,), jnp.float32),
    )

    out = jax.block_until_ready(conv_block_3d(x, params))
    ref = jax.block_until_ready(conv_block_3d_reference(x, params))

    assert out.shape == (N, C, D, H, W), out.shape
    # Tolerance accounts for bf16 MXU operands (both kernel and reference use bf16 conv
    # inputs/weights with f32 accumulation); BN / residual / ReLU math is f32.
    np.testing.assert_allclose(np.asarray(out), np.asarray(ref), rtol=5e-3, atol=5e-3)
    print("KERNEL_OK")
</pallas_src>

<mosaic_0001>
module attributes {stable_mosaic.version = 11 : i64} {
  func.func @_conv_stats_kernel(%arg0: i32, %arg1: memref<1x4x8x128xf32, #tpu.memory_space<vmem>>, %arg2: memref<9x128x128xbf16, #tpu.memory_space<vmem>>, %arg3: memref<1x4x8x128xf32, #tpu.memory_space<vmem>>, %arg4: memref<1x8x128xf32, #tpu.memory_space<vmem>>, %arg5: memref<1x6x10x128xf32, #tpu.memory_space<vmem>>) attributes {dimension_semantics = [#tpu.dimension_semantics<parallel>], iteration_bounds = array<i64: 2>, scalar_prefetch = 0 : i64, scratch_operands = 1 : i64, tpu.core_type = #tpu.core_type<tc>, window_params = [{transform_indices = @transform_0, window_bounds = array<i64: 1, 4, 8, 128>}, {pipeline_mode = #tpu.pipeline_mode<synchronous>, transform_indices = @transform_1, window_bounds = array<i64: 9, 128, 128>}, {transform_indices = @transform_2, window_bounds = array<i64: 1, 4, 8, 128>}, {transform_indices = @transform_3, window_bounds = array<i64: 1, 8, 128>}]} {
    %c0 = arith.constant 0 : index
    %c0_0 = arith.constant 0 : index
    %c0_1 = arith.constant 0 : index
    %c0_2 = arith.constant 0 : index
    %0 = vector.load %arg1[%c0, %c0_0, %c0_1, %c0_2] : memref<1x4x8x128xf32, #tpu.memory_space<vmem>>, vector<1x4x8x128xf32>
    %cst = arith.constant 0.000000e+00 : f32
    %1 = vector.broadcast %cst : f32 to vector<1x1x10x128xf32>
    %c0_3 = arith.constant 0 : index
    %c0_4 = arith.constant 0 : index
    %c0_5 = arith.constant 0 : index
    %c0_6 = arith.constant 0 : index
    %2 = vector.load %arg5[%c0_3, %c0_4, %c0_5, %c0_6] : memref<1x6x10x128xf32, #tpu.memory_space<vmem>>, vector<1x1x10x128xf32>
    tpu.vector_store %arg5[%c0_3, %c0_4, %c0_5, %c0_6], %1 {strides = array<i32>} : memref<1x6x10x128xf32, #tpu.memory_space<vmem>>, vector<1x1x10x128xf32>,
    %c0_7 = arith.constant 0 : index
    %c5 = arith.constant 5 : index
    %c0_8 = arith.constant 0 : index
    %c0_9 = arith.constant 0 : index
    %3 = vector.load %arg5[%c0_7, %c5, %c0_8, %c0_9] : memref<1x6x10x128xf32, #tpu.memory_space<vmem>>, vector<1x1x10x128xf32>
    tpu.vector_store %arg5[%c0_7, %c5, %c0_8, %c0_9], %1 {strides = array<i32>} : memref<1x6x10x128xf32, #tpu.memory_space<vmem>>, vector<1x1x10x128xf32>,
    %cst_10 = arith.constant 0.000000e+00 : f32
    %4 = vector.broadcast %cst_10 : f32 to vector<1x4x1x128xf32>
    %c0_11 = arith.constant 0 : index
    %c1 = arith.constant 1 : index
    %c0_12 = arith.constant 0 : index
    %c0_13 = arith.constant 0 : index
    %5 = vector.load %arg5[%c0_11, %c1, %c0_12, %c0_13] : memref<1x6x10x128xf32, #tpu.memory_space<vmem>>, vector<1x4x1x128xf32>
    tpu.vector_store %arg5[%c0_11, %c1, %c0_12, %c0_13], %4 {strides = array<i32>} : memref<1x6x10x128xf32, #tpu.memory_space<vmem>>, vector<1x4x1x128xf32>,
    %c0_14 = arith.constant 0 : index
    %c1_15 = arith.constant 1 : index
    %c9 = arith.constant 9 : index
    %c0_16 = arith.constant 0 : index
    %6 = vector.load %arg5[%c0_14, %c1_15, %c9, %c0_16] : memref<1x6x10x128xf32, #tpu.memory_space<vmem>>, vector<1x4x1x128xf32>
    tpu.vector_store %arg5[%c0_14, %c1_15, %c9, %c0_16], %4 {strides = array<i32>} : memref<1x6x10x128xf32, #tpu.memory_space<vmem>>, vector<1x4x1x128xf32>,
    %c0_17 = arith.constant 0 : index
    %c1_18 = arith.constant 1 : index
    %c1_19 = arith.constant 1 : index
    %c0_20 = arith.constant 0 : index
    %7 = vector.load %arg5[%c0_17, %c1_18, %c1_19, %c0_20] : memref<1x6x10x128xf32, #tpu.memory_space<vmem>>, vector<1x4x8x128xf32>
    tpu.vector_store %arg5[%c0_17, %c1_18, %c1_19, %c0_20], %0 {strides = array<i32>} : memref<1x6x10x128xf32, #tpu.memory_space<vmem>>, vector<1x4x8x128xf32>,
    %cst_21 = arith.constant 0.000000e+00 : f32
    %8 = vector.broadcast %cst_21 : f32 to vector<32x128xf32>
    %c0_22 = arith.constant 0 : index
    %c0_23 = arith.constant 0 : index
    %c0_24 = arith.constant 0 : index
    %c0_25 = arith.constant 0 : index
    %9 = vector.load %arg5[%c0_22, %c0_23, %c0_24, %c0_25] : memref<1x6x10x128xf32, #tpu.memory_space<vmem>>, vector<1x4x8x128xf32>
    %10 = vector.shape_cast %9 : vector<1x4x8x128xf32> to vector<32x128xf32>
    %11 = arith.truncf %10 : vector<32x128xf32> to vector<32x128xbf16>
    %c0_26 = arith.constant 0 : index
    %c0_27 = arith.constant 0 : index
    %c0_28 = arith.constant 0 : index
    %12 = vector.load %arg2[%c0_26, %c0_27, %c0_28] : memref<9x128x128xbf16, #tpu.memory_space<vmem>>, vector<1x128x128xbf16>
    %13 = vector.shape_cast %12 : vector<1x128x128xbf16> to vector<128x128xbf16>
    %cst_29 = arith.constant dense<0.000000e+00> : vector<32x128xf32>
    %14 = tpu.matmul %11, %13, %cst_29 {dimension_numbers = #tpu.dot_dimension_numbers<[1], [0], [0], [1], [0, 0, 1, 1], [], []>} : vector<32x128xbf16>, vector<128x128xbf16>, vector<32x128xf32> -> vector<32x128xf32>
    %15 = arith.addf %8, %14 : vector<32x128xf32>
    %c0_30 = arith.constant 0 : index
    %c0_31 = arith.constant 0 : index
    %c1_32 = arith.constant 1 : index
    %c0_33 = arith.constant 0 : index
    %16 = vector.load %arg5[%c0_30, %c0_31, %c1_32, %c0_33] : memref<1x6x10x128xf32, #tpu.memory_space<vmem>>, vector<1x4x8x128xf32>
    %17 = vector.shape_cast %16 : vector<1x4x8x128xf32> to vector<32x128xf32>
    %18 = arith.truncf %17 : vector<32x128xf32> to vector<32x128xbf16>
    %c1_34 = arith.constant 1 : index
    %c0_35 = arith.constant 0 : index
    %c0_36 = arith.constant 0 : index
    %19 = vector.load %arg2[%c1_34, %c0_35, %c0_36] : memref<9x128x128xbf16, #tpu.memory_space<vmem>>, vector<1x128x128xbf16>
    %20 = vector.shape_cast %19 : vector<1x128x128xbf16> to vector<128x128xbf16>
    %cst_37 = arith.constant dense<0.000000e+00> : vector<32x128xf32>
    %21 = tpu.matmul %18, %20, %cst_37 {dimension_numbers = #tpu.dot_dimension_numbers<[1], [0], [0], [1], [0, 0, 1, 1], [], []>} : vector<32x128xbf16>, vector<128x128xbf16>, vector<32x128xf32> -> vector<32x128xf32>
    %22 = arith.addf %15, %21 : vector<32x128xf32>
    %c0_38 = arith.constant 0 : index
    %c0_39 = arith.constant 0 : index
    %c2 = arith.constant 2 : index
    %c0_40 = arith.constant 0 : index
    %23 = vector.load %arg5[%c0_38, %c0_39, %c2, %c0_40] : memref<1x6x10x128xf32, #tpu.memory_space<vmem>>, vector<1x4x8x128xf32>
    %24 = vector.shape_cast %23 : vector<1x4x8x128xf32> to vector<32x128xf32>
    %25 = arith.truncf %24 : vector<32x128xf32> to vector<32x128xbf16>
    %c2_41 = arith.constant 2 : index
    %c0_42 = arith.constant 0 : index
    %c0_43 = arith.constant 0 : index
    %26 = vector.load %arg2[%c2_41, %c0_42, %c0_43] : memref<9x128x128xbf16, #tpu.memory_space<vmem>>, vector<1x128x128xbf16>
    %27 = vector.shape_cast %26 : vector<1x128x128xbf16> to vector<128x128xbf16>
    %cst_44 = arith.constant dense<0.000000e+00> : vector<32x128xf32>
    %28 = tpu.matmul %25, %27, %cst_44 {dimension_numbers = #tpu.dot_dimension_numbers<[1], [0], [0], [1], [0, 0, 1, 1], [], []>} : vector<32x128xbf16>, vector<128x128xbf16>, vector<32x128xf32> -> vector<32x128xf32>
    %29 = arith.addf %22, %28 : vector<32x128xf32>
    %c0_45 = arith.constant 0 : index
    %c1_46 = arith.constant 1 : index
    %c0_47 = arith.constant 0 : index
    %c0_48 = arith.constant 0 : index
    %30 = vector.load %arg5[%c0_45, %c1_46, %c0_47, %c0_48] : memref<1x6x10x128xf32, #tpu.memory_space<vmem>>, vector<1x4x8x128xf32>
    %31 = vector.shape_cast %30 : vector<1x4x8x128xf32> to vector<32x128xf32>
    %32 = arith.truncf %31 : vector<32x128xf32> to vector<32x128xbf16>
    %c3 = arith.constant 3 : index
    %c0_49 = arith.constant 0 : index
    %c0_50 = arith.constant 0 : index
    %33 = vector.load %arg2[%c3, %c0_49, %c0_50] : memref<9x128x128xbf16, #tpu.memory_space<vmem>>, vector<1x128x128xbf16>
    %34 = vector.shape_cast %33 : vector<1x128x128xbf16> to vector<128x128xbf16>
    %cst_51 = arith.constant dense<0.000000e+00> : vector<32x128xf32>
    %35 = tpu.matmul %32, %34, %cst_51 {dimension_numbers = #tpu.dot_dimension_numbers<[1], [0], [0], [1], [0, 0, 1, 1], [], []>} : vector<32x128xbf16>, vector<128x128xbf16>, vector<32x128xf32> -> vector<32x128xf32>
    %36 = arith.addf %29, %35 : vector<32x128xf32>
    %c0_52 = arith.constant 0 : index
    %c1_53 = arith.constant 1 : index
    %c1_54 = arith.constant 1 : index
    %c0_55 = arith.constant 0 : index
    %37 = vector.load %arg5[%c0_52, %c1_53, %c1_54, %c0_55] : memref<1x6x10x128xf32, #tpu.memory_space<vmem>>, vector<1x4x8x128xf32>
    %38 = vector.shape_cast %37 : vector<1x4x8x128xf32> to vector<32x128xf32>
    %39 = arith.truncf %38 : vector<32x128xf32> to vector<32x128xbf16>
    %c4 = arith.constant 4 : index
    %c0_56 = arith.constant 0 : index
    %c0_57 = arith.constant 0 : index
    %40 = vector.load %arg2[%c4, %c0_56, %c0_57] : memref<9x128x128xbf16, #tpu.memory_space<vmem>>, vector<1x128x128xbf16>
    %41 = vector.shape_cast %40 : vector<1x128x128xbf16> to vector<128x128xbf16>
    %cst_58 = arith.constant dense<0.000000e+00> : vector<32x128xf32>
    %42 = tpu.matmul %39, %41, %cst_58 {dimension_numbers = #tpu.dot_dimension_numbers<[1], [0], [0], [1], [0, 0, 1, 1], [], []>} : vector<32x128xbf16>, vector<128x128xbf16>, vector<32x128xf32> -> vector<32x128xf32>
    %43 = arith.addf %36, %42 : vector<32x128xf32>
    %c0_59 = arith.constant 0 : index
    %c1_60 = arith.constant 1 : index
    %c2_61 = arith.constant 2 : index
    %c0_62 = arith.constant 0 : index
    %44 = vector.load %arg5[%c0_59, %c1_60, %c2_61, %c0_62] : memref<1x6x10x128xf32, #tpu.memory_space<vmem>>, vector<1x4x8x128xf32>
    %45 = vector.shape_cast %44 : vector<1x4x8x128xf32> to vector<32x128xf32>
    %46 = arith.truncf %45 : vector<32x128xf32> to vector<32x128xbf16>
    %c5_63 = arith.constant 5 : index
    %c0_64 = arith.constant 0 : index
    %c0_65 = arith.constant 0 : index
    %47 = vector.load %arg2[%c5_63, %c0_64, %c0_65] : memref<9x128x128xbf16, #tpu.memory_space<vmem>>, vector<1x128x128xbf16>
    %48 = vector.shape_cast %47 : vector<1x128x128xbf16> to vector<128x128xbf16>
    %cst_66 = arith.constant dense<0.000000e+00> : vector<32x128xf32>
    %49 = tpu.matmul %46, %48, %cst_66 {dimension_numbers = #tpu.dot_dimension_numbers<[1], [0], [0], [1], [0, 0, 1, 1], [], []>} : vector<32x128xbf16>, vector<128x128xbf16>, vector<32x128xf32> -> vector<32x128xf32>
    %50 = arith.addf %43, %49 : vector<32x128xf32>
    %c0_67 = arith.constant 0 : index
    %c2_68 = arith.constant 2 : index
    %c0_69 = arith.constant 0 : index
    %c0_70 = arith.constant 0 : index
    %51 = vector.load %arg5[%c0_67, %c2_68, %c0_69, %c0_70] : memref<1x6x10x128xf32, #tpu.memory_space<vmem>>, vector<1x4x8x128xf32>
    %52 = vector.shape_cast %51 : vector<1x4x8x128xf32> to vector<32x128xf32>
    %53 = arith.truncf %52 : vector<32x128xf32> to vector<32x128xbf16>
    %c6 = arith.constant 6 : index
    %c0_71 = arith.constant 0 : index
    %c0_72 = arith.constant 0 : index
    %54 = vector.load %arg2[%c6, %c0_71, %c0_72] : memref<9x128x128xbf16, #tpu.memory_space<vmem>>, vector<1x128x128xbf16>
    %55 = vector.shape_cast %54 : vector<1x128x128xbf16> to vector<128x128xbf16>
    %cst_73 = arith.constant dense<0.000000e+00> : vector<32x128xf32>
    %56 = tpu.matmul %53, %55, %cst_73 {dimension_numbers = #tpu.dot_dimension_numbers<[1], [0], [0], [1], [0, 0, 1, 1], [], []>} : vector<32x128xbf16>, vector<128x128xbf16>, vector<32x128xf32> -> vector<32x128xf32>
    %57 = arith.addf %50, %56 : vector<32x128xf32>
    %c0_74 = arith.constant 0 : index
    %c2_75 = arith.constant 2 : index
    %c1_76 = arith.constant 1 : index
    %c0_77 = arith.constant 0 : index
    %58 = vector.load %arg5[%c0_74, %c2_75, %c1_76, %c0_77] : memref<1x6x10x128xf32, #tpu.memory_space<vmem>>, vector<1x4x8x128xf32>
    %59 = vector.shape_cast %58 : vector<1x4x8x128xf32> to vector<32x128xf32>
    %60 = arith.truncf %59 : vector<32x128xf32> to vector<32x128xbf16>
    %c7 = arith.constant 7 : index
    %c0_78 = arith.constant 0 : index
    %c0_79 = arith.constant 0 : index
    %61 = vector.load %arg2[%c7, %c0_78, %c0_79] : memref<9x128x128xbf16, #tpu.memory_space<vmem>>, vector<1x128x128xbf16>
    %62 = vector.shape_cast %61 : vector<1x128x128xbf16> to vector<128x128xbf16>
    %cst_80 = arith.constant dense<0.000000e+00> : vector<32x128xf32>
    %63 = tpu.matmul %60, %62, %cst_80 {dimension_numbers = #tpu.dot_dimension_numbers<[1], [0], [0], [1], [0, 0, 1, 1], [], []>} : vector<32x128xbf16>, vector<128x128xbf16>, vector<32x128xf32> -> vector<32x128xf32>
    %64 = arith.addf %57, %63 : vector<32x128xf32>
    %c0_81 = arith.constant 0 : index
    %c2_82 = arith.constant 2 : index
    %c2_83 = arith.constant 2 : index
    %c0_84 = arith.constant 0 : index
    %65 = vector.load %arg5[%c0_81, %c2_82, %c2_83, %c0_84] : memref<1x6x10x128xf32, #tpu.memory_space<vmem>>, vector<1x4x8x128xf32>
    %66 = vector.shape_cast %65 : vector<1x4x8x128xf32> to vector<32x128xf32>
    %67 = arith.truncf %66 : vector<32x128xf32> to vector<32x128xbf16>
    %c8 = arith.constant 8 : index
    %c0_85 = arith.constant 0 : index
    %c0_86 = arith.constant 0 : index
    %68 = vector.load %arg2[%c8, %c0_85, %c0_86] : memref<9x128x128xbf16, #tpu.memory_space<vmem>>, vector<1x128x128xbf16>
    %69 = vector.shape_cast %68 : vector<1x128x128xbf16> to vector<128x128xbf16>
    %cst_87 = arith.constant dense<0.000000e+00> : vector<32x128xf32>
    %70 = tpu.matmul %67, %69, %cst_87 {dimension_numbers = #tpu.dot_dimension_numbers<[1], [0], [0], [1], [0, 0, 1, 1], [], []>} : vector<32x128xbf16>, vector<128x128xbf16>, vector<32x128xf32> -> vector<32x128xf32>
    %71 = arith.addf %64, %70 : vector<32x128xf32>
    %72 = vector.shape_cast %71 : vector<32x128xf32> to vector<1x4x8x128xf32>
    %c0_88 = arith.constant 0 : index
    %c0_89 = arith.constant 0 : index
    %c0_90 = arith.constant 0 : index
    %c0_91 = arith.constant 0 : index
    %73 = vector.load %arg3[%c0_88, %c0_89, %c0_90, %c0_91] : memref<1x4x8x128xf32, #tpu.memory_space<vmem>>, vector<1x4x8x128xf32>
    tpu.vector_store %arg3[%c0_88, %c0_89, %c0_90, %c0_91], %72 {strides = array<i32>} : memref<1x4x8x128xf32, #tpu.memory_space<vmem>>, vector<1x4x8x128xf32>,
    %cst_92 = arith.constant dense<0.000000e+00> : vector<128xf32>
    %74 = vector.multi_reduction <add>, %71, %cst_92 [0] : vector<32x128xf32> to vector<128xf32>
    %75 = vector.shape_cast %74 : vector<128xf32> to vector<1x128xf32>
    %76 = arith.mulf %71, %71 : vector<32x128xf32>
    %cst_93 = arith.constant dense<0.000000e+00> : vector<128xf32>
    %77 = vector.multi_reduction <add>, %76, %cst_93 [0] : vector<32x128xf32> to vector<128xf32>
    %78 = vector.shape_cast %77 : vector<128xf32> to vector<1x128xf32>
    %cst_94 = arith.constant 0.000000e+00 : f32
    %79 = vector.broadcast %cst_94 : f32 to vector<6x128xf32>
    %80 = tpu.concatenate %75, %78, %79 in 0 : vector<1x128xf32>, vector<1x128xf32>, vector<6x128xf32> -> vector<8x128xf32>
    %81 = vector.shape_cast %80 : vector<8x128xf32> to vector<1x8x128xf32>
    %c0_95 = arith.constant 0 : index
    %c0_96 = arith.constant 0 : index
    %c0_97 = arith.constant 0 : index
    %82 = vector.load %arg4[%c0_95, %c0_96, %c0_97] : memref<1x8x128xf32, #tpu.memory_space<vmem>>, vector<1x8x128xf32>
    tpu.vector_store %arg4[%c0_95, %c0_96, %c0_97], %81 {strides = array<i32>} : memref<1x8x128xf32, #tpu.memory_space<vmem>>, vector<1x8x128xf32>,
    return
  }
  func.func @transform_0(%arg0: i32) -> (i32, i32, i32, i32) {
    %c0_i32 = arith.constant 0 : i32
    %c0_i32_0 = arith.constant 0 : i32
    %c0_i32_1 = arith.constant 0 : i32
    %c0_i32_2 = arith.constant 0 : i32
    return %arg0, %c0_i32, %c0_i32_0, %c0_i32_1 : i32, i32, i32, i32
  }
  func.func @transform_1(%arg0: i32) -> (i32, i32, i32) {
    %c0_i32 = arith.constant 0 : i32
    %c0_i32_0 = arith.constant 0 : i32
    %c0_i32_1 = arith.constant 0 : i32
    %c0_i32_2 = arith.constant 0 : i32
    return %c0_i32, %c0_i32_0, %c0_i32_1 : i32, i32, i32
  }
  func.func @transform_2(%arg0: i32) -> (i32, i32, i32, i32) {
    %c0_i32 = arith.constant 0 : i32
    %c0_i32_0 = arith.constant 0 : i32
    %c0_i32_1 = arith.constant 0 : i32
    %c0_i32_2 = arith.constant 0 : i32
    return %arg0, %c0_i32, %c0_i32_0, %c0_i32_1 : i32, i32, i32, i32
  }
  func.func @transform_3(%arg0: i32) -> (i32, i32, i32) {
    %c0_i32 = arith.constant 0 : i32
    %c0_i32_0 = arith.constant 0 : i32
    %c0_i32_1 = arith.constant 0 : i32
    return %arg0, %c0_i32, %c0_i32_0 : i32, i32, i32
  }
}

module attributes {stable_mosaic.version = 11 : i64} {
  func.func @_bn_relu_conv_stats_kernel(%arg0: i32, %arg1: memref<1x4x8x128xf32, #tpu.memory_space<vmem>>, %arg2: memref<1x128xf32, #tpu.memory_space<vmem>>, %arg3: memref<1x128xf32, #tpu.memory_space<vmem>>, %arg4: memref<9x128x128xbf16, #tpu.memory_space<vmem>>, %arg5: memref<1x4x8x128xf32, #tpu.memory_space<vmem>>, %arg6: memref<1x8x128xf32, #tpu.memory_space<vmem>>, %arg7: memref<1x6x10x128xf32, #tpu.memory_space<vmem>>) attributes {dimension_semantics = [#tpu.dimension_semantics<parallel>], iteration_bounds = array<i64: 2>, scalar_prefetch = 0 : i64, scratch_operands = 1 : i64, tpu.core_type = #tpu.core_type<tc>, window_params = [{transform_indices = @transform_0, window_bounds = array<i64: 1, 4, 8, 128>}, {pipeline_mode = #tpu.pipeline_mode<synchronous>, transform_indices = @transform_1, window_bounds = array<i64: 1, 128>}, {pipeline_mode = #tpu.pipeline_mode<synchronous>, transform_indices = @transform_2, window_bounds = array<i64: 1, 128>}, {pipeline_mode = #tpu.pipeline_mode<synchronous>, transform_indices = @transform_3, window_bounds = array<i64: 9, 128, 128>}, {transform_indices = @transform_4, window_bounds = array<i64: 1, 4, 8, 128>}, {transform_indices = @transform_5, window_bounds = array<i64: 1, 8, 128>}]} {
    %c0 = arith.constant 0 : index
    %c0_0 = arith.constant 0 : index
    %0 = vector.load %arg2[%c0, %c0_0] : memref<1x128xf32, #tpu.memory_space<vmem>>, vector<1x128xf32>
    %1 = vector.shape_cast %0 : vector<1x128xf32> to vector<1x1x1x128xf32>
    %c0_1 = arith.constant 0 : index
    %c0_2 = arith.constant 0 : index
    %2 = vector.load %arg3[%c0_1, %c0_2] : memref<1x128xf32, #tpu.memory_space<vmem>>, vector<1x128xf32>
    %3 = vector.shape_cast %2 : vector<1x128xf32> to vector<1x1x1x128xf32>
    %c0_3 = arith.constant 0 : index
    %c0_4 = arith.constant 0 : index
    %c0_5 = arith.constant 0 : index
    %c0_6 = arith.constant 0 : index
    %4 = vector.load %arg1[%c0_3, %c0_4, %c0_5, %c0_6] : memref<1x4x8x128xf32, #tpu.memory_space<vmem>>, vector<1x4x8x128xf32>
    %5 = vector.broadcast %1 : vector<1x1x1x128xf32> to vector<1x4x8x128xf32>
    %6 = arith.mulf %4, %5 : vector<1x4x8x128xf32>
    %7 = vector.broadcast %3 : vector<1x1x1x128xf32> to vector<1x4x8x128xf32>
    %8 = arith.addf %6, %7 : vector<1x4x8x128xf32>
    %cst = arith.constant 0.000000e+00 : f32
    %9 = vector.broadcast %cst : f32 to vector<1x4x8x128xf32>
    %10 = arith.maximumf %8, %9 : vector<1x4x8x128xf32>
    %cst_7 = arith.constant 0.000000e+00 : f32
    %11 = vector.broadcast %cst_7 : f32 to vector<1x1x10x128xf32>
    %c0_8 = arith.constant 0 : index
    %c0_9 = arith.constant 0 : index
    %c0_10 = arith.constant 0 : index
    %c0_11 = arith.constant 0 : index
    %12 = vector.load %arg7[%c0_8, %c0_9, %c0_10, %c0_11] : memref<1x6x10x128xf32, #tpu.memory_space<vmem>>, vector<1x1x10x128xf32>
    tpu.vector_store %arg7[%c0_8, %c0_9, %c0_10, %c0_11], %11 {strides = array<i32>} : memref<1x6x10x128xf32, #tpu.memory_space<vmem>>, vector<1x1x10x128xf32>,
    %c0_12 = arith.constant 0 : index
    %c5 = arith.constant 5 : index
    %c0_13 = arith.constant 0 : index
    %c0_14 = arith.constant 0 : index
    %13 = vector.load %arg7[%c0_12, %c5, %c0_13, %c0_14] : memref<1x6x10x128xf32, #tpu.memory_space<vmem>>, vector<1x1x10x128xf32>
    tpu.vector_store %arg7[%c0_12, %c5, %c0_13, %c0_14], %11 {strides = array<i32>} : memref<1x6x10x128xf32, #tpu.memory_space<vmem>>, vector<1x1x10x128xf32>,
    %cst_15 = arith.constant 0.000000e+00 : f32
    %14 = vector.broadcast %cst_15 : f32 to vector<1x4x1x128xf32>
    %c0_16 = arith.constant 0 : index
    %c1 = arith.constant 1 : index
    %c0_17 = arith.constant 0 : index
    %c0_18 = arith.constant 0 : index
    %15 = vector.load %arg7[%c0_16, %c1, %c0_17, %c0_18] : memref<1x6x10x128xf32, #tpu.memory_space<vmem>>, vector<1x4x1x128xf32>
    tpu.vector_store %arg7[%c0_16, %c1, %c0_17, %c0_18], %14 {strides = array<i32>} : memref<1x6x10x128xf32, #tpu.memory_space<vmem>>, vector<1x4x1x128xf32>,
    %c0_19 = arith.constant 0 : index
    %c1_20 = arith.constant 1 : index
    %c9 = arith.constant 9 : index
    %c0_21 = arith.constant 0 : index
    %16 = vector.load %arg7[%c0_19, %c1_20, %c9, %c0_21] : memref<1x6x10x128xf32, #tpu.memory_space<vmem>>, vector<1x4x1x128xf32>
    tpu.vector_store %arg7[%c0_19, %c1_20, %c9, %c0_21], %14 {strides = array<i32>} : memref<1x6x10x128xf32, #tpu.memory_space<vmem>>, vector<1x4x1x128xf32>,
    %c0_22 = arith.constant 0 : index
    %c1_23 = arith.constant 1 : index
    %c1_24 = arith.constant 1 : index
    %c0_25 = arith.constant 0 : index
    %17 = vector.load %arg7[%c0_22, %c1_23, %c1_24, %c0_25] : memref<1x6x10x128xf32, #tpu.memory_space<vmem>>, vector<1x4x8x128xf32>
    tpu.vector_store %arg7[%c0_22, %c1_23, %c1_24, %c0_25], %10 {strides = array<i32>} : memref<1x6x10x128xf32, #tpu.memory_space<vmem>>, vector<1x4x8x128xf32>,
    %cst_26 = arith.constant 0.000000e+00 : f32
    %18 = vector.broadcast %cst_26 : f32 to vector<32x128xf32>
    %c0_27 = arith.constant 0 : index
    %c0_28 = arith.constant 0 : index
    %c0_29 = arith.constant 0 : index
    %c0_30 = arith.constant 0 : index
    %19 = vector.load %arg7[%c0_27, %c0_28, %c0_29, %c0_30] : memref<1x6x10x128xf32, #tpu.memory_space<vmem>>, vector<1x4x8x128xf32>
    %20 = vector.shape_cast %19 : vector<1x4x8x128xf32> to vector<32x128xf32>
    %21 = arith.truncf %20 : vector<32x128xf32> to vector<32x128xbf16>
    %c0_31 = arith.constant 0 : index
    %c0_32 = arith.constant 0 : index
    %c0_33 = arith.constant 0 : index
    %22 = vector.load %arg4[%c0_31, %c0_32, %c0_33] : memref<9x128x128xbf16, #tpu.memory_space<vmem>>, vector<1x128x128xbf16>
    %23 = vector.shape_cast %22 : vector<1x128x128xbf16> to vector<128x128xbf16>
    %cst_34 = arith.constant dense<0.000000e+00> : vector<32x128xf32>
    %24 = tpu.matmul %21, %23, %cst_34 {dimension_numbers = #tpu.dot_dimension_numbers<[1], [0], [0], [1], [0, 0, 1, 1], [], []>} : vector<32x128xbf16>, vector<128x128xbf16>, vector<32x128xf32> -> vector<32x128xf32>
    %25 = arith.addf %18, %24 : vector<32x128xf32>
    %c0_35 = arith.constant 0 : index
    %c0_36 = arith.constant 0 : index
    %c1_37 = arith.constant 1 : index
    %c0_38 = arith.constant 0 : index
    %26 = vector.load %arg7[%c0_35, %c0_36, %c1_37, %c0_38] : memref<1x6x10x128xf32, #tpu.memory_space<vmem>>, vector<1x4x8x128xf32>
    %27 = vector.shape_cast %26 : vector<1x4x8x128xf32> to vector<32x128xf32>
    %28 = arith.truncf %27 : vector<32x128xf32> to vector<32x128xbf16>
    %c1_39 = arith.constant 1 : index
    %c0_40 = arith.constant 0 : index
    %c0_41 = arith.constant 0 : index
    %29 = vector.load %arg4[%c1_39, %c0_40, %c0_41] : memref<9x128x128xbf16, #tpu.memory_space<vmem>>, vector<1x128x128xbf16>
    %30 = vector.shape_cast %29 : vector<1x128x128xbf16> to vector<128x128xbf16>
    %cst_42 = arith.constant dense<0.000000e+00> : vector<32x128xf32>
    %31 = tpu.matmul %28, %30, %cst_42 {dimension_numbers = #tpu.dot_dimension_numbers<[1], [0], [0], [1], [0, 0, 1, 1], [], []>} : vector<32x128xbf16>, vector<128x128xbf16>, vector<32x128xf32> -> vector<32x128xf32>
    %32 = arith.addf %25, %31 : vector<32x128xf32>
    %c0_43 = arith.constant 0 : index
    %c0_44 = arith.constant 0 : index
    %c2 = arith.constant 2 : index
    %c0_45 = arith.constant 0 : index
    %33 = vector.load %arg7[%c0_43, %c0_44, %c2, %c0_45] : memref<1x6x10x128xf32, #tpu.memory_space<vmem>>, vector<1x4x8x128xf32>
    %34 = vector.shape_cast %33 : vector<1x4x8x128xf32> to vector<32x128xf32>
    %35 = arith.truncf %34 : vector<32x128xf32> to vector<32x128xbf16>
    %c2_46 = arith.constant 2 : index
    %c0_47 = arith.constant 0 : index
    %c0_48 = arith.constant 0 : index
    %36 = vector.load %arg4[%c2_46, %c0_47, %c0_48] : memref<9x128x128xbf16, #tpu.memory_space<vmem>>, vector<1x128x128xbf16>
    %37 = vector.shape_cast %36 : vector<1x128x128xbf16> to vector<128x128xbf16>
    %cst_49 = arith.constant dense<0.000000e+00> : vector<32x128xf32>
    %38 = tpu.matmul %35, %37, %cst_49 {dimension_numbers = #tpu.dot_dimension_numbers<[1], [0], [0], [1], [0, 0, 1, 1], [], []>} : vector<32x128xbf16>, vector<128x128xbf16>, vector<32x128xf32> -> vector<32x128xf32>
    %39 = arith.addf %32, %38 : vector<32x128xf32>
    %c0_50 = arith.constant 0 : index
    %c1_51 = arith.constant 1 : index
    %c0_52 = arith.constant 0 : index
    %c0_53 = arith.constant 0 : index
    %40 = vector.load %arg7[%c0_50, %c1_51, %c0_52, %c0_53] : memref<1x6x10x128xf32, #tpu.memory_space<vmem>>, vector<1x4x8x128xf32>
    %41 = vector.shape_cast %40 : vector<1x4x8x128xf32> to vector<32x128xf32>
    %42 = arith.truncf %41 : vector<32x128xf32> to vector<32x128xbf16>
    %c3 = arith.constant 3 : index
    %c0_54 = arith.constant 0 : index
    %c0_55 = arith.constant 0 : index
    %43 = vector.load %arg4[%c3, %c0_54, %c0_55] : memref<9x128x128xbf16, #tpu.memory_space<vmem>>, vector<1x128x128xbf16>
    %44 = vector.shape_cast %43 : vector<1x128x128xbf16> to vector<128x128xbf16>
    %cst_56 = arith.constant dense<0.000000e+00> : vector<32x128xf32>
    %45 = tpu.matmul %42, %44, %cst_56 {dimension_numbers = #tpu.dot_dimension_numbers<[1], [0], [0], [1], [0, 0, 1, 1], [], []>} : vector<32x128xbf16>, vector<128x128xbf16>, vector<32x128xf32> -> vector<32x128xf32>
    %46 = arith.addf %39, %45 : vector<32x128xf32>
    %c0_57 = arith.constant 0 : index
    %c1_58 = arith.constant 1 : index
    %c1_59 = arith.constant 1 : index
    %c0_60 = arith.constant 0 : index
    %47 = vector.load %arg7[%c0_57, %c1_58, %c1_59, %c0_60] : memref<1x6x10x128xf32, #tpu.memory_space<vmem>>, vector<1x4x8x128xf32>
    %48 = vector.shape_cast %47 : vector<1x4x8x128xf32> to vector<32x128xf32>
    %49 = arith.truncf %48 : vector<32x128xf32> to vector<32x128xbf16>
    %c4 = arith.constant 4 : index
    %c0_61 = arith.constant 0 : index
    %c0_62 = arith.constant 0 : index
    %50 = vector.load %arg4[%c4, %c0_61, %c0_62] : memref<9x128x128xbf16, #tpu.memory_space<vmem>>, vector<1x128x128xbf16>
    %51 = vector.shape_cast %50 : vector<1x128x128xbf16> to vector<128x128xbf16>
    %cst_63 = arith.constant dense<0.000000e+00> : vector<32x128xf32>
    %52 = tpu.matmul %49, %51, %cst_63 {dimension_numbers = #tpu.dot_dimension_numbers<[1], [0], [0], [1], [0, 0, 1, 1], [], []>} : vector<32x128xbf16>, vector<128x128xbf16>, vector<32x128xf32> -> vector<32x128xf32>
    %53 = arith.addf %46, %52 : vector<32x128xf32>
    %c0_64 = arith.constant 0 : index
    %c1_65 = arith.constant 1 : index
    %c2_66 = arith.constant 2 : index
    %c0_67 = arith.constant 0 : index
    %54 = vector.load %arg7[%c0_64, %c1_65, %c2_66, %c0_67] : memref<1x6x10x128xf32, #tpu.memory_space<vmem>>, vector<1x4x8x128xf32>
    %55 = vector.shape_cast %54 : vector<1x4x8x128xf32> to vector<32x128xf32>
    %56 = arith.truncf %55 : vector<32x128xf32> to vector<32x128xbf16>
    %c5_68 = arith.constant 5 : index
    %c0_69 = arith.constant 0 : index
    %c0_70 = arith.constant 0 : index
    %57 = vector.load %arg4[%c5_68, %c0_69, %c0_70] : memref<9x128x128xbf16, #tpu.memory_space<vmem>>, vector<1x128x128xbf16>
    %58 = vector.shape_cast %57 : vector<1x128x128xbf16> to vector<128x128xbf16>
    %cst_71 = arith.constant dense<0.000000e+00> : vector<32x128xf32>
    %59 = tpu.matmul %56, %58, %cst_71 {dimension_numbers = #tpu.dot_dimension_numbers<[1], [0], [0], [1], [0, 0, 1, 1], [], []>} : vector<32x128xbf16>, vector<128x128xbf16>, vector<32x128xf32> -> vector<32x128xf32>
    %60 = arith.addf %53, %59 : vector<32x128xf32>
    %c0_72 = arith.constant 0 : index
    %c2_73 = arith.constant 2 : index
    %c0_74 = arith.constant 0 : index
    %c0_75 = arith.constant 0 : index
    %61 = vector.load %arg7[%c0_72, %c2_73, %c0_74, %c0_75] : memref<1x6x10x128xf32, #tpu.memory_space<vmem>>, vector<1x4x8x128xf32>
    %62 = vector.shape_cast %61 : vector<1x4x8x128xf32> to vector<32x128xf32>
    %63 = arith.truncf %62 : vector<32x128xf32> to vector<32x128xbf16>
    %c6 = arith.constant 6 : index
    %c0_76 = arith.constant 0 : index
    %c0_77 = arith.constant 0 : index
    %64 = vector.load %arg4[%c6, %c0_76, %c0_77] : memref<9x128x128xbf16, #tpu.memory_space<vmem>>, vector<1x128x128xbf16>
    %65 = vector.shape_cast %64 : vector<1x128x128xbf16> to vector<128x128xbf16>
    %cst_78 = arith.constant dense<0.000000e+00> : vector<32x128xf32>
    %66 = tpu.matmul %63, %65, %cst_78 {dimension_numbers = #tpu.dot_dimension_numbers<[1], [0], [0], [1], [0, 0, 1, 1], [], []>} : vector<32x128xbf16>, vector<128x128xbf16>, vector<32x128xf32> -> vector<32x128xf32>
    %67 = arith.addf %60, %66 : vector<32x128xf32>
    %c0_79 = arith.constant 0 : index
    %c2_80 = arith.constant 2 : index
    %c1_81 = arith.constant 1 : index
    %c0_82 = arith.constant 0 : index
    %68 = vector.load %arg7[%c0_79, %c2_80, %c1_81, %c0_82] : memref<1x6x10x128xf32, #tpu.memory_space<vmem>>, vector<1x4x8x128xf32>
    %69 = vector.shape_cast %68 : vector<1x4x8x128xf32> to vector<32x128xf32>
    %70 = arith.truncf %69 : vector<32x128xf32> to vector<32x128xbf16>
    %c7 = arith.constant 7 : index
    %c0_83 = arith.constant 0 : index
    %c0_84 = arith.constant 0 : index
    %71 = vector.load %arg4[%c7, %c0_83, %c0_84] : memref<9x128x128xbf16, #tpu.memory_space<vmem>>, vector<1x128x128xbf16>
    %72 = vector.shape_cast %71 : vector<1x128x128xbf16> to vector<128x128xbf16>
    %cst_85 = arith.constant dense<0.000000e+00> : vector<32x128xf32>
    %73 = tpu.matmul %70, %72, %cst_85 {dimension_numbers = #tpu.dot_dimension_numbers<[1], [0], [0], [1], [0, 0, 1, 1], [], []>} : vector<32x128xbf16>, vector<128x128xbf16>, vector<32x128xf32> -> vector<32x128xf32>
    %74 = arith.addf %67, %73 : vector<32x128xf32>
    %c0_86 = arith.constant 0 : index
    %c2_87 = arith.constant 2 : index
    %c2_88 = arith.constant 2 : index
    %c0_89 = arith.constant 0 : index
    %75 = vector.load %arg7[%c0_86, %c2_87, %c2_88, %c0_89] : memref<1x6x10x128xf32, #tpu.memory_space<vmem>>, vector<1x4x8x128xf32>
    %76 = vector.shape_cast %75 : vector<1x4x8x128xf32> to vector<32x128xf32>
    %77 = arith.truncf %76 : vector<32x128xf32> to vector<32x128xbf16>
    %c8 = arith.constant 8 : index
    %c0_90 = arith.constant 0 : index
    %c0_91 = arith.constant 0 : index
    %78 = vector.load %arg4[%c8, %c0_90, %c0_91] : memref<9x128x128xbf16, #tpu.memory_space<vmem>>, vector<1x128x128xbf16>
    %79 = vector.shape_cast %78 : vector<1x128x128xbf16> to vector<128x128xbf16>
    %cst_92 = arith.constant dense<0.000000e+00> : vector<32x128xf32>
    %80 = tpu.matmul %77, %79, %cst_92 {dimension_numbers = #tpu.dot_dimension_numbers<[1], [0], [0], [1], [0, 0, 1, 1], [], []>} : vector<32x128xbf16>, vector<128x128xbf16>, vector<32x128xf32> -> vector<32x128xf32>
    %81 = arith.addf %74, %80 : vector<32x128xf32>
    %82 = vector.shape_cast %81 : vector<32x128xf32> to vector<1x4x8x128xf32>
    %c0_93 = arith.constant 0 : index
    %c0_94 = arith.constant 0 : index
    %c0_95 = arith.constant 0 : index
    %c0_96 = arith.constant 0 : index
    %83 = vector.load %arg5[%c0_93, %c0_94, %c0_95, %c0_96] : memref<1x4x8x128xf32, #tpu.memory_space<vmem>>, vector<1x4x8x128xf32>
    tpu.vector_store %arg5[%c0_93, %c0_94, %c0_95, %c0_96], %82 {strides = array<i32>} : memref<1x4x8x128xf32, #tpu.memory_space<vmem>>, vector<1x4x8x128xf32>,
    %cst_97 = arith.constant dense<0.000000e+00> : vector<128xf32>
    %84 = vector.multi_reduction <add>, %81, %cst_97 [0] : vector<32x128xf32> to vector<128xf32>
    %85 = vector.shape_cast %84 : vector<128xf32> to vector<1x128xf32>
    %86 = arith.mulf %81, %81 : vector<32x128xf32>
    %cst_98 = arith.constant dense<0.000000e+00> : vector<128xf32>
    %87 = vector.multi_reduction <add>, %86, %cst_98 [0] : vector<32x128xf32> to vector<128xf32>
    %88 = vector.shape_cast %87 : vector<128xf32> to vector<1x128xf32>
    %cst_99 = arith.constant 0.000000e+00 : f32
    %89 = vector.broadcast %cst_99 : f32 to vector<6x128xf32>
    %90 = tpu.concatenate %85, %88, %89 in 0 : vector<1x128xf32>, vector<1x128xf32>, vector<6x128xf32> -> vector<8x128xf32>
    %91 = vector.shape_cast %90 : vector<8x128xf32> to vector<1x8x128xf32>
    %c0_100 = arith.constant 0 : index
    %c0_101 = arith.constant 0 : index
    %c0_102 = arith.constant 0 : index
    %92 = vector.load %arg6[%c0_100, %c0_101, %c0_102] : memref<1x8x128xf32, #tpu.memory_space<vmem>>, vector<1x8x128xf32>
    tpu.vector_store %arg6[%c0_100, %c0_101, %c0_102], %91 {strides = array<i32>} : memref<1x8x128xf32, #tpu.memory_space<vmem>>, vector<1x8x128xf32>,
    return
  }
  func.func @transform_0(%arg0: i32) -> (i32, i32, i32, i32) {
    %c0_i32 = arith.constant 0 : i32
    %c0_i32_0 = arith.constant 0 : i32
    %c0_i32_1 = arith.constant 0 : i32
    %c0_i32_2 = arith.constant 0 : i32
    return %arg0, %c0_i32, %c0_i32_0, %c0_i32_1 : i32, i32, i32, i32
  }
  func.func @transform_1(%arg0: i32) -> (i32, i32) {
    %c0_i32 = arith.constant 0 : i32
    %c0_i32_0 = arith.constant 0 : i32
    %c0_i32_1 = arith.constant 0 : i32
    return %c0_i32, %c0_i32_0 : i32, i32
  }
  func.func @transform_2(%arg0: i32) -> (i32, i32) {
    %c0_i32 = arith.constant 0 : i32
    %c0_i32_0 = arith.constant 0 : i32
    %c0_i32_1 = arith.constant 0 : i32
    return %c0_i32, %c0_i32_0 : i32, i32
  }
  func.func @transform_3(%arg0: i32) -> (i32, i32, i32) {
    %c0_i32 = arith.constant 0 : i32
    %c0_i32_0 = arith.constant 0 : i32
    %c0_i32_1 = arith.constant 0 : i32
    %c0_i32_2 = arith.constant 0 : i32
    return %c0_i32, %c0_i32_0, %c0_i32_1 : i32, i32, i32
  }
  func.func @transform_4(%arg0: i32) -> (i32, i32, i32, i32) {
    %c0_i32 = arith.constant 0 : i32
    %c0_i32_0 = arith.constant 0 : i32
    %c0_i32_1 = arith.constant 0 : i32
    %c0_i32_2 = arith.constant 0 : i32
    return %arg0, %c0_i32, %c0_i32_0, %c0_i32_1 : i32, i32, i32, i32
  }
  func.func @transform_5(%arg0: i32) -> (i32, i32, i32) {
    %c0_i32 = arith.constant 0 : i32
    %c0_i32_0 = arith.constant 0 : i32
    %c0_i32_1 = arith.constant 0 : i32
    return %arg0, %c0_i32, %c0_i32_0 : i32, i32, i32
  }
}

module attributes {stable_mosaic.version = 11 : i64} {
  func.func @_finalize_kernel(%arg0: i32, %arg1: memref<1x4x8x128xf32, #tpu.memory_space<vmem>>, %arg2: memref<1x4x8x128xf32, #tpu.memory_space<vmem>>, %arg3: memref<1x128xf32, #tpu.memory_space<vmem>>, %arg4: memref<1x128xf32, #tpu.memory_space<vmem>>, %arg5: memref<1x4x8x128xf32, #tpu.memory_space<vmem>>) attributes {dimension_semantics = [#tpu.dimension_semantics<parallel>], iteration_bounds = array<i64: 2>, scalar_prefetch = 0 : i64, scratch_operands = 0 : i64, tpu.core_type = #tpu.core_type<tc>, window_params = [{transform_indices = @transform_0, window_bounds = array<i64: 1, 4, 8, 128>}, {transform_indices = @transform_1, window_bounds = array<i64: 1, 4, 8, 128>}, {pipeline_mode = #tpu.pipeline_mode<synchronous>, transform_indices = @transform_2, window_bounds = array<i64: 1, 128>}, {pipeline_mode = #tpu.pipeline_mode<synchronous>, transform_indices = @transform_3, window_bounds = array<i64: 1, 128>}, {transform_indices = @transform_4, window_bounds = array<i64: 1, 4, 8, 128>}]} {
    %c0 = arith.constant 0 : index
    %c0_0 = arith.constant 0 : index
    %0 = vector.load %arg3[%c0, %c0_0] : memref<1x128xf32, #tpu.memory_space<vmem>>, vector<1x128xf32>
    %1 = vector.shape_cast %0 : vector<1x128xf32> to vector<1x1x1x128xf32>
    %c0_1 = arith.constant 0 : index
    %c0_2 = arith.constant 0 : index
    %2 = vector.load %arg4[%c0_1, %c0_2] : memref<1x128xf32, #tpu.memory_space<vmem>>, vector<1x128xf32>
    %3 = vector.shape_cast %2 : vector<1x128xf32> to vector<1x1x1x128xf32>
    %c0_3 = arith.constant 0 : index
    %c0_4 = arith.constant 0 : index
    %c0_5 = arith.constant 0 : index
    %c0_6 = arith.constant 0 : index
    %4 = vector.load %arg1[%c0_3, %c0_4, %c0_5, %c0_6] : memref<1x4x8x128xf32, #tpu.memory_space<vmem>>, vector<1x4x8x128xf32>
    %5 = vector.broadcast %1 : vector<1x1x1x128xf32> to vector<1x4x8x128xf32>
    %6 = arith.mulf %4, %5 : vector<1x4x8x128xf32>
    %7 = vector.broadcast %3 : vector<1x1x1x128xf32> to vector<1x4x8x128xf32>
    %8 = arith.addf %6, %7 : vector<1x4x8x128xf32>
    %c0_7 = arith.constant 0 : index
    %c0_8 = arith.constant 0 : index
    %c0_9 = arith.constant 0 : index
    %c0_10 = arith.constant 0 : index
    %9 = vector.load %arg2[%c0_7, %c0_8, %c0_9, %c0_10] : memref<1x4x8x128xf32, #tpu.memory_space<vmem>>, vector<1x4x8x128xf32>
    %10 = arith.addf %8, %9 : vector<1x4x8x128xf32>
    %cst = arith.constant 0.000000e+00 : f32
    %11 = vector.broadcast %cst : f32 to vector<1x4x8x128xf32>
    %12 = arith.maximumf %10, %11 : vector<1x4x8x128xf32>
    %c0_11 = arith.constant 0 : index
    %c0_12 = arith.constant 0 : index
    %c0_13 = arith.constant 0 : index
    %c0_14 = arith.constant 0 : index
    %13 = vector.load %arg5[%c0_11, %c0_12, %c0_13, %c0_14] : memref<1x4x8x128xf32, #tpu.memory_space<vmem>>, vector<1x4x8x128xf32>
    tpu.vector_store %arg5[%c0_11, %c0_12, %c0_13, %c0_14], %12 {strides = array<i32>} : memref<1x4x8x128xf32, #tpu.memory_space<vmem>>, vector<1x4x8x128xf32>,
    return
  }
  func.func @transform_0(%arg0: i32) -> (i32, i32, i32, i32) {
    %c0_i32 = arith.constant 0 : i32
    %c0_i32_0 = arith.constant 0 : i32
    %c0_i32_1 = arith.constant 0 : i32
    %c0_i32_2 = arith.constant 0 : i32
    return %arg0, %c0_i32, %c0_i32_0, %c0_i32_1 : i32, i32, i32, i32
  }
  func.func @transform_1(%arg0: i32) -> (i32, i32, i32, i32) {
    %c0_i32 = arith.constant 0 : i32
    %c0_i32_0 = arith.constant 0 : i32
    %c0_i32_1 = arith.constant 0 : i32
    %c0_i32_2 = arith.constant 0 : i32
    return %arg0, %c0_i32, %c0_i32_0, %c0_i32_1 : i32, i32, i32, i32
  }
  func.func @transform_2(%arg0: i32) -> (i32, i32) {
    %c0_i32 = arith.constant 0 : i32
    %c0_i32_0 = arith.constant 0 : i32
    %c0_i32_1 = arith.constant 0 : i32
    return %c0_i32, %c0_i32_0 : i32, i32
  }
  func.func @transform_3(%arg0: i32) -> (i32, i32) {
    %c0_i32 = arith.constant 0 : i32
    %c0_i32_0 = arith.constant 0 : i32
    %c0_i32_1 = arith.constant 0 : i32
    return %c0_i32, %c0_i32_0 : i32, i32
  }
  func.func @transform_4(%arg0: i32) -> (i32, i32, i32, i32) {
    %c0_i32 = arith.constant 0 : i32
    %c0_i32_0 = arith.constant 0 : i32
    %c0_i32_1 = arith.constant 0 : i32
    %c0_i32_2 = arith.constant 0 : i32
    return %arg0, %c0_i32, %c0_i32_0, %c0_i32_1 : i32, i32, i32, i32
  }
}

</mosaic_0001>

<llo_original>
// kernel: conv_block_3d.3
$region0: #{conv_block_3d.3}
  #allocation0 [shape = 'u32[]', space=smem, size = 0x4, offset = 0x4, fixed_abs, tag = 'smem constant byte address 0x4 - core index']
  #allocation1 [shape = 'u32[144,128]{1,0:T(1,128)}', space=vmem, size = 0x12000, scoped, tag = 'internal scratch']
  #allocation2 [shape = 'f32[1,6,10,128]{3,2,1,0:T(8,128)}', space=vmem, size = 0xc000, scoped, tag = 'scratch operand']
  %s0 = inlined_call_operand.vmem [shape: f32[2,4,8,128], index: 0, kind: input, shape index: {}]
  %s1 = inlined_call_operand.vmem [shape: bf16[9,128,128], index: 1, kind: input, shape index: {}]
  %s2 = inlined_call_operand.vmem [shape: f32[2,4,8,128], index: 2, kind: output, shape index: {0}]
  %s3 = inlined_call_operand.vmem [shape: f32[2,8,128], index: 3, kind: output, shape index: {1}]
  %4 = xla_tuple %s2, %s3
  %s5 = sld [smem:[#allocation0]]
  $region49: #{conv_block_3d.3} parent=0
    _
  %s7 = ssub.s32 1, %s5
  %s8 = scalar_select 0, %s7, %s5
  loop: start=0, step=1, limit=4
  $region2: #{conv_block_3d.3} parent=0 // loop_pre_header
    _
  $region3: #{conv_block_3d.3} parent=0 // loop_header
    %s10 = sphi 0, %s14
    %p11 = scmp.ge.s32.totalorder %s10, 4
    %s20 = sphi 0, %s22
    %s23 = sphi 0, %s20
    %s24 = sphi 0, %s23
    %s40 = sphi 0, %s24
    %s44 = sphi 0, %s44
    %s46 = sphi 0, %s44
    %s47 = sphi 0, %s46
    %s61 = sphi 0, %s47
    %s67 = sphi 0, %s69
    %s70 = sphi 0, %s67
    %s71 = sphi 0, %s70
    %s87 = sphi 0, %s71
    %s93 = sphi 0, %s95
    %s96 = sphi 0, %s93
    %s97 = sphi 0, %s96
    %s113 = sphi 0, %s97
  $region4: #{conv_block_3d.3} parent=0 // loop_header_branch
    %13 = sbr.rel (%p11) target = $region8
  $region5: #{conv_block_3d.3} parent=0 // loop_body
    %s15 = ssub.s32 %s10, 1
    %s16 = ssub.s32 %s10, 2
    %s17 = sadd.s32 %s10, 1
    %s18 = ssub.s32 %s10, %s17
    %p19 = scmp.eq.s32.totalorder %s18, 0
    %s21 = sadd.s32 %s20, 1
    %s22 = scalar_select %p19, %s20, %s21
    %p25 = pneg %p19
    %p26 = scmp.eq.s32.totalorder %s10, 1
    %p27 = por %p25, %p26
    %p28 = scmp.ne.s32.totalorder %s20, %s23
    %p29 = scmp.eq.s32.totalorder %s10, 0
    %p30 = por %p28, %p29
    %p31 = scmp.ne.s32.totalorder %s20, %s23
    %p32 = scmp.eq.s32.totalorder %s15, 1
    %p33 = por %p31, %p32
    %p34 = scmp.ne.s32.totalorder %s23, %s24
    %p35 = scmp.eq.s32.totalorder %s15, 0
    %p36 = por %p34, %p35
    %p37 = scmp.ne.s32.totalorder %s23, %s24
    %p38 = scmp.eq.s32.totalorder %s16, 1
    %p39 = por %p37, %p38
    %p41 = scmp.ne.s32.totalorder %s24, %s40
    %p42 = scmp.eq.s32.totalorder %s16, 0
    %p43 = por %p41, %p42
    %s45 = sadd.s32 %s44, 1
    %p48 = scmp.eq.s32.totalorder %s10, 1
    %p49 = scmp.ne.s32.totalorder %s44, %s46
    %p50 = scmp.eq.s32.totalorder %s10, 0
    %p51 = por %p49, %p50
    %p52 = scmp.ne.s32.totalorder %s44, %s46
    %p53 = scmp.eq.s32.totalorder %s15, 1
    %p54 = por %p52, %p53
    %p55 = scmp.ne.s32.totalorder %s46, %s47
    %p56 = scmp.eq.s32.totalorder %s15, 0
    %p57 = por %p55, %p56
    %p58 = scmp.ne.s32.totalorder %s46, %s47
    %p59 = scmp.eq.s32.totalorder %s16, 1
    %p60 = por %p58, %p59
    %p62 = scmp.ne.s32.totalorder %s47, %s61
    %p63 = scmp.eq.s32.totalorder %s16, 0
    %p64 = por %p62, %p63
    %s65 = ssub.s32 %s10, %s17
    %p66 = scmp.eq.s32.totalorder %s65, 0
    %s68 = sadd.s32 %s67, 1
    %s69 = scalar_select %p66, %s67, %s68
    %p72 = pneg %p66
    %p73 = scmp.eq.s32.totalorder %s10, 1
    %p74 = por %p72, %p73
    %p75 = scmp.ne.s32.totalorder %s67, %s70
    %p76 = scmp.eq.s32.totalorder %s10, 0
    %p77 = por %p75, %p76
    %p78 = scmp.ne.s32.totalorder %s67, %s70
    %p79 = scmp.eq.s32.totalorder %s15, 1
    %p80 = por %p78, %p79
    %p81 = scmp.ne.s32.totalorder %s70, %s71
    %p82 = scmp.eq.s32.totalorder %s15, 0
    %p83 = por %p81, %p82
    %p84 = scmp.ne.s32.totalorder %s70, %s71
    %p85 = scmp.eq.s32.totalorder %s16, 1
    %p86 = por %p84, %p85
    %p88 = scmp.ne.s32.totalorder %s71, %s87
    %p89 = scmp.eq.s32.totalorder %s16, 0
    %p90 = por %p88, %p89
    %s91 = ssub.s32 %s10, %s17
    %p92 = scmp.eq.s32.totalorder %s91, 0
    %s94 = sadd.s32 %s93, 1
    %s95 = scalar_select %p92, %s93, %s94
    %p98 = pneg %p92
    %p99 = scmp.eq.s32.totalorder %s10, 1
    %p100 = por %p98, %p99
    %p101 = scmp.ne.s32.totalorder %s93, %s96
    %p102 = scmp.eq.s32.totalorder %s10, 0
    %p103 = por %p101, %p102
    %p104 = scmp.ne.s32.totalorder %s93, %s96
    %p105 = scmp.eq.s32.totalorder %s15, 1
    %p106 = por %p104, %p105
    %p107 = scmp.ne.s32.totalorder %s96, %s97
    %p108 = scmp.eq.s32.totalorder %s15, 0
    %p109 = por %p107, %p108
    %p110 = scmp.ne.s32.totalorder %s96, %s97
    %p111 = scmp.eq.s32.totalorder %s16, 1
    %p112 = por %p110, %p111
    %p114 = scmp.ne.s32.totalorder %s97, %s113
    %p115 = scmp.eq.s32.totalorder %s16, 0
    %p116 = por %p114, %p115
    %p117 = scmp.le.s32.totalorder 1, %s10
    %p118 = scmp.lt.s32.totalorder %s10, 3
    %p119 = pnand %p117, %p118
    %p120 = pneg %p119
    // Predicated region
    $region9: #{conv_block_3d.3} parent=5 // pred_check
      _
    $region10: #{conv_block_3d.3} parent=5 // pred_check_branch
      %122 = sbr.rel (%p119) target = $region12
    $region11: #{conv_block_3d.3} parent=5 // pred_region
      %s123 = ssub.s32 %s10, 1
      // Predicated region
      $region13: #{conv_block_3d.3} parent=11 // pred_check
        %p124 = pneg %p57
      $region14: #{conv_block_3d.3} parent=11 // pred_check_branch
        %126 = sbr.rel (%p124) target = $region16
      $region15: #{conv_block_3d.3} parent=11 // pred_region
        _
      $region16: #{conv_block_3d.3} parent=11 // pred_fallthru
        _
    $region12: #{conv_block_3d.3} parent=5 // pred_fallthru
      _
    %p127 = scmp.lt.s32.totalorder %s10, 2
    // Predicated region
    $region17: #{conv_block_3d.3} parent=5 // pred_check
      %p128 = pneg %p127
    $region18: #{conv_block_3d.3} parent=5 // pred_check_branch
      %130 = sbr.rel (%p128) target = $region20
    $region19: #{conv_block_3d.3} parent=5 // pred_region
      // Predicated region
      $region21: #{conv_block_3d.3} parent=19 // pred_check
        %p131 = pneg %p30
      $region22: #{conv_block_3d.3} parent=19 // pred_check_branch
        %133 = sbr.rel (%p131) target = $region24
      $region23: #{conv_block_3d.3} parent=19 // pred_region
        %p134 = scmp.lt.s32.totalorder %s10, 1
        %s135 = scalar_select %p134, %s10, 1
        %s136 = smul.addr %s135, 4
        %s137 = smul.addr %s136, 8
        %s138 = scalar_lea.vmem %s0, %s137
      $region24: #{conv_block_3d.3} parent=19 // pred_fallthru
        _
    $region20: #{conv_block_3d.3} parent=5 // pred_fallthru
      _
    %p139 = scmp.le.s32.totalorder 1, %s10
    %p140 = scmp.lt.s32.totalorder %s10, 3
    %p141 = pnand %p139, %p140
    %p142 = pneg %p141
    // Predicated region
    $region25: #{conv_block_3d.3} parent=5 // pred_check
      _
    $region26: #{conv_block_3d.3} parent=5 // pred_check_branch
      %144 = sbr.rel (%p141) target = $region28
    $region27: #{conv_block_3d.3} parent=5 // pred_region
      %s145 = ssub.s32 %s10, 1
      %p146 = scmp.lt.s32.totalorder %s15, 1
      %s147 = scalar_select %p146, %s15, 1
      %s148 = smul.addr %s147, 4
      %s149 = smul.addr %s148, 8
      %s150 = scalar_lea.vmem %s0, %s149
      %p151 = pneg %p36
      %p152 = pneg %p33
      %p153 = pneg %p57
      %p154 = pneg %p54
      %p155 = pneg %p83
      %p156 = pneg %p80
      %p157 = scmp.lt.s32.totalorder %s15, 1
      %s158 = scalar_select %p157, %s15, 1
      %s159 = smul.addr %s158, 4
      %s160 = smul.addr %s159, 8
      %s161 = scalar_lea.vmem %s2, %s160
      %p162 = pneg %p109
      %p163 = pneg %p106
      %p164 = scmp.lt.s32.totalorder %s15, 1
      %s165 = scalar_select %p164, %s15, 1
      %s166 = smul.addr %s165, 8
      %s167 = scalar_lea.vmem %s3, %s166
      %p168 = scmp.lt.s32.totalorder %s15, 1
      %s169 = scalar_select %p168, %s15, 1
      %s170 = smul.addr %s169, 4
      %s171 = smul.addr %s170, 8
      %s172 = scalar_lea.vmem %s0, %s171
      %p173 = scmp.lt.s32.totalorder %s15, 1
      %s174 = scalar_select %p173, %s15, 1
      %s175 = smul.addr %s174, 4
      %s176 = smul.addr %s175, 8
      %s177 = scalar_lea.vmem %s2, %s176
      %p178 = scmp.lt.s32.totalorder %s15, 1
      %s179 = scalar_select %p178, %s15, 1
      %s180 = smul.addr %s179, 8
      %s181 = scalar_lea.vmem %s3, %s180
      %v183 = vld [vmem:[%s172] sm:$0xff]
      %v184 = vld [vmem:[%s172 + $0x8] sm:$0xff]
      %v185 = vld [vmem:[%s172 + $0x10] sm:$0xff]
      %v186 = vld [vmem:[%s172 + $0x18] sm:$0xff]
      %187 = vst [vmem:[#allocation2] sm:$0xff] 0.0
      %188 = vst [vmem:[#allocation2 + $0x8] sm:$0x3] 0.0
      %s189 = scalar_lea.vmem [#allocation2], 80
      %190 = vst [vmem:[%s189] sm:$0xff] 0.0
      %191 = vst [vmem:[%s189 + $0x8] sm:$0x3] 0.0
      %s192 = scalar_lea.vmem [#allocation2], 16
      %193 = vst [vmem:[%s192] sm:$0x1] 0.0
      %194 = vst [vmem:[%s192 + $0x10] sm:$0x1] 0.0
      %195 = vst [vmem:[%s192 + $0x20] sm:$0x1] 0.0
      %196 = vst [vmem:[%s192 + $0x30] sm:$0x1] 0.0
      %197 = vst [vmem:[%s192 + $0x9] sm:$0x1] 0.0
      %198 = vst [vmem:[%s192 + $0x19] sm:$0x1] 0.0
      %199 = vst [vmem:[%s192 + $0x29] sm:$0x1] 0.0
      %200 = vst [vmem:[%s192 + $0x39] sm:$0x1] 0.0
      %201 = vst [vmem:[%s192 + $0x1] sm:$0xff] %v183
      %202 = vst [vmem:[%s192 + $0x11] sm:$0xff] %v184
      %203 = vst [vmem:[%s192 + $0x21] sm:$0xff] %v185
      %204 = vst [vmem:[%s192 + $0x31] sm:$0xff] %v186
      %v205 = vld [vmem:[#allocation2] sm:$0xff]
      %v206 = vld [vmem:[#allocation2 + $0x10] sm:$0xff]
      %v207 = vld [vmem:[#allocation2 + $0x20] sm:$0xff]
      %v208 = vld [vmem:[#allocation2 + $0x30] sm:$0xff]
      %v209 = vpack.c.bf16 %v206, %v205
      %v210 = vpack.c.bf16 %v208, %v207
      %v211 = vld [vmem:[%s1] sm:$0xf]
      %v212 = vld [vmem:[%s1 + $0x4] sm:$0xf]
      %v213 = vld [vmem:[%s1 + $0x8] sm:$0xf]
      %v214 = vld [vmem:[%s1 + $0xc] sm:$0xf]
      %v215 = vld [vmem:[%s1 + $0x10] sm:$0xf]
      %v216 = vld [vmem:[%s1 + $0x14] sm:$0xf]
      %v217 = vld [vmem:[%s1 + $0x18] sm:$0xf]
      %v218 = vld [vmem:[%s1 + $0x1c] sm:$0xf]
      %v219 = vld [vmem:[%s1 + $0x20] sm:$0xf]
      %v220 = vld [vmem:[%s1 + $0x24] sm:$0xf]
      %v221 = vld [vmem:[%s1 + $0x28] sm:$0xf]
      %v222 = vld [vmem:[%s1 + $0x2c] sm:$0xf]
      %v223 = vld [vmem:[%s1 + $0x30] sm:$0xf]
      %v224 = vld [vmem:[%s1 + $0x34] sm:$0xf]
      %v225 = vld [vmem:[%s1 + $0x38] sm:$0xf]
      %v226 = vld [vmem:[%s1 + $0x3c] sm:$0xf]
      %v227 = vld [vmem:[#allocation2 + $0x1] sm:$0xff]
      %v228 = vld [vmem:[#allocation2 + $0x11] sm:$0xff]
      %v229 = vld [vmem:[#allocation2 + $0x21] sm:$0xff]
      %v230 = vld [vmem:[#allocation2 + $0x31] sm:$0xff]
      %v231 = vpack.c.bf16 %v228, %v227
      %v232 = vpack.c.bf16 %v230, %v229
      %s233 = scalar_lea.vmem %s1, 64
      %v234 = vld [vmem:[%s233] sm:$0xf]
      %v235 = vld [vmem:[%s233 + $0x4] sm:$0xf]
      %v236 = vld [vmem:[%s233 + $0x8] sm:$0xf]
      %v237 = vld [vmem:[%s233 + $0xc] sm:$0xf]
      %v238 = vld [vmem:[%s233 + $0x10] sm:$0xf]
      %v239 = vld [vmem:[%s233 + $0x14] sm:$0xf]
      %v240 = vld [vmem:[%s233 + $0x18] sm:$0xf]
      %v241 = vld [vmem:[%s233 + $0x1c] sm:$0xf]
      %v242 = vld [vmem:[%s233 + $0x20] sm:$0xf]
      %v243 = vld [vmem:[%s233 + $0x24] sm:$0xf]
      %v244 = vld [vmem:[%s233 + $0x28] sm:$0xf]
      %v245 = vld [vmem:[%s233 + $0x2c] sm:$0xf]
      %v246 = vld [vmem:[%s233 + $0x30] sm:$0xf]
      %v247 = vld [vmem:[%s233 + $0x34] sm:$0xf]
      %v248 = vld [vmem:[%s233 + $0x38] sm:$0xf]
      %v249 = vld [vmem:[%s233 + $0x3c] sm:$0xf]
      %v266 = vunpack.c.l.b16 %v234
      %v267 = vunpack.c.l.b16 %v235
      %v268 = vunpack.c.l.b16 %v236
      %v269 = vunpack.c.l.b16 %v237
      %v270 = vunpack.c.l.b16 %v238
      %v271 = vunpack.c.l.b16 %v239
      %v272 = vunpack.c.l.b16 %v240
      %v273 = vunpack.c.l.b16 %v241
      %v274 = vunpack.c.l.b16 %v242
      %v275 = vunpack.c.l.b16 %v243
      %v276 = vunpack.c.l.b16 %v244
      %v277 = vunpack.c.l.b16 %v245
      %v278 = vunpack.c.l.b16 %v246
      %v279 = vunpack.c.l.b16 %v247
      %v280 = vunpack.c.l.b16 %v248
      %v281 = vunpack.c.l.b16 %v249
      %v282 = vpack.c.b16 %v267, %v266
      %v283 = vpack.c.b16 %v269, %v268
      %v284 = vpack.c.b16 %v271, %v270
      %v285 = vpack.c.b16 %v273, %v272
      %v286 = vpack.c.b16 %v275, %v274
      %v287 = vpack.c.b16 %v277, %v276
      %v288 = vpack.c.b16 %v279, %v278
      %v289 = vpack.c.b16 %v281, %v280
      %298 = vmatprep.subr.bf16.mxu0 0
      %299 = vmatpush1.bf16.msra.mxu0 %v289
      %300 = vmatprep.subr.bf16.mxu0 0
      %301 = vmatpush1.bf16.msra.mxu0 %v288
      %302 = vmatprep.subr.bf16.mxu0 0
      %303 = vmatpush1.bf16.msra.mxu0 %v287
      %304 = vmatprep.subr.bf16.mxu0 0
      %305 = vmatpush1.bf16.msra.mxu0 %v286
      %306 = vmatprep.subr.bf16.mxu0 0
      %307 = vmatpush1.bf16.msra.mxu0 %v285
      %308 = vmatprep.subr.bf16.mxu0 0
      %309 = vmatpush1.bf16.msra.mxu0 %v284
      %310 = vmatprep.subr.bf16.mxu0 0
      %311 = vmatpush1.bf16.msra.mxu0 %v283
      %312 = vmatprep.subr.bf16.mxu0 0
      %313 = vmatpush1.bf16.msra.mxu0 %v282
      %314 = vmatprep.subr.bf16.mxu0 0
      %315 = vmatpush2.bf16.msra.mxu0 0
      %316 = vmatprep.subr.bf16.mxu0 0
      %317 = vmatpush2.bf16.msra.mxu0 0
      %318 = vmatprep.subr.bf16.mxu0 0
      %319 = vmatpush2.bf16.msra.mxu0 0
      %320 = vmatprep.subr.bf16.mxu0 0
      %321 = vmatpush2.bf16.msra.mxu0 0
      %322 = vmatprep.subr.bf16.mxu0 0
      %323 = vmatpush2.bf16.msra.mxu0 0
      %324 = vmatprep.subr.bf16.mxu0 0
      %325 = vmatpush2.bf16.msra.mxu0 0
      %326 = vmatprep.subr.bf16.mxu0 0
      %327 = vmatpush2.bf16.msra.mxu0 0
      %328 = vmatprep.subr.bf16.mxu0 0
      %329 = vmatpush2.bf16.msra.mxu0 0
      %330 = vmatprep.mubr.bf16.mxu0 0
      %331 = vmatmul.mubr.bf16.gmra.mxu0 %v231
      %v332 = vpop.f32.mrf.mxu0
      %v333 = vadd.f32 0.0, %v332
      %v334 = vpop.f32.mrf.mxu0
      %v335 = vpop.f32.mrf.mxu0
      %v336 = vadd.f32 0.0, %v335
      %v337 = vpop.f32.mrf.mxu0
      %338 = vmatprep.mubr.bf16.mxu0 0
      %339 = vmatmul.mubr.bf16.gmra.mxu0 %v232
      %v340 = vpop.f32.mrf.mxu0
      %v341 = vadd.f32 0.0, %v340
      %v342 = vpop.f32.mrf.mxu0
      %v343 = vpop.f32.mrf.mxu0
      %v344 = vadd.f32 0.0, %v343
      %v345 = vpop.f32.mrf.mxu0
      %346 = vdwg.mxu0
      %v363 = vunpack.c.l.b16 %v211
      %v364 = vunpack.c.l.b16 %v212
      %v365 = vunpack.c.l.b16 %v213
      %v366 = vunpack.c.l.b16 %v214
      %v367 = vunpack.c.l.b16 %v215
      %v368 = vunpack.c.l.b16 %v216
      %v369 = vunpack.c.l.b16 %v217
      %v370 = vunpack.c.l.b16 %v218
      %v371 = vunpack.c.l.b16 %v219
      %v372 = vunpack.c.l.b16 %v220
      %v373 = vunpack.c.l.b16 %v221
      %v374 = vunpack.c.l.b16 %v222
      %v375 = vunpack.c.l.b16 %v223
      %v376 = vunpack.c.l.b16 %v224
      %v377 = vunpack.c.l.b16 %v225
      %v378 = vunpack.c.l.b16 %v226
      %v379 = vpack.c.b16 %v364, %v363
      %v380 = vpack.c.b16 %v366, %v365
      %v381 = vpack.c.b16 %v368, %v367
      %v382 = vpack.c.b16 %v370, %v369
      %v383 = vpack.c.b16 %v372, %v371
      %v384 = vpack.c.b16 %v374, %v373
      %v385 = vpack.c.b16 %v376, %v375
      %v386 = vpack.c.b16 %v378, %v377
      %395 = vmatprep.subr.bf16.mxu0 0
      %396 = vmatpush1.bf16.msra.mxu0 %v386
      %397 = vmatprep.subr.bf16.mxu0 0
      %398 = vmatpush1.bf16.msra.mxu0 %v385
      %399 = vmatprep.subr.bf16.mxu0 0
      %400 = vmatpush1.bf16.msra.mxu0 %v384
      %401 = vmatprep.subr.bf16.mxu0 0
      %402 = vmatpush1.bf16.msra.mxu0 %v383
      %403 = vmatprep.subr.bf16.mxu0 0
      %404 = vmatpush1.bf16.msra.mxu0 %v382
      %405 = vmatprep.subr.bf16.mxu0 0
      %406 = vmatpush1.bf16.msra.mxu0 %v381
      %407 = vmatprep.subr.bf16.mxu0 0
      %408 = vmatpush1.bf16.msra.mxu0 %v380
      %409 = vmatprep.subr.bf16.mxu0 0
      %410 = vmatpush1.bf16.msra.mxu0 %v379
      %411 = vmatprep.subr.bf16.mxu0 0
      %412 = vmatpush2.bf16.msra.mxu0 0
      %413 = vmatprep.subr.bf16.mxu0 0
      %414 = vmatpush2.bf16.msra.mxu0 0
      %415 = vmatprep.subr.bf16.mxu0 0
      %416 = vmatpush2.bf16.msra.mxu0 0
      %417 = vmatprep.subr.bf16.mxu0 0
      %418 = vmatpush2.bf16.msra.mxu0 0
      %419 = vmatprep.subr.bf16.mxu0 0
      %420 = vmatpush2.bf16.msra.mxu0 0
      %421 = vmatprep.subr.bf16.mxu0 0
      %422 = vmatpush2.bf16.msra.mxu0 0
      %423 = vmatprep.subr.bf16.mxu0 0
      %424 = vmatpush2.bf16.msra.mxu0 0
      %425 = vmatprep.subr.bf16.mxu0 0
      %426 = vmatpush2.bf16.msra.mxu0 0
      %427 = vmatprep.mubr.bf16.mxu0 0
      %428 = vmatmul.mubr.bf16.gmra.mxu0 %v209
      %v429 = vpop.f32.mrf.mxu0
      %v430 = vadd.f32 %v333, %v429
      %v431 = vpop.f32.mrf.mxu0
      %v432 = vpop.f32.mrf.mxu0
      %v433 = vadd.f32 %v336, %v432
      %v434 = vpop.f32.mrf.mxu0
      %435 = vmatprep.mubr.bf16.mxu0 0
      %436 = vmatmul.mubr.bf16.gmra.mxu0 %v210
      %v437 = vpop.f32.mrf.mxu0
      %v438 = vadd.f32 %v341, %v437
      %v439 = vpop.f32.mrf.mxu0
      %v440 = vpop.f32.mrf.mxu0
      %v441 = vadd.f32 %v344, %v440
      %v442 = vpop.f32.mrf.mxu0
      %443 = vdwg.mxu0
      %v444 = vld [vmem:[#allocation2 + $0x2] sm:$0xff]
      %v445 = vld [vmem:[#allocation2 + $0x12] sm:$0xff]
      %v446 = vld [vmem:[#allocation2 + $0x22] sm:$0xff]
      %v447 = vld [vmem:[#allocation2 + $0x32] sm:$0xff]
      %v448 = vpack.c.bf16 %v445, %v444
      %v449 = vpack.c.bf16 %v447, %v446
      %s450 = scalar_lea.vmem %s1, 128
      %v451 = vld [vmem:[%s450] sm:$0xf]
      %v452 = vld [vmem:[%s450 + $0x4] sm:$0xf]
      %v453 = vld [vmem:[%s450 + $0x8] sm:$0xf]
      %v454 = vld [vmem:[%s450 + $0xc] sm:$0xf]
      %v455 = vld [vmem:[%s450 + $0x10] sm:$0xf]
      %v456 = vld [vmem:[%s450 + $0x14] sm:$0xf]
      %v457 = vld [vmem:[%s450 + $0x18] sm:$0xf]
      %v458 = vld [vmem:[%s450 + $0x1c] sm:$0xf]
      %v459 = vld [vmem:[%s450 + $0x20] sm:$0xf]
      %v460 = vld [vmem:[%s450 + $0x24] sm:$0xf]
      %v461 = vld [vmem:[%s450 + $0x28] sm:$0xf]
      %v462 = vld [vmem:[%s450 + $0x2c] sm:$0xf]
      %v463 = vld [vmem:[%s450 + $0x30] sm:$0xf]
      %v464 = vld [vmem:[%s450 + $0x34] sm:$0xf]
      %v465 = vld [vmem:[%s450 + $0x38] sm:$0xf]
      %v466 = vld [vmem:[%s450 + $0x3c] sm:$0xf]
      %v483 = vunpack.c.l.b16 %v451
      %v484 = vunpack.c.l.b16 %v452
      %v485 = vunpack.c.l.b16 %v453
      %v486 = vunpack.c.l.b16 %v454
      %v487 = vunpack.c.l.b16 %v455
      %v488 = vunpack.c.l.b16 %v456
      %v489 = vunpack.c.l.b16 %v457
      %v490 = vunpack.c.l.b16 %v458
      %v491 = vunpack.c.l.b16 %v459
      %v492 = vunpack.c.l.b16 %v460
      %v493 = vunpack.c.l.b16 %v461
      %v494 = vunpack.c.l.b16 %v462
      %v495 = vunpack.c.l.b16 %v463
      %v496 = vunpack.c.l.b16 %v464
      %v497 = vunpack.c.l.b16 %v465
      %v498 = vunpack.c.l.b16 %v466
      %v499 = vpack.c.b16 %v484, %v483
      %v500 = vpack.c.b16 %v486, %v485
      %v501 = vpack.c.b16 %v488, %v487
      %v502 = vpack.c.b16 %v490, %v489
      %v503 = vpack.c.b16 %v492, %v491
      %v504 = vpack.c.b16 %v494, %v493
      %v505 = vpack.c.b16 %v496, %v495
      %v506 = vpack.c.b16 %v498, %v497
      %515 = vmatprep.subr.bf16.mxu0 0
      %516 = vmatpush1.bf16.msra.mxu0 %v506
      %517 = vmatprep.subr.bf16.mxu0 0
      %518 = vmatpush1.bf16.msra.mxu0 %v505
      %519 = vmatprep.subr.bf16.mxu0 0
      %520 = vmatpush1.bf16.msra.mxu0 %v504
      %521 = vmatprep.subr.bf16.mxu0 0
      %522 = vmatpush1.bf16.msra.mxu0 %v503
      %523 = vmatprep.subr.bf16.mxu0 0
      %524 = vmatpush1.bf16.msra.mxu0 %v502
      %525 = vmatprep.subr.bf16.mxu0 0
      %526 = vmatpush1.bf16.msra.mxu0 %v501
      %527 = vmatprep.subr.bf16.mxu0 0
      %528 = vmatpush1.bf16.msra.mxu0 %v500
      %529 = vmatprep.subr.bf16.mxu0 0
      %530 = vmatpush1.bf16.msra.mxu0 %v499
      %531 = vmatprep.subr.bf16.mxu0 0
      %532 = vmatpush2.bf16.msra.mxu0 0
      %533 = vmatprep.subr.bf16.mxu0 0
      %534 = vmatpush2.bf16.msra.mxu0 0
      %535 = vmatprep.subr.bf16.mxu0 0
      %536 = vmatpush2.bf16.msra.mxu0 0
      %537 = vmatprep.subr.bf16.mxu0 0
      %538 = vmatpush2.bf16.msra.mxu0 0
      %539 = vmatprep.subr.bf16.mxu0 0
      %540 = vmatpush2.bf16.msra.mxu0 0
      %541 = vmatprep.subr.bf16.mxu0 0
      %542 = vmatpush2.bf16.msra.mxu0 0
      %543 = vmatprep.subr.bf16.mxu0 0
      %544 = vmatpush2.bf16.msra.mxu0 0
      %545 = vmatprep.subr.bf16.mxu0 0
      %546 = vmatpush2.bf16.msra.mxu0 0
      %547 = vmatprep.mubr.bf16.mxu0 0
      %548 = vmatmul.mubr.bf16.gmra.mxu0 %v448
      %v549 = vpop.f32.mrf.mxu0
      %v550 = vadd.f32 0.0, %v549
      %v551 = vpop.f32.mrf.mxu0
      %v552 = vpop.f32.mrf.mxu0
      %v553 = vadd.f32 0.0, %v552
      %v554 = vpop.f32.mrf.mxu0
      %555 = vmatprep.mubr.bf16.mxu0 0
      %556 = vmatmul.mubr.bf16.gmra.mxu0 %v449
      %v557 = vpop.f32.mrf.mxu0
      %v558 = vadd.f32 0.0, %v557
      %v559 = vpop.f32.mrf.mxu0
      %v560 = vpop.f32.mrf.mxu0
      %v561 = vadd.f32 0.0, %v560
      %v562 = vpop.f32.mrf.mxu0
      %563 = vdwg.mxu0
      %v564 = vadd.f32 %v430, %v550
      %v565 = vadd.f32 %v433, %v553
      %v566 = vadd.f32 %v438, %v558
      %v567 = vadd.f32 %v441, %v561
      %v568 = vld [vmem:[%s192] sm:$0xff]
      %v569 = vld [vmem:[%s192 + $0x10] sm:$0xff]
      %v570 = vld [vmem:[%s192 + $0x20] sm:$0xff]
      %v571 = vld [vmem:[%s192 + $0x30] sm:$0xff]
      %v572 = vpack.c.bf16 %v569, %v568
      %v573 = vpack.c.bf16 %v571, %v570
      %s574 = scalar_lea.vmem %s1, 192
      %v575 = vld [vmem:[%s574] sm:$0xf]
      %v576 = vld [vmem:[%s574 + $0x4] sm:$0xf]
      %v577 = vld [vmem:[%s574 + $0x8] sm:$0xf]
      %v578 = vld [vmem:[%s574 + $0xc] sm:$0xf]
      %v579 = vld [vmem:[%s574 + $0x10] sm:$0xf]
      %v580 = vld [vmem:[%s574 + $0x14] sm:$0xf]
      %v581 = vld [vmem:[%s574 + $0x18] sm:$0xf]
      %v582 = vld [vmem:[%s574 + $0x1c] sm:$0xf]
      %v583 = vld [vmem:[%s574 + $0x20] sm:$0xf]
      %v584 = vld [vmem:[%s574 + $0x24] sm:$0xf]
      %v585 = vld [vmem:[%s574 + $0x28] sm:$0xf]
      %v586 = vld [vmem:[%s574 + $0x2c] sm:$0xf]
      %v587 = vld [vmem:[%s574 + $0x30] sm:$0xf]
      %v588 = vld [vmem:[%s574 + $0x34] sm:$0xf]
      %v589 = vld [vmem:[%s574 + $0x38] sm:$0xf]
      %v590 = vld [vmem:[%s574 + $0x3c] sm:$0xf]
      %v607 = vunpack.c.l.b16 %v575
      %v608 = vunpack.c.l.b16 %v576
      %v609 = vunpack.c.l.b16 %v577
      %v610 = vunpack.c.l.b16 %v578
      %v611 = vunpack.c.l.b16 %v579
      %v612 = vunpack.c.l.b16 %v580
      %v613 = vunpack.c.l.b16 %v581
      %v614 = vunpack.c.l.b16 %v582
      %v615 = vunpack.c.l.b16 %v583
      %v616 = vunpack.c.l.b16 %v584
      %v617 = vunpack.c.l.b16 %v585
      %v618 = vunpack.c.l.b16 %v586
      %v619 = vunpack.c.l.b16 %v587
      %v620 = vunpack.c.l.b16 %v588
      %v621 = vunpack.c.l.b16 %v589
      %v622 = vunpack.c.l.b16 %v590
      %v623 = vpack.c.b16 %v608, %v607
      %v624 = vpack.c.b16 %v610, %v609
      %v625 = vpack.c.b16 %v612, %v611
      %v626 = vpack.c.b16 %v614, %v613
      %v627 = vpack.c.b16 %v616, %v615
      %v628 = vpack.c.b16 %v618, %v617
      %v629 = vpack.c.b16 %v620, %v619
      %v630 = vpack.c.b16 %v622, %v621
      %639 = vmatprep.subr.bf16.mxu0 0
      %640 = vmatpush1.bf16.msra.mxu0 %v630
      %641 = vmatprep.subr.bf16.mxu0 0
      %642 = vmatpush1.bf16.msra.mxu0 %v629
      %643 = vmatprep.subr.bf16.mxu0 0
      %644 = vmatpush1.bf16.msra.mxu0 %v628
      %645 = vmatprep.subr.bf16.mxu0 0
      %646 = vmatpush1.bf16.msra.mxu0 %v627
      %647 = vmatprep.subr.bf16.mxu0 0
      %648 = vmatpush1.bf16.msra.mxu0 %v626
      %649 = vmatprep.subr.bf16.mxu0 0
      %650 = vmatpush1.bf16.msra.mxu0 %v625
      %651 = vmatprep.subr.bf16.mxu0 0
      %652 = vmatpush1.bf16.msra.mxu0 %v624
      %653 = vmatprep.subr.bf16.mxu0 0
      %654 = vmatpush1.bf16.msra.mxu0 %v623
      %655 = vmatprep.subr.bf16.mxu0 0
      %656 = vmatpush2.bf16.msra.mxu0 0
      %657 = vmatprep.subr.bf16.mxu0 0
      %658 = vmatpush2.bf16.msra.mxu0 0
      %659 = vmatprep.subr.bf16.mxu0 0
      %660 = vmatpush2.bf16.msra.mxu0 0
      %661 = vmatprep.subr.bf16.mxu0 0
      %662 = vmatpush2.bf16.msra.mxu0 0
      %663 = vmatprep.subr.bf16.mxu0 0
      %664 = vmatpush2.bf16.msra.mxu0 0
      %665 = vmatprep.subr.bf16.mxu0 0
      %666 = vmatpush2.bf16.msra.mxu0 0
      %667 = vmatprep.subr.bf16.mxu0 0
      %668 = vmatpush2.bf16.msra.mxu0 0
      %669 = vmatprep.subr.bf16.mxu0 0
      %670 = vmatpush2.bf16.msra.mxu0 0
      %671 = vmatprep.mubr.bf16.mxu0 0
      %672 = vmatmul.mubr.bf16.gmra.mxu0 %v572
      %v673 = vpop.f32.mrf.mxu0
      %v674 = vadd.f32 0.0, %v673
      %v675 = vpop.f32.mrf.mxu0
      %v676 = vpop.f32.mrf.mxu0
      %v677 = vadd.f32 0.0, %v676
      %v678 = vpop.f32.mrf.mxu0
      %679 = vmatprep.mubr.bf16.mxu0 0
      %680 = vmatmul.mubr.bf16.gmra.mxu0 %v573
      %v681 = vpop.f32.mrf.mxu0
      %v682 = vadd.f32 0.0, %v681
      %v683 = vpop.f32.mrf.mxu0
      %v684 = vpop.f32.mrf.mxu0
      %v685 = vadd.f32 0.0, %v684
      %v686 = vpop.f32.mrf.mxu0
      %687 = vdwg.mxu0
      %v688 = vadd.f32 %v564, %v674
      %v689 = vadd.f32 %v565, %v677
      %v690 = vadd.f32 %v566, %v682
      %v691 = vadd.f32 %v567, %v685
      %v692 = vld [vmem:[%s192 + $0x1] sm:$0xff]
      %v693 = vld [vmem:[%s192 + $0x11] sm:$0xff]
      %v694 = vld [vmem:[%s192 + $0x21] sm:$0xff]
      %v695 = vld [vmem:[%s192 + $0x31] sm:$0xff]
      %v696 = vpack.c.bf16 %v693, %v692
      %v697 = vpack.c.bf16 %v695, %v694
      %s698 = scalar_lea.vmem %s1, 256
      %v699 = vld [vmem:[%s698] sm:$0xf]
      %v700 = vld [vmem:[%s698 + $0x4] sm:$0xf]
      %v701 = vld [vmem:[%s698 + $0x8] sm:$0xf]
      %v702 = vld [vmem:[%s698 + $0xc] sm:$0xf]
      %v703 = vld [vmem:[%s698 + $0x10] sm:$0xf]
      %v704 = vld [vmem:[%s698 + $0x14] sm:$0xf]
      %v705 = vld [vmem:[%s698 + $0x18] sm:$0xf]
      %v706 = vld [vmem:[%s698 + $0x1c] sm:$0xf]
      %v707 = vld [vmem:[%s698 + $0x20] sm:$0xf]
      %v708 = vld [vmem:[%s698 + $0x24] sm:$0xf]
      %v709 = vld [vmem:[%s698 + $0x28] sm:$0xf]
      %v710 = vld [vmem:[%s698 + $0x2c] sm:$0xf]
      %v711 = vld [vmem:[%s698 + $0x30] sm:$0xf]
      %v712 = vld [vmem:[%s698 + $0x34] sm:$0xf]
      %v713 = vld [vmem:[%s698 + $0x38] sm:$0xf]
      %v714 = vld [vmem:[%s698 + $0x3c] sm:$0xf]
      %v731 = vunpack.c.l.b16 %v699
      %v732 = vunpack.c.l.b16 %v700
      %v733 = vunpack.c.l.b16 %v701
      %v734 = vunpack.c.l.b16 %v702
      %v735 = vunpack.c.l.b16 %v703
      %v736 = vunpack.c.l.b16 %v704
      %v737 = vunpack.c.l.b16 %v705
      %v738 = vunpack.c.l.b16 %v706
      %v739 = vunpack.c.l.b16 %v707
      %v740 = vunpack.c.l.b16 %v708
      %v741 = vunpack.c.l.b16 %v709
      %v742 = vunpack.c.l.b16 %v710
      %v743 = vunpack.c.l.b16 %v711
      %v744 = vunpack.c.l.b16 %v712
      %v745 = vunpack.c.l.b16 %v713
      %v746 = vunpack.c.l.b16 %v714
      %v747 = vpack.c.b16 %v732, %v731
      %v748 = vpack.c.b16 %v734, %v733
      %v749 = vpack.c.b16 %v736, %v735
      %v750 = vpack.c.b16 %v738, %v737
      %v751 = vpack.c.b16 %v740, %v739
      %v752 = vpack.c.b16 %v742, %v741
      %v753 = vpack.c.b16 %v744, %v743
      %v754 = vpack.c.b16 %v746, %v745
      %763 = vmatprep.subr.bf16.mxu0 0
      %764 = vmatpush1.bf16.msra.mxu0 %v754
      %765 = vmatprep.subr.bf16.mxu0 0
      %766 = vmatpush1.bf16.msra.mxu0 %v753
      %767 = vmatprep.subr.bf16.mxu0 0
      %768 = vmatpush1.bf16.msra.mxu0 %v752
      %769 = vmatprep.subr.bf16.mxu0 0
      %770 = vmatpush1.bf16.msra.mxu0 %v751
      %771 = vmatprep.subr.bf16.mxu0 0
      %772 = vmatpush1.bf16.msra.mxu0 %v750
      %773 = vmatprep.subr.bf16.mxu0 0
      %774 = vmatpush1.bf16.msra.mxu0 %v749
      %775 = vmatprep.subr.bf16.mxu0 0
      %776 = vmatpush1.bf16.msra.mxu0 %v748
      %777 = vmatprep.subr.bf16.mxu0 0
      %778 = vmatpush1.bf16.msra.mxu0 %v747
      %779 = vmatprep.subr.bf16.mxu0 0
      %780 = vmatpush2.bf16.msra.mxu0 0
      %781 = vmatprep.subr.bf16.mxu0 0
      %782 = vmatpush2.bf16.msra.mxu0 0
      %783 = vmatprep.subr.bf16.mxu0 0
      %784 = vmatpush2.bf16.msra.mxu0 0
      %785 = vmatprep.subr.bf16.mxu0 0
      %786 = vmatpush2.bf16.msra.mxu0 0
      %787 = vmatprep.subr.bf16.mxu0 0
      %788 = vmatpush2.bf16.msra.mxu0 0
      %789 = vmatprep.subr.bf16.mxu0 0
      %790 = vmatpush2.bf16.msra.mxu0 0
      %791 = vmatprep.subr.bf16.mxu0 0
      %792 = vmatpush2.bf16.msra.mxu0 0
      %793 = vmatprep.subr.bf16.mxu0 0
      %794 = vmatpush2.bf16.msra.mxu0 0
      %795 = vmatprep.mubr.bf16.mxu0 0
      %796 = vmatmul.mubr.bf16.gmra.mxu0 %v696
      %v797 = vpop.f32.mrf.mxu0
      %v798 = vadd.f32 0.0, %v797
      %v799 = vpop.f32.mrf.mxu0
      %v800 = vpop.f32.mrf.mxu0
      %v801 = vadd.f32 0.0, %v800
      %v802 = vpop.f32.mrf.mxu0
      %803 = vmatprep.mubr.bf16.mxu0 0
      %804 = vmatmul.mubr.bf16.gmra.mxu0 %v697
      %v805 = vpop.f32.mrf.mxu0
      %v806 = vadd.f32 0.0, %v805
      %v807 = vpop.f32.mrf.mxu0
      %v808 = vpop.f32.mrf.mxu0
      %v809 = vadd.f32 0.0, %v808
      %v810 = vpop.f32.mrf.mxu0
      %811 = vdwg.mxu0
      %v812 = vadd.f32 %v688, %v798
      %v813 = vadd.f32 %v689, %v801
      %v814 = vadd.f32 %v690, %v806
      %v815 = vadd.f32 %v691, %v809
      %v816 = vld [vmem:[%s192 + $0x2] sm:$0xff]
      %v817 = vld [vmem:[%s192 + $0x12] sm:$0xff]
      %v818 = vld [vmem:[%s192 + $0x22] sm:$0xff]
      %v819 = vld [vmem:[%s192 + $0x32] sm:$0xff]
      %v820 = vpack.c.bf16 %v817, %v816
      %v821 = vpack.c.bf16 %v819, %v818
      %s822 = scalar_lea.vmem %s1, 320
      %v823 = vld [vmem:[%s822] sm:$0xf]
      %v824 = vld [vmem:[%s822 + $0x4] sm:$0xf]
      %v825 = vld [vmem:[%s822 + $0x8] sm:$0xf]
      %v826 = vld [vmem:[%s822 + $0xc] sm:$0xf]
      %v827 = vld [vmem:[%s822 + $0x10] sm:$0xf]
      %v828 = vld [vmem:[%s822 + $0x14] sm:$0xf]
      %v829 = vld [vmem:[%s822 + $0x18] sm:$0xf]
      %v830 = vld [vmem:[%s822 + $0x1c] sm:$0xf]
      %v831 = vld [vmem:[%s822 + $0x20] sm:$0xf]
      %v832 = vld [vmem:[%s822 + $0x24] sm:$0xf]
      %v833 = vld [vmem:[%s822 + $0x28] sm:$0xf]
      %v834 = vld [vmem:[%s822 + $0x2c] sm:$0xf]
      %v835 = vld [vmem:[%s822 + $0x30] sm:$0xf]
      %v836 = vld [vmem:[%s822 + $0x34] sm:$0xf]
      %v837 = vld [vmem:[%s822 + $0x38] sm:$0xf]
      %v838 = vld [vmem:[%s822 + $0x3c] sm:$0xf]
      %v855 = vunpack.c.l.b16 %v823
      %v856 = vunpack.c.l.b16 %v824
      %v857 = vunpack.c.l.b16 %v825
      %v858 = vunpack.c.l.b16 %v826
      %v859 = vunpack.c.l.b16 %v827
      %v860 = vunpack.c.l.b16 %v828
      %v861 = vunpack.c.l.b16 %v829
      %v862 = vunpack.c.l.b16 %v830
      %v863 = vunpack.c.l.b16 %v831
      %v864 = vunpack.c.l.b16 %v832
      %v865 = vunpack.c.l.b16 %v833
      %v866 = vunpack.c.l.b16 %v834
      %v867 = vunpack.c.l.b16 %v835
      %v868 = vunpack.c.l.b16 %v836
      %v869 = vunpack.c.l.b16 %v837
      %v870 = vunpack.c.l.b16 %v838
      %v871 = vpack.c.b16 %v856, %v855
      %v872 = vpack.c.b16 %v858, %v857
      %v873 = vpack.c.b16 %v860, %v859
      %v874 = vpack.c.b16 %v862, %v861
      %v875 = vpack.c.b16 %v864, %v863
      %v876 = vpack.c.b16 %v866, %v865
      %v877 = vpack.c.b16 %v868, %v867
      %v878 = vpack.c.b16 %v870, %v869
      %887 = vmatprep.subr.bf16.mxu0 0
      %888 = vmatpush1.bf16.msra.mxu0 %v878
      %889 = vmatprep.subr.bf16.mxu0 0
      %890 = vmatpush1.bf16.msra.mxu0 %v877
      %891 = vmatprep.subr.bf16.mxu0 0
      %892 = vmatpush1.bf16.msra.mxu0 %v876
      %893 = vmatprep.subr.bf16.mxu0 0
      %894 = vmatpush1.bf16.msra.mxu0 %v875
      %895 = vmatprep.subr.bf16.mxu0 0
      %896 = vmatpush1.bf16.msra.mxu0 %v874
      %897 = vmatprep.subr.bf16.mxu0 0
      %898 = vmatpush1.bf16.msra.mxu0 %v873
      %899 = vmatprep.subr.bf16.mxu0 0
      %900 = vmatpush1.bf16.msra.mxu0 %v872
      %901 = vmatprep.subr.bf16.mxu0 0
      %902 = vmatpush1.bf16.msra.mxu0 %v871
      %903 = vmatprep.subr.bf16.mxu0 0
      %904 = vmatpush2.bf16.msra.mxu0 0
      %905 = vmatprep.subr.bf16.mxu0 0
      %906 = vmatpush2.bf16.msra.mxu0 0
      %907 = vmatprep.subr.bf16.mxu0 0
      %908 = vmatpush2.bf16.msra.mxu0 0
      %909 = vmatprep.subr.bf16.mxu0 0
      %910 = vmatpush2.bf16.msra.mxu0 0
      %911 = vmatprep.subr.bf16.mxu0 0
      %912 = vmatpush2.bf16.msra.mxu0 0
      %913 = vmatprep.subr.bf16.mxu0 0
      %914 = vmatpush2.bf16.msra.mxu0 0
      %915 = vmatprep.subr.bf16.mxu0 0
      %916 = vmatpush2.bf16.msra.mxu0 0
      %917 = vmatprep.subr.bf16.mxu0 0
      %918 = vmatpush2.bf16.msra.mxu0 0
      %919 = vmatprep.mubr.bf16.mxu0 0
      %920 = vmatmul.mubr.bf16.gmra.mxu0 %v820
      %v921 = vpop.f32.mrf.mxu0
      %v922 = vadd.f32 0.0, %v921
      %v923 = vpop.f32.mrf.mxu0
      %v924 = vpop.f32.mrf.mxu0
      %v925 = vadd.f32 0.0, %v924
      %v926 = vpop.f32.mrf.mxu0
      %927 = vmatprep.mubr.bf16.mxu0 0
      %928 = vmatmul.mubr.bf16.gmra.mxu0 %v821
      %v929 = vpop.f32.mrf.mxu0
      %v930 = vadd.f32 0.0, %v929
      %v931 = vpop.f32.mrf.mxu0
      %v932 = vpop.f32.mrf.mxu0
      %v933 = vadd.f32 0.0, %v932
      %v934 = vpop.f32.mrf.mxu0
      %935 = vdwg.mxu0
      %v936 = vadd.f32 %v812, %v922
      %v937 = vadd.f32 %v813, %v925
      %v938 = vadd.f32 %v814, %v930
      %v939 = vadd.f32 %v815, %v933
      %s940 = scalar_lea.vmem [#allocation2], 32
      %v941 = vld [vmem:[%s940] sm:$0xff]
      %v942 = vld [vmem:[%s940 + $0x10] sm:$0xff]
      %v943 = vld [vmem:[%s940 + $0x20] sm:$0xff]
      %v944 = vld [vmem:[%s940 + $0x30] sm:$0xff]
      %v945 = vpack.c.bf16 %v942, %v941
      %v946 = vpack.c.bf16 %v944, %v943
      %s947 = scalar_lea.vmem %s1, 384
      %v948 = vld [vmem:[%s947] sm:$0xf]
      %v949 = vld [vmem:[%s947 + $0x4] sm:$0xf]
      %v950 = vld [vmem:[%s947 + $0x8] sm:$0xf]
      %v951 = vld [vmem:[%s947 + $0xc] sm:$0xf]
      %v952 = vld [vmem:[%s947 + $0x10] sm:$0xf]
      %v953 = vld [vmem:[%s947 + $0x14] sm:$0xf]
      %v954 = vld [vmem:[%s947 + $0x18] sm:$0xf]
      %v955 = vld [vmem:[%s947 + $0x1c] sm:$0xf]
      %v956 = vld [vmem:[%s947 + $0x20] sm:$0xf]
      %v957 = vld [vmem:[%s947 + $0x24] sm:$0xf]
      %v958 = vld [vmem:[%s947 + $0x28] sm:$0xf]
      %v959 = vld [vmem:[%s947 + $0x2c] sm:$0xf]
      %v960 = vld [vmem:[%s947 + $0x30] sm:$0xf]
      %v961 = vld [vmem:[%s947 + $0x34] sm:$0xf]
      %v962 = vld [vmem:[%s947 + $0x38] sm:$0xf]
      %v963 = vld [vmem:[%s947 + $0x3c] sm:$0xf]
      %v980 = vunpack.c.l.b16 %v948
      %v981 = vunpack.c.l.b16 %v949
      %v982 = vunpack.c.l.b16 %v950
      %v983 = vunpack.c.l.b16 %v951
      %v984 = vunpack.c.l.b16 %v952
      %v985 = vunpack.c.l.b16 %v953
      %v986 = vunpack.c.l.b16 %v954
      %v987 = vunpack.c.l.b16 %v955
      %v988 = vunpack.c.l.b16 %v956
      %v989 = vunpack.c.l.b16 %v957
      %v990 = vunpack.c.l.b16 %v958
      %v991 = vunpack.c.l.b16 %v959
      %v992 = vunpack.c.l.b16 %v960
      %v993 = vunpack.c.l.b16 %v961
      %v994 = vunpack.c.l.b16 %v962
      %v995 = vunpack.c.l.b16 %v963
      %v996 = vpack.c.b16 %v981, %v980
      %v997 = vpack.c.b16 %v983, %v982
      %v998 = vpack.c.b16 %v985, %v984
      %v999 = vpack.c.b16 %v987, %v986
      %v1000 = vpack.c.b16 %v989, %v988
      %v1001 = vpack.c.b16 %v991, %v990
      %v1002 = vpack.c.b16 %v993, %v992
      %v1003 = vpack.c.b16 %v995, %v994
      %1012 = vmatprep.subr.bf16.mxu0 0
      %1013 = vmatpush1.bf16.msra.mxu0 %v1003
      %1014 = vmatprep.subr.bf16.mxu0 0
      %1015 = vmatpush1.bf16.msra.mxu0 %v1002
      %1016 = vmatprep.subr.bf16.mxu0 0
      %1017 = vmatpush1.bf16.msra.mxu0 %v1001
      %1018 = vmatprep.subr.bf16.mxu0 0
      %1019 = vmatpush1.bf16.msra.mxu0 %v1000
      %1020 = vmatprep.subr.bf16.mxu0 0
      %1021 = vmatpush1.bf16.msra.mxu0 %v999
      %1022 = vmatprep.subr.bf16.mxu0 0
      %1023 = vmatpush1.bf16.msra.mxu0 %v998
      %1024 = vmatprep.subr.bf16.mxu0 0
      %1025 = vmatpush1.bf16.msra.mxu0 %v997
      %1026 = vmatprep.subr.bf16.mxu0 0
      %1027 = vmatpush1.bf16.msra.mxu0 %v996
      %1028 = vmatprep.subr.bf16.mxu0 0
      %1029 = vmatpush2.bf16.msra.mxu0 0
      %1030 = vmatprep.subr.bf16.mxu0 0
      %1031 = vmatpush2.bf16.msra.mxu0 0
      %1032 = vmatprep.subr.bf16.mxu0 0
      %1033 = vmatpush2.bf16.msra.mxu0 0
      %1034 = vmatprep.subr.bf16.mxu0 0
      %1035 = vmatpush2.bf16.msra.mxu0 0
      %1036 = vmatprep.subr.bf16.mxu0 0
      %1037 = vmatpush2.bf16.msra.mxu0 0
      %1038 = vmatprep.subr.bf16.mxu0 0
      %1039 = vmatpush2.bf16.msra.mxu0 0
      %1040 = vmatprep.subr.bf16.mxu0 0
      %1041 = vmatpush2.bf16.msra.mxu0 0
      %1042 = vmatprep.subr.bf16.mxu0 0
      %1043 = vmatpush2.bf16.msra.mxu0 0
      %1044 = vmatprep.mubr.bf16.mxu0 0
      %1045 = vmatmul.mubr.bf16.gmra.mxu0 %v945
      %v1046 = vpop.f32.mrf.mxu0
      %v1047 = vadd.f32 0.0, %v1046
      %v1048 = vpop.f32.mrf.mxu0
      %v1049 = vpop.f32.mrf.mxu0
      %v1050 = vadd.f32 0.0, %v1049
      %v1051 = vpop.f32.mrf.mxu0
      %1052 = vmatprep.mubr.bf16.mxu0 0
      %1053 = vmatmul.mubr.bf16.gmra.mxu0 %v946
      %v1054 = vpop.f32.mrf.mxu0
      %v1055 = vadd.f32 0.0, %v1054
      %v1056 = vpop.f32.mrf.mxu0
      %v1057 = vpop.f32.mrf.mxu0
      %v1058 = vadd.f32 0.0, %v1057
      %v1059 = vpop.f32.mrf.mxu0
      %1060 = vdwg.mxu0
      %v1061 = vadd.f32 %v936, %v1047
      %v1062 = vadd.f32 %v937, %v1050
      %v1063 = vadd.f32 %v938, %v1055
      %v1064 = vadd.f32 %v939, %v1058
      %v1065 = vld [vmem:[%s940 + $0x1] sm:$0xff]
      %v1066 = vld [vmem:[%s940 + $0x11] sm:$0xff]
      %v1067 = vld [vmem:[%s940 + $0x21] sm:$0xff]
      %v1068 = vld [vmem:[%s940 + $0x31] sm:$0xff]
      %v1069 = vpack.c.bf16 %v1066, %v1065
      %v1070 = vpack.c.bf16 %v1068, %v1067
      %s1071 = scalar_lea.vmem %s1, 448
      %v1072 = vld [vmem:[%s1071] sm:$0xf]
      %v1073 = vld [vmem:[%s1071 + $0x4] sm:$0xf]
      %v1074 = vld [vmem:[%s1071 + $0x8] sm:$0xf]
      %v1075 = vld [vmem:[%s1071 + $0xc] sm:$0xf]
      %v1076 = vld [vmem:[%s1071 + $0x10] sm:$0xf]
      %v1077 = vld [vmem:[%s1071 + $0x14] sm:$0xf]
      %v1078 = vld [vmem:[%s1071 + $0x18] sm:$0xf]
      %v1079 = vld [vmem:[%s1071 + $0x1c] sm:$0xf]
      %v1080 = vld [vmem:[%s1071 + $0x20] sm:$0xf]
      %v1081 = vld [vmem:[%s1071 + $0x24] sm:$0xf]
      %v1082 = vld [vmem:[%s1071 + $0x28] sm:$0xf]
      %v1083 = vld [vmem:[%s1071 + $0x2c] sm:$0xf]
      %v1084 = vld [vmem:[%s1071 + $0x30] sm:$0xf]
      %v1085 = vld [vmem:[%s1071 + $0x34] sm:$0xf]
      %v1086 = vld [vmem:[%s1071 + $0x38] sm:$0xf]
      %v1087 = vld [vmem:[%s1071 + $0x3c] sm:$0xf]
      %v1104 = vunpack.c.l.b16 %v1072
      %v1105 = vunpack.c.l.b16 %v1073
      %v1106 = vunpack.c.l.b16 %v1074
      %v1107 = vunpack.c.l.b16 %v1075
      %v1108 = vunpack.c.l.b16 %v1076
      %v1109 = vunpack.c.l.b16 %v1077
      %v1110 = vunpack.c.l.b16 %v1078
      %v1111 = vunpack.c.l.b16 %v1079
      %v1112 = vunpack.c.l.b16 %v1080
      %v1113 = vunpack.c.l.b16 %v1081
      %v1114 = vunpack.c.l.b16 %v1082
      %v1115 = vunpack.c.l.b16 %v1083
      %v1116 = vunpack.c.l.b16 %v1084
      %v1117 = vunpack.c.l.b16 %v1085
      %v1118 = vunpack.c.l.b16 %v1086
      %v1119 = vunpack.c.l.b16 %v1087
      %v1120 = vpack.c.b16 %v1105, %v1104
      %v1121 = vpack.c.b16 %v1107, %v1106
      %v1122 = vpack.c.b16 %v1109, %v1108
      %v1123 = vpack.c.b16 %v1111, %v1110
      %v1124 = vpack.c.b16 %v1113, %v1112
      %v1125 = vpack.c.b16 %v1115, %v1114
      %v1126 = vpack.c.b16 %v1117, %v1116
      %v1127 = vpack.c.b16 %v1119, %v1118
      %1136 = vmatprep.subr.bf16.mxu0 0
      %1137 = vmatpush1.bf16.msra.mxu0 %v1127
      %1138 = vmatprep.subr.bf16.mxu0 0
      %1139 = vmatpush1.bf16.msra.mxu0 %v1126
      %1140 = vmatprep.subr.bf16.mxu0 0
      %1141 = vmatpush1.bf16.msra.mxu0 %v1125
      %1142 = vmatprep.subr.bf16.mxu0 0
      %1143 = vmatpush1.bf16.msra.mxu0 %v1124
      %1144 = vmatprep.subr.bf16.mxu0 0
      %1145 = vmatpush1.bf16.msra.mxu0 %v1123
      %1146 = vmatprep.subr.bf16.mxu0 0
      %1147 = vmatpush1.bf16.msra.mxu0 %v1122
      %1148 = vmatprep.subr.bf16.mxu0 0
      %1149 = vmatpush1.bf16.msra.mxu0 %v1121
      %1150 = vmatprep.subr.bf16.mxu0 0
      %1151 = vmatpush1.bf16.msra.mxu0 %v1120
      %1152 = vmatprep.subr.bf16.mxu0 0
      %1153 = vmatpush2.bf16.msra.mxu0 0
      %1154 = vmatprep.subr.bf16.mxu0 0
      %1155 = vmatpush2.bf16.msra.mxu0 0
      %1156 = vmatprep.subr.bf16.mxu0 0
      %1157 = vmatpush2.bf16.msra.mxu0 0
      %1158 = vmatprep.subr.bf16.mxu0 0
      %1159 = vmatpush2.bf16.msra.mxu0 0
      %1160 = vmatprep.subr.bf16.mxu0 0
      %1161 = vmatpush2.bf16.msra.mxu0 0
      %1162 = vmatprep.subr.bf16.mxu0 0
      %1163 = vmatpush2.bf16.msra.mxu0 0
      %1164 = vmatprep.subr.bf16.mxu0 0
      %1165 = vmatpush2.bf16.msra.mxu0 0
      %1166 = vmatprep.subr.bf16.mxu0 0
      %1167 = vmatpush2.bf16.msra.mxu0 0
      %1168 = vmatprep.mubr.bf16.mxu0 0
      %1169 = vmatmul.mubr.bf16.gmra.mxu0 %v1069
      %v1170 = vpop.f32.mrf.mxu0
      %v1171 = vadd.f32 0.0, %v1170
      %v1172 = vpop.f32.mrf.mxu0
      %v1173 = vpop.f32.mrf.mxu0
      %v1174 = vadd.f32 0.0, %v1173
      %v1175 = vpop.f32.mrf.mxu0
      %1176 = vmatprep.mubr.bf16.mxu0 0
      %1177 = vmatmul.mubr.bf16.gmra.mxu0 %v1070
      %v1178 = vpop.f32.mrf.mxu0
      %v1179 = vadd.f32 0.0, %v1178
      %v1180 = vpop.f32.mrf.mxu0
      %v1181 = vpop.f32.mrf.mxu0
      %v1182 = vadd.f32 0.0, %v1181
      %v1183 = vpop.f32.mrf.mxu0
      %1184 = vdwg.mxu0
      %v1185 = vadd.f32 %v1061, %v1171
      %v1186 = vadd.f32 %v1062, %v1174
      %v1187 = vadd.f32 %v1063, %v1179
      %v1188 = vadd.f32 %v1064, %v1182
      %v1189 = vld [vmem:[%s940 + $0x2] sm:$0xff]
      %v1190 = vld [vmem:[%s940 + $0x12] sm:$0xff]
      %v1191 = vld [vmem:[%s940 + $0x22] sm:$0xff]
      %v1192 = vld [vmem:[%s940 + $0x32] sm:$0xff]
      %v1193 = vpack.c.bf16 %v1190, %v1189
      %v1194 = vpack.c.bf16 %v1192, %v1191
      %s1195 = scalar_lea.vmem %s1, 512
      %v1196 = vld [vmem:[%s1195] sm:$0xf]
      %v1197 = vld [vmem:[%s1195 + $0x4] sm:$0xf]
      %v1198 = vld [vmem:[%s1195 + $0x8] sm:$0xf]
      %v1199 = vld [vmem:[%s1195 + $0xc] sm:$0xf]
      %v1200 = vld [vmem:[%s1195 + $0x10] sm:$0xf]
      %v1201 = vld [vmem:[%s1195 + $0x14] sm:$0xf]
      %v1202 = vld [vmem:[%s1195 + $0x18] sm:$0xf]
      %v1203 = vld [vmem:[%s1195 + $0x1c] sm:$0xf]
      %v1204 = vld [vmem:[%s1195 + $0x20] sm:$0xf]
      %v1205 = vld [vmem:[%s1195 + $0x24] sm:$0xf]
      %v1206 = vld [vmem:[%s1195 + $0x28] sm:$0xf]
      %v1207 = vld [vmem:[%s1195 + $0x2c] sm:$0xf]
      %v1208 = vld [vmem:[%s1195 + $0x30] sm:$0xf]
      %v1209 = vld [vmem:[%s1195 + $0x34] sm:$0xf]
      %v1210 = vld [vmem:[%s1195 + $0x38] sm:$0xf]
      %v1211 = vld [vmem:[%s1195 + $0x3c] sm:$0xf]
      %v1228 = vunpack.c.l.b16 %v1196
      %v1229 = vunpack.c.l.b16 %v1197
      %v1230 = vunpack.c.l.b16 %v1198
      %v1231 = vunpack.c.l.b16 %v1199
      %v1232 = vunpack.c.l.b16 %v1200
      %v1233 = vunpack.c.l.b16 %v1201
      %v1234 = vunpack.c.l.b16 %v1202
      %v1235 = vunpack.c.l.b16 %v1203
      %v1236 = vunpack.c.l.b16 %v1204
      %v1237 = vunpack.c.l.b16 %v1205
      %v1238 = vunpack.c.l.b16 %v1206
      %v1239 = vunpack.c.l.b16 %v1207
      %v1240 = vunpack.c.l.b16 %v1208
      %v1241 = vunpack.c.l.b16 %v1209
      %v1242 = vunpack.c.l.b16 %v1210
      %v1243 = vunpack.c.l.b16 %v1211
      %v1244 = vpack.c.b16 %v1229, %v1228
      %v1245 = vpack.c.b16 %v1231, %v1230
      %v1246 = vpack.c.b16 %v1233, %v1232
      %v1247 = vpack.c.b16 %v1235, %v1234
      %v1248 = vpack.c.b16 %v1237, %v1236
      %v1249 = vpack.c.b16 %v1239, %v1238
      %v1250 = vpack.c.b16 %v1241, %v1240
      %v1251 = vpack.c.b16 %v1243, %v1242
      %1260 = vmatprep.subr.bf16.mxu0 0
      %1261 = vmatpush1.bf16.msra.mxu0 %v1251
      %1262 = vmatprep.subr.bf16.mxu0 0
      %1263 = vmatpush1.bf16.msra.mxu0 %v1250
      %1264 = vmatprep.subr.bf16.mxu0 0
      %1265 = vmatpush1.bf16.msra.mxu0 %v1249
      %1266 = vmatprep.subr.bf16.mxu0 0
      %1267 = vmatpush1.bf16.msra.mxu0 %v1248
      %1268 = vmatprep.subr.bf16.mxu0 0
      %1269 = vmatpush1.bf16.msra.mxu0 %v1247
      %1270 = vmatprep.subr.bf16.mxu0 0
      %1271 = vmatpush1.bf16.msra.mxu0 %v1246
      %1272 = vmatprep.subr.bf16.mxu0 0
      %1273 = vmatpush1.bf16.msra.mxu0 %v1245
      %1274 = vmatprep.subr.bf16.mxu0 0
      %1275 = vmatpush1.bf16.msra.mxu0 %v1244
      %1276 = vmatprep.subr.bf16.mxu0 0
      %1277 = vmatpush2.bf16.msra.mxu0 0
      %1278 = vmatprep.subr.bf16.mxu0 0
      %1279 = vmatpush2.bf16.msra.mxu0 0
      %1280 = vmatprep.subr.bf16.mxu0 0
      %1281 = vmatpush2.bf16.msra.mxu0 0
      %1282 = vmatprep.subr.bf16.mxu0 0
      %1283 = vmatpush2.bf16.msra.mxu0 0
      %1284 = vmatprep.subr.bf16.mxu0 0
      %1285 = vmatpush2.bf16.msra.mxu0 0
      %1286 = vmatprep.subr.bf16.mxu0 0
      %1287 = vmatpush2.bf16.msra.mxu0 0
      %1288 = vmatprep.subr.bf16.mxu0 0
      %1289 = vmatpush2.bf16.msra.mxu0 0
      %1290 = vmatprep.subr.bf16.mxu0 0
      %1291 = vmatpush2.bf16.msra.mxu0 0
      %1292 = vmatprep.mubr.bf16.mxu0 0
      %1293 = vmatmul.mubr.bf16.gmra.mxu0 %v1193
      %v1294 = vpop.f32.mrf.mxu0
      %v1295 = vadd.f32 0.0, %v1294
      %v1296 = vpop.f32.mrf.mxu0
      %v1297 = vpop.f32.mrf.mxu0
      %v1298 = vadd.f32 0.0, %v1297
      %v1299 = vpop.f32.mrf.mxu0
      %1300 = vmatprep.mubr.bf16.mxu0 0
      %1301 = vmatmul.mubr.bf16.gmra.mxu0 %v1194
      %v1302 = vpop.f32.mrf.mxu0
      %v1303 = vadd.f32 0.0, %v1302
      %v1304 = vpop.f32.mrf.mxu0
      %v1305 = vpop.f32.mrf.mxu0
      %v1306 = vadd.f32 0.0, %v1305
      %v1307 = vpop.f32.mrf.mxu0
      %1308 = vdwg.mxu0
      %v1309 = vadd.f32 %v1185, %v1295
      %v1310 = vadd.f32 %v1186, %v1298
      %v1311 = vadd.f32 %v1187, %v1303
      %v1312 = vadd.f32 %v1188, %v1306
      %1313 = vst [vmem:[%s177] sm:$0xff] %v1309
      %1314 = vst [vmem:[%s177 + $0x8] sm:$0xff] %v1310
      %1315 = vst [vmem:[%s177 + $0x10] sm:$0xff] %v1311
      %1316 = vst [vmem:[%s177 + $0x18] sm:$0xff] %v1312
      %v1317 = vadd.f32 %v1309, %v1310
      %v1318 = vadd.f32 %v1317, %v1311
      %v1319 = vadd.f32 %v1318, %v1312
      %v1320 = vrot.slane %v1319, 4
      %v1321 = vadd.f32 %v1319, %v1320
      %v1322 = vrot.slane %v1321, 2
      %v1323 = vadd.f32 %v1321, %v1322
      %v1324 = vrot.slane %v1323, 1
      %v1325 = vadd.f32 %v1323, %v1324
      %v1326 = vmul.f32 %v1309, %v1309
      %v1327 = vmul.f32 %v1310, %v1310
      %v1328 = vmul.f32 %v1311, %v1311
      %v1329 = vmul.f32 %v1312, %v1312
      %v1330 = vadd.f32 %v1326, %v1327
      %v1331 = vadd.f32 %v1330, %v1328
      %v1332 = vadd.f32 %v1331, %v1329
      %v1333 = vrot.slane %v1332, 4
      %v1334 = vadd.f32 %v1332, %v1333
      %v1335 = vrot.slane %v1334, 2
      %v1336 = vadd.f32 %v1334, %v1335
      %v1337 = vrot.slane %v1336, 1
      %v1338 = vadd.f32 %v1336, %v1337
      %vm1339 = vcmask 1040384
      %v1340 = vsel %vm1339, %v1325, %v1338
      %vm1341 = vcmask 1041408
      %v1342 = vsel %vm1341, %v1340, 0.0
      %1343 = vst [vmem:[%s181] sm:$0xff] %v1342
      %p1344 = scmp.lt.s32.totalorder %s15, 1
      %s1345 = scalar_select %p1344, %s15, 1
      %s1346 = smul.addr %s1345, 4
      %s1347 = smul.addr %s1346, 8
      %s1348 = scalar_lea.vmem %s2, %s1347
      %p1349 = scmp.lt.s32.totalorder %s15, 1
      %s1350 = scalar_select %p1349, %s15, 1
      %s1351 = smul.addr %s1350, 8
      %s1352 = scalar_lea.vmem %s3, %s1351
      // Predicated region
      $region29: #{conv_block_3d.3} parent=27 // pred_check
        %p1353 = pneg %p80
      $region30: #{conv_block_3d.3} parent=27 // pred_check_branch
        %1355 = sbr.rel (%p1353) target = $region32
      $region31: #{conv_block_3d.3} parent=27 // pred_region
        _
      $region32: #{conv_block_3d.3} parent=27 // pred_fallthru
        _
      // Predicated region
      $region33: #{conv_block_3d.3} parent=27 // pred_check
        %p1356 = pneg %p106
      $region34: #{conv_block_3d.3} parent=27 // pred_check_branch
        %1358 = sbr.rel (%p1356) target = $region36
      $region35: #{conv_block_3d.3} parent=27 // pred_region
        _
      $region36: #{conv_block_3d.3} parent=27 // pred_fallthru
        _
    $region28: #{conv_block_3d.3} parent=5 // pred_fallthru
      _
    %p1359 = scmp.le.s32.totalorder 2, %s10
    // Predicated region
    $region37: #{conv_block_3d.3} parent=5 // pred_check
      %p1360 = pneg %p1359
    $region38: #{conv_block_3d.3} parent=5 // pred_check_branch
      %1362 = sbr.rel (%p1360) target = $region40
    $region39: #{conv_block_3d.3} parent=5 // pred_region
      %s1363 = ssub.s32 %s10, 2
      // Predicated region
      $region41: #{conv_block_3d.3} parent=39 // pred_check
        %p1364 = pneg %p86
      $region42: #{conv_block_3d.3} parent=39 // pred_check_branch
        %1366 = sbr.rel (%p1364) target = $region44
      $region43: #{conv_block_3d.3} parent=39 // pred_region
        %p1367 = scmp.lt.s32.totalorder %s16, 1
        %s1368 = scalar_select %p1367, %s16, 1
        %s1369 = smul.addr %s1368, 4
        %s1370 = smul.addr %s1369, 8
        %s1371 = scalar_lea.vmem %s2, %s1370
      $region44: #{conv_block_3d.3} parent=39 // pred_fallthru
        _
      // Predicated region
      $region45: #{conv_block_3d.3} parent=39 // pred_check
        %p1372 = pneg %p112
      $region46: #{conv_block_3d.3} parent=39 // pred_check_branch
        %1374 = sbr.rel (%p1372) target = $region48
      $region47: #{conv_block_3d.3} parent=39 // pred_region
        %p1375 = scmp.lt.s32.totalorder %s16, 1
        %s1376 = scalar_select %p1375, %s16, 1
        %s1377 = smul.addr %s1376, 8
        %s1378 = scalar_lea.vmem %s3, %s1377
      $region48: #{conv_block_3d.3} parent=39 // pred_fallthru
        _
    $region40: #{conv_block_3d.3} parent=5 // pred_fallthru
      _
  $region6: #{conv_block_3d.3} parent=0 // loop_footer
    %s14 = sadd.s32 1, %s10
  $region7: #{conv_block_3d.3} parent=0 // loop_footer_branch
    %9 = sbr.rel target = $region3
  $region8: #{conv_block_3d.3} parent=0 // loop_exit
    _

// kernel: tile.23
$region0: #{tile.23}
  #allocation0 [shape = 's32[1]{0}', space=sflag, size = 0x4, scoped, tag = 'scoped memory for tile.23']
  %s0 = inlined_call_operand.vmem [shape: f32[16], index: 0, kind: input, shape index: {}]
  %s1 = inlined_call_operand.vmem [shape: f32[8,16], index: 1, kind: output, shape index: {}]
  // Predicated region
  $region2: #{tile.23} parent=0 // pred_check
    _
  $region3: #{tile.23} parent=0 // pred_check_branch
    %3 = sbr.rel (0) target = $region5
  $region4: #{tile.23} parent=0 // pred_region
    _
  $region5: #{tile.23} parent=0 // pred_fallthru
    _
  %v4 = vld [vmem:[%s0] ss:$0 sm:$0xff]
  %5 = vst [vmem:[%s1] sm:$0xff] %v4

// kernel: tile.24
$region0: #{tile.24}
  %s0 = inlined_call_operand.vmem [shape: f32[8,16], index: 0, kind: input, shape index: {}]
  %s1 = inlined_call_operand.vmem [shape: f32[1,128], index: 1, kind: output, shape index: {}]
  $region1: #{tile.24} parent=0
    #allocation0 [shape = 'u8[4096]{0}', space=vmem, size = 0x1000, scoped, tag = 'scoped mem for output reshape']
    %v2 = vld [vmem:[%s0] sm:$0x1]
    %vm3 = vcmask 130048
    %4 = vst.msk [vmem:[#allocation0] sm:$0x1] %vm3, %v2
    %s5 = scalar_lea.vmem %s0, 7
    %v6 = vld [vmem:[%s5] sm:$0x1]
    %7 = vrot.lane.b32.xlu0 %v6, 112
    %v8 = vpop.permute.xlu0 %7
    %vm9 = vcmask 1048448
    %10 = vst.msk [vmem:[#allocation0] sm:$0x1] %vm9, %v8
    %s11 = scalar_lea.vmem %s0, 6
    %v12 = vld [vmem:[%s11] sm:$0x1]
    %13 = vrot.lane.b32.xlu0 %v12, 96
    %v14 = vpop.permute.xlu0 %13
    %vm15 = vcmask 917248
    %16 = vst.msk [vmem:[#allocation0] sm:$0x1] %vm15, %v14
    %s17 = scalar_lea.vmem %s0, 5
    %v18 = vld [vmem:[%s17] sm:$0x1]
    %19 = vrot.lane.b32.xlu0 %v18, 80
    %v20 = vpop.permute.xlu0 %19
    %vm21 = vcmask 786048
    %22 = vst.msk [vmem:[#allocation0] sm:$0x1] %vm21, %v20
    %s23 = scalar_lea.vmem %s0, 4
    %v24 = vld [vmem:[%s23] sm:$0x1]
    %25 = vrot.lane.b32.xlu0 %v24, 64
    %v26 = vpop.permute.xlu0 %25
    %vm27 = vcmask 654848
    %28 = vst.msk [vmem:[#allocation0] sm:$0x1] %vm27, %v26
    %s29 = scalar_lea.vmem %s0, 3
    %v30 = vld [vmem:[%s29] sm:$0x1]
    %31 = vrot.lane.b32.xlu0 %v30, 48
    %v32 = vpop.permute.xlu0 %31
    %vm33 = vcmask 523648
    %34 = vst.msk [vmem:[#allocation0] sm:$0x1] %vm33, %v32
    %s35 = scalar_lea.vmem %s0, 2
    %v36 = vld [vmem:[%s35] sm:$0x1]
    %37 = vrot.lane.b32.xlu0 %v36, 32
    %v38 = vpop.permute.xlu0 %37
    %vm39 = vcmask 392448
    %40 = vst.msk [vmem:[#allocation0] sm:$0x1] %vm39, %v38
    %s41 = scalar_lea.vmem %s0, 1
    %v42 = vld [vmem:[%s41] sm:$0x1]
    %43 = vrot.lane.b32.xlu0 %v42, 16
    %v44 = vpop.permute.xlu0 %43
    %vm45 = vcmask 261248
    %46 = vst.msk [vmem:[#allocation0] sm:$0x1] %vm45, %v44
    %s48 = sshll.u32 1, 1
    %s49 = ssub.s32 %s48, 1
    %v51 = vld [vmem:[#allocation0] sm:%s49]
    %s52 = sshll.u32 1, 1
    %s53 = ssub.s32 %s52, 1
    %54 = vst [vmem:[%s1] sm:%s53] %v51

// kernel: conv_block_3d.5
$region0: #{conv_block_3d.5}
  #allocation0 [shape = 'u32[]', space=smem, size = 0x4, offset = 0x4, fixed_abs, tag = 'smem constant byte address 0x4 - core index']
  #allocation1 [shape = 'u32[144,128]{1,0:T(1,128)}', space=vmem, size = 0x12000, scoped, tag = 'internal scratch']
  %s0 = inlined_call_operand.vmem [shape: f32[2,4,8,128], index: 0, kind: input, shape index: {}]
  %s1 = inlined_call_operand.vmem [shape: f32[2,4,8,128], index: 1, kind: input, shape index: {}]
  %s2 = inlined_call_operand.vmem [shape: f32[1,128], index: 2, kind: input, shape index: {}]
  %s3 = inlined_call_operand.vmem [shape: f32[1,128], index: 3, kind: input, shape index: {}]
  %s4 = inlined_call_operand.vmem [shape: f32[2,4,8,128], index: 4, kind: output, shape index: {}]
  %s5 = sld [smem:[#allocation0]]
  $region49: #{conv_block_3d.5} parent=0
    _
  %s7 = ssub.s32 1, %s5
  %s8 = scalar_select 0, %s7, %s5
  loop: start=0, step=1, limit=4
  $region2: #{conv_block_3d.5} parent=0 // loop_pre_header
    _
  $region3: #{conv_block_3d.5} parent=0 // loop_header
    %s10 = sphi 0, %s14
    %p11 = scmp.ge.s32.totalorder %s10, 4
    %s20 = sphi 0, %s22
    %s23 = sphi 0, %s20
    %s24 = sphi 0, %s23
    %s40 = sphi 0, %s24
    %s46 = sphi 0, %s48
    %s49 = sphi 0, %s46
    %s50 = sphi 0, %s49
    %s66 = sphi 0, %s50
    %s70 = sphi 0, %s70
    %s72 = sphi 0, %s70
    %s73 = sphi 0, %s72
    %s87 = sphi 0, %s73
    %s91 = sphi 0, %s91
    %s93 = sphi 0, %s91
    %s94 = sphi 0, %s93
    %s108 = sphi 0, %s94
    %s114 = sphi 0, %s116
    %s117 = sphi 0, %s114
    %s118 = sphi 0, %s117
    %s134 = sphi 0, %s118
  $region4: #{conv_block_3d.5} parent=0 // loop_header_branch
    %13 = sbr.rel (%p11) target = $region8
  $region5: #{conv_block_3d.5} parent=0 // loop_body
    %s15 = ssub.s32 %s10, 1
    %s16 = ssub.s32 %s10, 2
    %s17 = sadd.s32 %s10, 1
    %s18 = ssub.s32 %s10, %s17
    %p19 = scmp.eq.s32.totalorder %s18, 0
    %s21 = sadd.s32 %s20, 1
    %s22 = scalar_select %p19, %s20, %s21
    %p25 = pneg %p19
    %p26 = scmp.eq.s32.totalorder %s10, 1
    %p27 = por %p25, %p26
    %p28 = scmp.ne.s32.totalorder %s20, %s23
    %p29 = scmp.eq.s32.totalorder %s10, 0
    %p30 = por %p28, %p29
    %p31 = scmp.ne.s32.totalorder %s20, %s23
    %p32 = scmp.eq.s32.totalorder %s15, 1
    %p33 = por %p31, %p32
    %p34 = scmp.ne.s32.totalorder %s23, %s24
    %p35 = scmp.eq.s32.totalorder %s15, 0
    %p36 = por %p34, %p35
    %p37 = scmp.ne.s32.totalorder %s23, %s24
    %p38 = scmp.eq.s32.totalorder %s16, 1
    %p39 = por %p37, %p38
    %p41 = scmp.ne.s32.totalorder %s24, %s40
    %p42 = scmp.eq.s32.totalorder %s16, 0
    %p43 = por %p41, %p42
    %s44 = ssub.s32 %s10, %s17
    %p45 = scmp.eq.s32.totalorder %s44, 0
    %s47 = sadd.s32 %s46, 1
    %s48 = scalar_select %p45, %s46, %s47
    %p51 = pneg %p45
    %p52 = scmp.eq.s32.totalorder %s10, 1
    %p53 = por %p51, %p52
    %p54 = scmp.ne.s32.totalorder %s46, %s49
    %p55 = scmp.eq.s32.totalorder %s10, 0
    %p56 = por %p54, %p55
    %p57 = scmp.ne.s32.totalorder %s46, %s49
    %p58 = scmp.eq.s32.totalorder %s15, 1
    %p59 = por %p57, %p58
    %p60 = scmp.ne.s32.totalorder %s49, %s50
    %p61 = scmp.eq.s32.totalorder %s15, 0
    %p62 = por %p60, %p61
    %p63 = scmp.ne.s32.totalorder %s49, %s50
    %p64 = scmp.eq.s32.totalorder %s16, 1
    %p65 = por %p63, %p64
    %p67 = scmp.ne.s32.totalorder %s50, %s66
    %p68 = scmp.eq.s32.totalorder %s16, 0
    %p69 = por %p67, %p68
    %s71 = sadd.s32 %s70, 1
    %p74 = scmp.eq.s32.totalorder %s10, 1
    %p75 = scmp.ne.s32.totalorder %s70, %s72
    %p76 = scmp.eq.s32.totalorder %s10, 0
    %p77 = por %p75, %p76
    %p78 = scmp.ne.s32.totalorder %s70, %s72
    %p79 = scmp.eq.s32.totalorder %s15, 1
    %p80 = por %p78, %p79
    %p81 = scmp.ne.s32.totalorder %s72, %s73
    %p82 = scmp.eq.s32.totalorder %s15, 0
    %p83 = por %p81, %p82
    %p84 = scmp.ne.s32.totalorder %s72, %s73
    %p85 = scmp.eq.s32.totalorder %s16, 1
    %p86 = por %p84, %p85
    %p88 = scmp.ne.s32.totalorder %s73, %s87
    %p89 = scmp.eq.s32.totalorder %s16, 0
    %p90 = por %p88, %p89
    %s92 = sadd.s32 %s91, 1
    %p95 = scmp.eq.s32.totalorder %s10, 1
    %p96 = scmp.ne.s32.totalorder %s91, %s93
    %p97 = scmp.eq.s32.totalorder %s10, 0
    %p98 = por %p96, %p97
    %p99 = scmp.ne.s32.totalorder %s91, %s93
    %p100 = scmp.eq.s32.totalorder %s15, 1
    %p101 = por %p99, %p100
    %p102 = scmp.ne.s32.totalorder %s93, %s94
    %p103 = scmp.eq.s32.totalorder %s15, 0
    %p104 = por %p102, %p103
    %p105 = scmp.ne.s32.totalorder %s93, %s94
    %p106 = scmp.eq.s32.totalorder %s16, 1
    %p107 = por %p105, %p106
    %p109 = scmp.ne.s32.totalorder %s94, %s108
    %p110 = scmp.eq.s32.totalorder %s16, 0
    %p111 = por %p109, %p110
    %s112 = ssub.s32 %s10, %s17
    %p113 = scmp.eq.s32.totalorder %s112, 0
    %s115 = sadd.s32 %s114, 1
    %s116 = scalar_select %p113, %s114, %s115
    %p119 = pneg %p113
    %p120 = scmp.eq.s32.totalorder %s10, 1
    %p121 = por %p119, %p120
    %p122 = scmp.ne.s32.totalorder %s114, %s117
    %p123 = scmp.eq.s32.totalorder %s10, 0
    %p124 = por %p122, %p123
    %p125 = scmp.ne.s32.totalorder %s114, %s117
    %p126 = scmp.eq.s32.totalorder %s15, 1
    %p127 = por %p125, %p126
    %p128 = scmp.ne.s32.totalorder %s117, %s118
    %p129 = scmp.eq.s32.totalorder %s15, 0
    %p130 = por %p128, %p129
    %p131 = scmp.ne.s32.totalorder %s117, %s118
    %p132 = scmp.eq.s32.totalorder %s16, 1
    %p133 = por %p131, %p132
    %p135 = scmp.ne.s32.totalorder %s118, %s134
    %p136 = scmp.eq.s32.totalorder %s16, 0
    %p137 = por %p135, %p136
    %p138 = scmp.le.s32.totalorder 1, %s10
    %p139 = scmp.lt.s32.totalorder %s10, 3
    %p140 = pnand %p138, %p139
    %p141 = pneg %p140
    // Predicated region
    $region9: #{conv_block_3d.5} parent=5 // pred_check
      _
    $region10: #{conv_block_3d.5} parent=5 // pred_check_branch
      %143 = sbr.rel (%p140) target = $region12
    $region11: #{conv_block_3d.5} parent=5 // pred_region
      %s144 = ssub.s32 %s10, 1
      // Predicated region
      $region13: #{conv_block_3d.5} parent=11 // pred_check
        %p145 = pneg %p83
      $region14: #{conv_block_3d.5} parent=11 // pred_check_branch
        %147 = sbr.rel (%p145) target = $region16
      $region15: #{conv_block_3d.5} parent=11 // pred_region
        _
      $region16: #{conv_block_3d.5} parent=11 // pred_fallthru
        _
      // Predicated region
      $region17: #{conv_block_3d.5} parent=11 // pred_check
        %p148 = pneg %p104
      $region18: #{conv_block_3d.5} parent=11 // pred_check_branch
        %150 = sbr.rel (%p148) target = $region20
      $region19: #{conv_block_3d.5} parent=11 // pred_region
        _
      $region20: #{conv_block_3d.5} parent=11 // pred_fallthru
        _
    $region12: #{conv_block_3d.5} parent=5 // pred_fallthru
      _
    %p151 = scmp.lt.s32.totalorder %s10, 2
    // Predicated region
    $region21: #{conv_block_3d.5} parent=5 // pred_check
      %p152 = pneg %p151
    $region22: #{conv_block_3d.5} parent=5 // pred_check_branch
      %154 = sbr.rel (%p152) target = $region24
    $region23: #{conv_block_3d.5} parent=5 // pred_region
      // Predicated region
      $region25: #{conv_block_3d.5} parent=23 // pred_check
        %p155 = pneg %p30
      $region26: #{conv_block_3d.5} parent=23 // pred_check_branch
        %157 = sbr.rel (%p155) target = $region28
      $region27: #{conv_block_3d.5} parent=23 // pred_region
        %p158 = scmp.lt.s32.totalorder %s10, 1
        %s159 = scalar_select %p158, %s10, 1
        %s160 = smul.addr %s159, 4
        %s161 = smul.addr %s160, 8
        %s162 = scalar_lea.vmem %s0, %s161
      $region28: #{conv_block_3d.5} parent=23 // pred_fallthru
        _
      // Predicated region
      $region29: #{conv_block_3d.5} parent=23 // pred_check
        %p163 = pneg %p56
      $region30: #{conv_block_3d.5} parent=23 // pred_check_branch
        %165 = sbr.rel (%p163) target = $region32
      $region31: #{conv_block_3d.5} parent=23 // pred_region
        %p166 = scmp.lt.s32.totalorder %s10, 1
        %s167 = scalar_select %p166, %s10, 1
        %s168 = smul.addr %s167, 4
        %s169 = smul.addr %s168, 8
        %s170 = scalar_lea.vmem %s1, %s169
      $region32: #{conv_block_3d.5} parent=23 // pred_fallthru
        _
    $region24: #{conv_block_3d.5} parent=5 // pred_fallthru
      _
    %p171 = scmp.le.s32.totalorder 1, %s10
    %p172 = scmp.lt.s32.totalorder %s10, 3
    %p173 = pnand %p171, %p172
    %p174 = pneg %p173
    // Predicated region
    $region33: #{conv_block_3d.5} parent=5 // pred_check
      _
    $region34: #{conv_block_3d.5} parent=5 // pred_check_branch
      %176 = sbr.rel (%p173) target = $region36
    $region35: #{conv_block_3d.5} parent=5 // pred_region
      %s177 = ssub.s32 %s10, 1
      %p178 = scmp.lt.s32.totalorder %s15, 1
      %s179 = scalar_select %p178, %s15, 1
      %s180 = smul.addr %s179, 4
      %s181 = smul.addr %s180, 8
      %s182 = scalar_lea.vmem %s0, %s181
      %p183 = pneg %p36
      %p184 = pneg %p33
      %p185 = scmp.lt.s32.totalorder %s15, 1
      %s186 = scalar_select %p185, %s15, 1
      %s187 = smul.addr %s186, 4
      %s188 = smul.addr %s187, 8
      %s189 = scalar_lea.vmem %s1, %s188
      %p190 = pneg %p62
      %p191 = pneg %p59
      %p192 = pneg %p83
      %p193 = pneg %p80
      %p194 = pneg %p104
      %p195 = pneg %p101
      %p196 = pneg %p130
      %p197 = pneg %p127
      %p198 = scmp.lt.s32.totalorder %s15, 1
      %s199 = scalar_select %p198, %s15, 1
      %s200 = smul.addr %s199, 4
      %s201 = smul.addr %s200, 8
      %s202 = scalar_lea.vmem %s4, %s201
      %p203 = scmp.lt.s32.totalorder %s15, 1
      %s204 = scalar_select %p203, %s15, 1
      %s205 = smul.addr %s204, 4
      %s206 = smul.addr %s205, 8
      %s207 = scalar_lea.vmem %s0, %s206
      %p208 = scmp.lt.s32.totalorder %s15, 1
      %s209 = scalar_select %p208, %s15, 1
      %s210 = smul.addr %s209, 4
      %s211 = smul.addr %s210, 8
      %s212 = scalar_lea.vmem %s1, %s211
      %p213 = scmp.lt.s32.totalorder %s15, 1
      %s214 = scalar_select %p213, %s15, 1
      %s215 = smul.addr %s214, 4
      %s216 = smul.addr %s215, 8
      %s217 = scalar_lea.vmem %s4, %s216
      %v218 = vld [vmem:[%s2] sm:$0x1]
      %v219 = vld [vmem:[%s3] sm:$0x1]
      %v220 = vld [vmem:[%s207] sm:$0xff]
      %v221 = vld [vmem:[%s207 + $0x8] sm:$0xff]
      %v222 = vld [vmem:[%s207 + $0x10] sm:$0xff]
      %v223 = vld [vmem:[%s207 + $0x18] sm:$0xff]
      %v225 = vlaneseq
      %v226 = vshrl.u32 %v225, 7
      %v227 = vsub.s32 0, %v226
      %v228 = vrot.slane %v218, %v227
      %v230 = vmul.f32 %v220, %v228
      %v231 = vmul.f32 %v221, %v228
      %v232 = vmul.f32 %v222, %v228
      %v233 = vmul.f32 %v223, %v228
      %v235 = vlaneseq
      %v236 = vshrl.u32 %v235, 7
      %v237 = vsub.s32 0, %v236
      %v238 = vrot.slane %v219, %v237
      %v240 = vadd.f32 %v230, %v238
      %v241 = vadd.f32 %v231, %v238
      %v242 = vadd.f32 %v232, %v238
      %v243 = vadd.f32 %v233, %v238
      %v244 = vld [vmem:[%s212] sm:$0xff]
      %v245 = vld [vmem:[%s212 + $0x8] sm:$0xff]
      %v246 = vld [vmem:[%s212 + $0x10] sm:$0xff]
      %v247 = vld [vmem:[%s212 + $0x18] sm:$0xff]
      %v248 = vadd.f32 %v240, %v244
      %v249 = vadd.f32 %v241, %v245
      %v250 = vadd.f32 %v242, %v246
      %v251 = vadd.f32 %v243, %v247
      %v252 = vmax.f32 %v248, 0.0
      %v253 = vmax.f32 %v249, 0.0
      %v254 = vmax.f32 %v250, 0.0
      %v255 = vmax.f32 %v251, 0.0
      %256 = vst [vmem:[%s217] sm:$0xff] %v252
      %257 = vst [vmem:[%s217 + $0x8] sm:$0xff] %v253
      %258 = vst [vmem:[%s217 + $0x10] sm:$0xff] %v254
      %259 = vst [vmem:[%s217 + $0x18] sm:$0xff] %v255
      %p260 = scmp.lt.s32.totalorder %s15, 1
      %s261 = scalar_select %p260, %s15, 1
      %s262 = smul.addr %s261, 4
      %s263 = smul.addr %s262, 8
      %s264 = scalar_lea.vmem %s4, %s263
      // Predicated region
      $region37: #{conv_block_3d.5} parent=35 // pred_check
        %p265 = pneg %p127
      $region38: #{conv_block_3d.5} parent=35 // pred_check_branch
        %267 = sbr.rel (%p265) target = $region40
      $region39: #{conv_block_3d.5} parent=35 // pred_region
        _
      $region40: #{conv_block_3d.5} parent=35 // pred_fallthru
        _
    $region36: #{conv_block_3d.5} parent=5 // pred_fallthru
      _
    %p268 = scmp.le.s32.totalorder 2, %s10
    // Predicated region
    $region41: #{conv_block_3d.5} parent=5 // pred_check
      %p269 = pneg %p268
    $region42: #{conv_block_3d.5} parent=5 // pred_check_branch
      %271 = sbr.rel (%p269) target = $region44
    $region43: #{conv_block_3d.5} parent=5 // pred_region
      %s272 = ssub.s32 %s10, 2
      // Predicated region
      $region45: #{conv_block_3d.5} parent=43 // pred_check
        %p273 = pneg %p133
      $region46: #{conv_block_3d.5} parent=43 // pred_check_branch
        %275 = sbr.rel (%p273) target = $region48
      $region47: #{conv_block_3d.5} parent=43 // pred_region
        %p276 = scmp.lt.s32.totalorder %s16, 1
        %s277 = scalar_select %p276, %s16, 1
        %s278 = smul.addr %s277, 4
        %s279 = smul.addr %s278, 8
        %s280 = scalar_lea.vmem %s4, %s279
      $region48: #{conv_block_3d.5} parent=43 // pred_fallthru
        _
    $region44: #{conv_block_3d.5} parent=5 // pred_fallthru
      _
  $region6: #{conv_block_3d.5} parent=0 // loop_footer
    %s14 = sadd.s32 1, %s10
  $region7: #{conv_block_3d.5} parent=0 // loop_footer_branch
    %9 = sbr.rel target = $region3
  $region8: #{conv_block_3d.5} parent=0 // loop_exit
    _

// kernel: conv_block_3d.4
$region0: #{conv_block_3d.4}
  #allocation0 [shape = 'u32[]', space=smem, size = 0x4, offset = 0x4, fixed_abs, tag = 'smem constant byte address 0x4 - core index']
  #allocation1 [shape = 'u32[144,128]{1,0:T(1,128)}', space=vmem, size = 0x12000, scoped, tag = 'internal scratch']
  #allocation2 [shape = 'f32[1,6,10,128]{3,2,1,0:T(8,128)}', space=vmem, size = 0xc000, scoped, tag = 'scratch operand']
  %s0 = inlined_call_operand.vmem [shape: f32[2,4,8,128], index: 0, kind: input, shape index: {}]
  %s1 = inlined_call_operand.vmem [shape: f32[1,128], index: 1, kind: input, shape index: {}]
  %s2 = inlined_call_operand.vmem [shape: f32[1,128], index: 2, kind: input, shape index: {}]
  %s3 = inlined_call_operand.vmem [shape: bf16[9,128,128], index: 3, kind: input, shape index: {}]
  %s4 = inlined_call_operand.vmem [shape: f32[2,4,8,128], index: 4, kind: output, shape index: {0}]
  %s5 = inlined_call_operand.vmem [shape: f32[2,8,128], index: 5, kind: output, shape index: {1}]
  %6 = xla_tuple %s4, %s5
  %s7 = sld [smem:[#allocation0]]
  $region57: #{conv_block_3d.4} parent=0
    _
  %s9 = ssub.s32 1, %s7
  %s10 = scalar_select 0, %s9, %s7
  loop: start=0, step=1, limit=4
  $region2: #{conv_block_3d.4} parent=0 // loop_pre_header
    _
  $region3: #{conv_block_3d.4} parent=0 // loop_header
    %s12 = sphi 0, %s16
    %p13 = scmp.ge.s32.totalorder %s12, 4
    %s22 = sphi 0, %s24
    %s25 = sphi 0, %s22
    %s26 = sphi 0, %s25
    %s42 = sphi 0, %s26
    %s46 = sphi 0, %s46
    %s48 = sphi 0, %s46
    %s49 = sphi 0, %s48
    %s63 = sphi 0, %s49
    %s67 = sphi 0, %s67
    %s69 = sphi 0, %s67
    %s70 = sphi 0, %s69
    %s84 = sphi 0, %s70
    %s88 = sphi 0, %s88
    %s90 = sphi 0, %s88
    %s91 = sphi 0, %s90
    %s105 = sphi 0, %s91
    %s111 = sphi 0, %s113
    %s114 = sphi 0, %s111
    %s115 = sphi 0, %s114
    %s131 = sphi 0, %s115
    %s137 = sphi 0, %s139
    %s140 = sphi 0, %s137
    %s141 = sphi 0, %s140
    %s157 = sphi 0, %s141
  $region4: #{conv_block_3d.4} parent=0 // loop_header_branch
    %15 = sbr.rel (%p13) target = $region8
  $region5: #{conv_block_3d.4} parent=0 // loop_body
    %s17 = ssub.s32 %s12, 1
    %s18 = ssub.s32 %s12, 2
    %s19 = sadd.s32 %s12, 1
    %s20 = ssub.s32 %s12, %s19
    %p21 = scmp.eq.s32.totalorder %s20, 0
    %s23 = sadd.s32 %s22, 1
    %s24 = scalar_select %p21, %s22, %s23
    %p27 = pneg %p21
    %p28 = scmp.eq.s32.totalorder %s12, 1
    %p29 = por %p27, %p28
    %p30 = scmp.ne.s32.totalorder %s22, %s25
    %p31 = scmp.eq.s32.totalorder %s12, 0
    %p32 = por %p30, %p31
    %p33 = scmp.ne.s32.totalorder %s22, %s25
    %p34 = scmp.eq.s32.totalorder %s17, 1
    %p35 = por %p33, %p34
    %p36 = scmp.ne.s32.totalorder %s25, %s26
    %p37 = scmp.eq.s32.totalorder %s17, 0
    %p38 = por %p36, %p37
    %p39 = scmp.ne.s32.totalorder %s25, %s26
    %p40 = scmp.eq.s32.totalorder %s18, 1
    %p41 = por %p39, %p40
    %p43 = scmp.ne.s32.totalorder %s26, %s42
    %p44 = scmp.eq.s32.totalorder %s18, 0
    %p45 = por %p43, %p44
    %s47 = sadd.s32 %s46, 1
    %p50 = scmp.eq.s32.totalorder %s12, 1
    %p51 = scmp.ne.s32.totalorder %s46, %s48
    %p52 = scmp.eq.s32.totalorder %s12, 0
    %p53 = por %p51, %p52
    %p54 = scmp.ne.s32.totalorder %s46, %s48
    %p55 = scmp.eq.s32.totalorder %s17, 1
    %p56 = por %p54, %p55
    %p57 = scmp.ne.s32.totalorder %s48, %s49
    %p58 = scmp.eq.s32.totalorder %s17, 0
    %p59 = por %p57, %p58
    %p60 = scmp.ne.s32.totalorder %s48, %s49
    %p61 = scmp.eq.s32.totalorder %s18, 1
    %p62 = por %p60, %p61
    %p64 = scmp.ne.s32.totalorder %s49, %s63
    %p65 = scmp.eq.s32.totalorder %s18, 0
    %p66 = por %p64, %p65
    %s68 = sadd.s32 %s67, 1
    %p71 = scmp.eq.s32.totalorder %s12, 1
    %p72 = scmp.ne.s32.totalorder %s67, %s69
    %p73 = scmp.eq.s32.totalorder %s12, 0
    %p74 = por %p72, %p73
    %p75 = scmp.ne.s32.totalorder %s67, %s69
    %p76 = scmp.eq.s32.totalorder %s17, 1
    %p77 = por %p75, %p76
    %p78 = scmp.ne.s32.totalorder %s69, %s70
    %p79 = scmp.eq.s32.totalorder %s17, 0
    %p80 = por %p78, %p79
    %p81 = scmp.ne.s32.totalorder %s69, %s70
    %p82 = scmp.eq.s32.totalorder %s18, 1
    %p83 = por %p81, %p82
    %p85 = scmp.ne.s32.totalorder %s70, %s84
    %p86 = scmp.eq.s32.totalorder %s18, 0
    %p87 = por %p85, %p86
    %s89 = sadd.s32 %s88, 1
    %p92 = scmp.eq.s32.totalorder %s12, 1
    %p93 = scmp.ne.s32.totalorder %s88, %s90
    %p94 = scmp.eq.s32.totalorder %s12, 0
    %p95 = por %p93, %p94
    %p96 = scmp.ne.s32.totalorder %s88, %s90
    %p97 = scmp.eq.s32.totalorder %s17, 1
    %p98 = por %p96, %p97
    %p99 = scmp.ne.s32.totalorder %s90, %s91
    %p100 = scmp.eq.s32.totalorder %s17, 0
    %p101 = por %p99, %p100
    %p102 = scmp.ne.s32.totalorder %s90, %s91
    %p103 = scmp.eq.s32.totalorder %s18, 1
    %p104 = por %p102, %p103
    %p106 = scmp.ne.s32.totalorder %s91, %s105
    %p107 = scmp.eq.s32.totalorder %s18, 0
    %p108 = por %p106, %p107
    %s109 = ssub.s32 %s12, %s19
    %p110 = scmp.eq.s32.totalorder %s109, 0
    %s112 = sadd.s32 %s111, 1
    %s113 = scalar_select %p110, %s111, %s112
    %p116 = pneg %p110
    %p117 = scmp.eq.s32.totalorder %s12, 1
    %p118 = por %p116, %p117
    %p119 = scmp.ne.s32.totalorder %s111, %s114
    %p120 = scmp.eq.s32.totalorder %s12, 0
    %p121 = por %p119, %p120
    %p122 = scmp.ne.s32.totalorder %s111, %s114
    %p123 = scmp.eq.s32.totalorder %s17, 1
    %p124 = por %p122, %p123
    %p125 = scmp.ne.s32.totalorder %s114, %s115
    %p126 = scmp.eq.s32.totalorder %s17, 0
    %p127 = por %p125, %p126
    %p128 = scmp.ne.s32.totalorder %s114, %s115
    %p129 = scmp.eq.s32.totalorder %s18, 1
    %p130 = por %p128, %p129
    %p132 = scmp.ne.s32.totalorder %s115, %s131
    %p133 = scmp.eq.s32.totalorder %s18, 0
    %p134 = por %p132, %p133
    %s135 = ssub.s32 %s12, %s19
    %p136 = scmp.eq.s32.totalorder %s135, 0
    %s138 = sadd.s32 %s137, 1
    %s139 = scalar_select %p136, %s137, %s138
    %p142 = pneg %p136
    %p143 = scmp.eq.s32.totalorder %s12, 1
    %p144 = por %p142, %p143
    %p145 = scmp.ne.s32.totalorder %s137, %s140
    %p146 = scmp.eq.s32.totalorder %s12, 0
    %p147 = por %p145, %p146
    %p148 = scmp.ne.s32.totalorder %s137, %s140
    %p149 = scmp.eq.s32.totalorder %s17, 1
    %p150 = por %p148, %p149
    %p151 = scmp.ne.s32.totalorder %s140, %s141
    %p152 = scmp.eq.s32.totalorder %s17, 0
    %p153 = por %p151, %p152
    %p154 = scmp.ne.s32.totalorder %s140, %s141
    %p155 = scmp.eq.s32.totalorder %s18, 1
    %p156 = por %p154, %p155
    %p158 = scmp.ne.s32.totalorder %s141, %s157
    %p159 = scmp.eq.s32.totalorder %s18, 0
    %p160 = por %p158, %p159
    %p161 = scmp.le.s32.totalorder 1, %s12
    %p162 = scmp.lt.s32.totalorder %s12, 3
    %p163 = pnand %p161, %p162
    %p164 = pneg %p163
    // Predicated region
    $region9: #{conv_block_3d.4} parent=5 // pred_check
      _
    $region10: #{conv_block_3d.4} parent=5 // pred_check_branch
      %166 = sbr.rel (%p163) target = $region12
    $region11: #{conv_block_3d.4} parent=5 // pred_region
      %s167 = ssub.s32 %s12, 1
      // Predicated region
      $region13: #{conv_block_3d.4} parent=11 // pred_check
        %p168 = pneg %p59
      $region14: #{conv_block_3d.4} parent=11 // pred_check_branch
        %170 = sbr.rel (%p168) target = $region16
      $region15: #{conv_block_3d.4} parent=11 // pred_region
        _
      $region16: #{conv_block_3d.4} parent=11 // pred_fallthru
        _
      // Predicated region
      $region17: #{conv_block_3d.4} parent=11 // pred_check
        %p171 = pneg %p80
      $region18: #{conv_block_3d.4} parent=11 // pred_check_branch
        %173 = sbr.rel (%p171) target = $region20
      $region19: #{conv_block_3d.4} parent=11 // pred_region
        _
      $region20: #{conv_block_3d.4} parent=11 // pred_fallthru
        _
      // Predicated region
      $region21: #{conv_block_3d.4} parent=11 // pred_check
        %p174 = pneg %p101
      $region22: #{conv_block_3d.4} parent=11 // pred_check_branch
        %176 = sbr.rel (%p174) target = $region24
      $region23: #{conv_block_3d.4} parent=11 // pred_region
        _
      $region24: #{conv_block_3d.4} parent=11 // pred_fallthru
        _
    $region12: #{conv_block_3d.4} parent=5 // pred_fallthru
      _
    %p177 = scmp.lt.s32.totalorder %s12, 2
    // Predicated region
    $region25: #{conv_block_3d.4} parent=5 // pred_check
      %p178 = pneg %p177
    $region26: #{conv_block_3d.4} parent=5 // pred_check_branch
      %180 = sbr.rel (%p178) target = $region28
    $region27: #{conv_block_3d.4} parent=5 // pred_region
      // Predicated region
      $region29: #{conv_block_3d.4} parent=27 // pred_check
        %p181 = pneg %p32
      $region30: #{conv_block_3d.4} parent=27 // pred_check_branch
        %183 = sbr.rel (%p181) target = $region32
      $region31: #{conv_block_3d.4} parent=27 // pred_region
        %p184 = scmp.lt.s32.totalorder %s12, 1
        %s185 = scalar_select %p184, %s12, 1
        %s186 = smul.addr %s185, 4
        %s187 = smul.addr %s186, 8
        %s188 = scalar_lea.vmem %s0, %s187
      $region32: #{conv_block_3d.4} parent=27 // pred_fallthru
        _
    $region28: #{conv_block_3d.4} parent=5 // pred_fallthru
      _
    %p189 = scmp.le.s32.totalorder 1, %s12
    %p190 = scmp.lt.s32.totalorder %s12, 3
    %p191 = pnand %p189, %p190
    %p192 = pneg %p191
    // Predicated region
    $region33: #{conv_block_3d.4} parent=5 // pred_check
      _
    $region34: #{conv_block_3d.4} parent=5 // pred_check_branch
      %194 = sbr.rel (%p191) target = $region36
    $region35: #{conv_block_3d.4} parent=5 // pred_region
      %s195 = ssub.s32 %s12, 1
      %p196 = scmp.lt.s32.totalorder %s17, 1
      %s197 = scalar_select %p196, %s17, 1
      %s198 = smul.addr %s197, 4
      %s199 = smul.addr %s198, 8
      %s200 = scalar_lea.vmem %s0, %s199
      %p201 = pneg %p38
      %p202 = pneg %p35
      %p203 = pneg %p59
      %p204 = pneg %p56
      %p205 = pneg %p80
      %p206 = pneg %p77
      %p207 = pneg %p101
      %p208 = pneg %p98
      %p209 = pneg %p127
      %p210 = pneg %p124
      %p211 = scmp.lt.s32.totalorder %s17, 1
      %s212 = scalar_select %p211, %s17, 1
      %s213 = smul.addr %s212, 4
      %s214 = smul.addr %s213, 8
      %s215 = scalar_lea.vmem %s4, %s214
      %p216 = pneg %p153
      %p217 = pneg %p150
      %p218 = scmp.lt.s32.totalorder %s17, 1
      %s219 = scalar_select %p218, %s17, 1
      %s220 = smul.addr %s219, 8
      %s221 = scalar_lea.vmem %s5, %s220
      %p222 = scmp.lt.s32.totalorder %s17, 1
      %s223 = scalar_select %p222, %s17, 1
      %s224 = smul.addr %s223, 4
      %s225 = smul.addr %s224, 8
      %s226 = scalar_lea.vmem %s0, %s225
      %p227 = scmp.lt.s32.totalorder %s17, 1
      %s228 = scalar_select %p227, %s17, 1
      %s229 = smul.addr %s228, 4
      %s230 = smul.addr %s229, 8
      %s231 = scalar_lea.vmem %s4, %s230
      %p232 = scmp.lt.s32.totalorder %s17, 1
      %s233 = scalar_select %p232, %s17, 1
      %s234 = smul.addr %s233, 8
      %s235 = scalar_lea.vmem %s5, %s234
      %v237 = vld [vmem:[%s1] sm:$0x1]
      %v238 = vld [vmem:[%s2] sm:$0x1]
      %v239 = vld [vmem:[%s226] sm:$0xff]
      %v240 = vld [vmem:[%s226 + $0x8] sm:$0xff]
      %v241 = vld [vmem:[%s226 + $0x10] sm:$0xff]
      %v242 = vld [vmem:[%s226 + $0x18] sm:$0xff]
      %v244 = vlaneseq
      %v245 = vshrl.u32 %v244, 7
      %v246 = vsub.s32 0, %v245
      %v247 = vrot.slane %v237, %v246
      %v249 = vmul.f32 %v239, %v247
      %v250 = vmul.f32 %v240, %v247
      %v251 = vmul.f32 %v241, %v247
      %v252 = vmul.f32 %v242, %v247
      %v254 = vlaneseq
      %v255 = vshrl.u32 %v254, 7
      %v256 = vsub.s32 0, %v255
      %v257 = vrot.slane %v238, %v256
      %v259 = vadd.f32 %v249, %v257
      %v260 = vadd.f32 %v250, %v257
      %v261 = vadd.f32 %v251, %v257
      %v262 = vadd.f32 %v252, %v257
      %v263 = vmax.f32 %v259, 0.0
      %v264 = vmax.f32 %v260, 0.0
      %v265 = vmax.f32 %v261, 0.0
      %v266 = vmax.f32 %v262, 0.0
      %267 = vst [vmem:[#allocation2] sm:$0xff] 0.0
      %268 = vst [vmem:[#allocation2 + $0x8] sm:$0x3] 0.0
      %s269 = scalar_lea.vmem [#allocation2], 80
      %270 = vst [vmem:[%s269] sm:$0xff] 0.0
      %271 = vst [vmem:[%s269 + $0x8] sm:$0x3] 0.0
      %s272 = scalar_lea.vmem [#allocation2], 16
      %273 = vst [vmem:[%s272] sm:$0x1] 0.0
      %274 = vst [vmem:[%s272 + $0x10] sm:$0x1] 0.0
      %275 = vst [vmem:[%s272 + $0x20] sm:$0x1] 0.0
      %276 = vst [vmem:[%s272 + $0x30] sm:$0x1] 0.0
      %277 = vst [vmem:[%s272 + $0x9] sm:$0x1] 0.0
      %278 = vst [vmem:[%s272 + $0x19] sm:$0x1] 0.0
      %279 = vst [vmem:[%s272 + $0x29] sm:$0x1] 0.0
      %280 = vst [vmem:[%s272 + $0x39] sm:$0x1] 0.0
      %281 = vst [vmem:[%s272 + $0x1] sm:$0xff] %v263
      %282 = vst [vmem:[%s272 + $0x11] sm:$0xff] %v264
      %283 = vst [vmem:[%s272 + $0x21] sm:$0xff] %v265
      %284 = vst [vmem:[%s272 + $0x31] sm:$0xff] %v266
      %v285 = vld [vmem:[#allocation2] sm:$0xff]
      %v286 = vld [vmem:[#allocation2 + $0x10] sm:$0xff]
      %v287 = vld [vmem:[#allocation2 + $0x20] sm:$0xff]
      %v288 = vld [vmem:[#allocation2 + $0x30] sm:$0xff]
      %v289 = vpack.c.bf16 %v286, %v285
      %v290 = vpack.c.bf16 %v288, %v287
      %v291 = vld [vmem:[%s3] sm:$0xf]
      %v292 = vld [vmem:[%s3 + $0x4] sm:$0xf]
      %v293 = vld [vmem:[%s3 + $0x8] sm:$0xf]
      %v294 = vld [vmem:[%s3 + $0xc] sm:$0xf]
      %v295 = vld [vmem:[%s3 + $0x10] sm:$0xf]
      %v296 = vld [vmem:[%s3 + $0x14] sm:$0xf]
      %v297 = vld [vmem:[%s3 + $0x18] sm:$0xf]
      %v298 = vld [vmem:[%s3 + $0x1c] sm:$0xf]
      %v299 = vld [vmem:[%s3 + $0x20] sm:$0xf]
      %v300 = vld [vmem:[%s3 + $0x24] sm:$0xf]
      %v301 = vld [vmem:[%s3 + $0x28] sm:$0xf]
      %v302 = vld [vmem:[%s3 + $0x2c] sm:$0xf]
      %v303 = vld [vmem:[%s3 + $0x30] sm:$0xf]
      %v304 = vld [vmem:[%s3 + $0x34] sm:$0xf]
      %v305 = vld [vmem:[%s3 + $0x38] sm:$0xf]
      %v306 = vld [vmem:[%s3 + $0x3c] sm:$0xf]
      %v307 = vld [vmem:[#allocation2 + $0x1] sm:$0xff]
      %v308 = vld [vmem:[#allocation2 + $0x11] sm:$0xff]
      %v309 = vld [vmem:[#allocation2 + $0x21] sm:$0xff]
      %v310 = vld [vmem:[#allocation2 + $0x31] sm:$0xff]
      %v311 = vpack.c.bf16 %v308, %v307
      %v312 = vpack.c.bf16 %v310, %v309
      %s313 = scalar_lea.vmem %s3, 64
      %v314 = vld [vmem:[%s313] sm:$0xf]
      %v315 = vld [vmem:[%s313 + $0x4] sm:$0xf]
      %v316 = vld [vmem:[%s313 + $0x8] sm:$0xf]
      %v317 = vld [vmem:[%s313 + $0xc] sm:$0xf]
      %v318 = vld [vmem:[%s313 + $0x10] sm:$0xf]
      %v319 = vld [vmem:[%s313 + $0x14] sm:$0xf]
      %v320 = vld [vmem:[%s313 + $0x18] sm:$0xf]
      %v321 = vld [vmem:[%s313 + $0x1c] sm:$0xf]
      %v322 = vld [vmem:[%s313 + $0x20] sm:$0xf]
      %v323 = vld [vmem:[%s313 + $0x24] sm:$0xf]
      %v324 = vld [vmem:[%s313 + $0x28] sm:$0xf]
      %v325 = vld [vmem:[%s313 + $0x2c] sm:$0xf]
      %v326 = vld [vmem:[%s313 + $0x30] sm:$0xf]
      %v327 = vld [vmem:[%s313 + $0x34] sm:$0xf]
      %v328 = vld [vmem:[%s313 + $0x38] sm:$0xf]
      %v329 = vld [vmem:[%s313 + $0x3c] sm:$0xf]
      %v346 = vunpack.c.l.b16 %v314
      %v347 = vunpack.c.l.b16 %v315
      %v348 = vunpack.c.l.b16 %v316
      %v349 = vunpack.c.l.b16 %v317
      %v350 = vunpack.c.l.b16 %v318
      %v351 = vunpack.c.l.b16 %v319
      %v352 = vunpack.c.l.b16 %v320
      %v353 = vunpack.c.l.b16 %v321
      %v354 = vunpack.c.l.b16 %v322
      %v355 = vunpack.c.l.b16 %v323
      %v356 = vunpack.c.l.b16 %v324
      %v357 = vunpack.c.l.b16 %v325
      %v358 = vunpack.c.l.b16 %v326
      %v359 = vunpack.c.l.b16 %v327
      %v360 = vunpack.c.l.b16 %v328
      %v361 = vunpack.c.l.b16 %v329
      %v362 = vpack.c.b16 %v347, %v346
      %v363 = vpack.c.b16 %v349, %v348
      %v364 = vpack.c.b16 %v351, %v350
      %v365 = vpack.c.b16 %v353, %v352
      %v366 = vpack.c.b16 %v355, %v354
      %v367 = vpack.c.b16 %v357, %v356
      %v368 = vpack.c.b16 %v359, %v358
      %v369 = vpack.c.b16 %v361, %v360
      %378 = vmatprep.subr.bf16.mxu0 0
      %379 = vmatpush1.bf16.msra.mxu0 %v369
      %380 = vmatprep.subr.bf16.mxu0 0
      %381 = vmatpush1.bf16.msra.mxu0 %v368
      %382 = vmatprep.subr.bf16.mxu0 0
      %383 = vmatpush1.bf16.msra.mxu0 %v367
      %384 = vmatprep.subr.bf16.mxu0 0
      %385 = vmatpush1.bf16.msra.mxu0 %v366
      %386 = vmatprep.subr.bf16.mxu0 0
      %387 = vmatpush1.bf16.msra.mxu0 %v365
      %388 = vmatprep.subr.bf16.mxu0 0
      %389 = vmatpush1.bf16.msra.mxu0 %v364
      %390 = vmatprep.subr.bf16.mxu0 0
      %391 = vmatpush1.bf16.msra.mxu0 %v363
      %392 = vmatprep.subr.bf16.mxu0 0
      %393 = vmatpush1.bf16.msra.mxu0 %v362
      %394 = vmatprep.subr.bf16.mxu0 0
      %395 = vmatpush2.bf16.msra.mxu0 0
      %396 = vmatprep.subr.bf16.mxu0 0
      %397 = vmatpush2.bf16.msra.mxu0 0
      %398 = vmatprep.subr.bf16.mxu0 0
      %399 = vmatpush2.bf16.msra.mxu0 0
      %400 = vmatprep.subr.bf16.mxu0 0
      %401 = vmatpush2.bf16.msra.mxu0 0
      %402 = vmatprep.subr.bf16.mxu0 0
      %403 = vmatpush2.bf16.msra.mxu0 0
      %404 = vmatprep.subr.bf16.mxu0 0
      %405 = vmatpush2.bf16.msra.mxu0 0
      %406 = vmatprep.subr.bf16.mxu0 0
      %407 = vmatpush2.bf16.msra.mxu0 0
      %408 = vmatprep.subr.bf16.mxu0 0
      %409 = vmatpush2.bf16.msra.mxu0 0
      %410 = vmatprep.mubr.bf16.mxu0 0
      %411 = vmatmul.mubr.bf16.gmra.mxu0 %v311
      %v412 = vpop.f32.mrf.mxu0
      %v413 = vadd.f32 0.0, %v412
      %v414 = vpop.f32.mrf.mxu0
      %v415 = vpop.f32.mrf.mxu0
      %v416 = vadd.f32 0.0, %v415
      %v417 = vpop.f32.mrf.mxu0
      %418 = vmatprep.mubr.bf16.mxu0 0
      %419 = vmatmul.mubr.bf16.gmra.mxu0 %v312
      %v420 = vpop.f32.mrf.mxu0
      %v421 = vadd.f32 0.0, %v420
      %v422 = vpop.f32.mrf.mxu0
      %v423 = vpop.f32.mrf.mxu0
      %v424 = vadd.f32 0.0, %v423
      %v425 = vpop.f32.mrf.mxu0
      %426 = vdwg.mxu0
      %v443 = vunpack.c.l.b16 %v291
      %v444 = vunpack.c.l.b16 %v292
      %v445 = vunpack.c.l.b16 %v293
      %v446 = vunpack.c.l.b16 %v294
      %v447 = vunpack.c.l.b16 %v295
      %v448 = vunpack.c.l.b16 %v296
      %v449 = vunpack.c.l.b16 %v297
      %v450 = vunpack.c.l.b16 %v298
      %v451 = vunpack.c.l.b16 %v299
      %v452 = vunpack.c.l.b16 %v300
      %v453 = vunpack.c.l.b16 %v301
      %v454 = vunpack.c.l.b16 %v302
      %v455 = vunpack.c.l.b16 %v303
      %v456 = vunpack.c.l.b16 %v304
      %v457 = vunpack.c.l.b16 %v305
      %v458 = vunpack.c.l.b16 %v306
      %v459 = vpack.c.b16 %v444, %v443
      %v460 = vpack.c.b16 %v446, %v445
      %v461 = vpack.c.b16 %v448, %v447
      %v462 = vpack.c.b16 %v450, %v449
      %v463 = vpack.c.b16 %v452, %v451
      %v464 = vpack.c.b16 %v454, %v453
      %v465 = vpack.c.b16 %v456, %v455
      %v466 = vpack.c.b16 %v458, %v457
      %475 = vmatprep.subr.bf16.mxu0 0
      %476 = vmatpush1.bf16.msra.mxu0 %v466
      %477 = vmatprep.subr.bf16.mxu0 0
      %478 = vmatpush1.bf16.msra.mxu0 %v465
      %479 = vmatprep.subr.bf16.mxu0 0
      %480 = vmatpush1.bf16.msra.mxu0 %v464
      %481 = vmatprep.subr.bf16.mxu0 0
      %482 = vmatpush1.bf16.msra.mxu0 %v463
      %483 = vmatprep.subr.bf16.mxu0 0
      %484 = vmatpush1.bf16.msra.mxu0 %v462
      %485 = vmatprep.subr.bf16.mxu0 0
      %486 = vmatpush1.bf16.msra.mxu0 %v461
      %487 = vmatprep.subr.bf16.mxu0 0
      %488 = vmatpush1.bf16.msra.mxu0 %v460
      %489 = vmatprep.subr.bf16.mxu0 0
      %490 = vmatpush1.bf16.msra.mxu0 %v459
      %491 = vmatprep.subr.bf16.mxu0 0
      %492 = vmatpush2.bf16.msra.mxu0 0
      %493 = vmatprep.subr.bf16.mxu0 0
      %494 = vmatpush2.bf16.msra.mxu0 0
      %495 = vmatprep.subr.bf16.mxu0 0
      %496 = vmatpush2.bf16.msra.mxu0 0
      %497 = vmatprep.subr.bf16.mxu0 0
      %498 = vmatpush2.bf16.msra.mxu0 0
      %499 = vmatprep.subr.bf16.mxu0 0
      %500 = vmatpush2.bf16.msra.mxu0 0
      %501 = vmatprep.subr.bf16.mxu0 0
      %502 = vmatpush2.bf16.msra.mxu0 0
      %503 = vmatprep.subr.bf16.mxu0 0
      %504 = vmatpush2.bf16.msra.mxu0 0
      %505 = vmatprep.subr.bf16.mxu0 0
      %506 = vmatpush2.bf16.msra.mxu0 0
      %507 = vmatprep.mubr.bf16.mxu0 0
      %508 = vmatmul.mubr.bf16.gmra.mxu0 %v289
      %v509 = vpop.f32.mrf.mxu0
      %v510 = vadd.f32 %v413, %v509
      %v511 = vpop.f32.mrf.mxu0
      %v512 = vpop.f32.mrf.mxu0
      %v513 = vadd.f32 %v416, %v512
      %v514 = vpop.f32.mrf.mxu0
      %515 = vmatprep.mubr.bf16.mxu0 0
      %516 = vmatmul.mubr.bf16.gmra.mxu0 %v290
      %v517 = vpop.f32.mrf.mxu0
      %v518 = vadd.f32 %v421, %v517
      %v519 = vpop.f32.mrf.mxu0
      %v520 = vpop.f32.mrf.mxu0
      %v521 = vadd.f32 %v424, %v520
      %v522 = vpop.f32.mrf.mxu0
      %523 = vdwg.mxu0
      %v524 = vld [vmem:[#allocation2 + $0x2] sm:$0xff]
      %v525 = vld [vmem:[#allocation2 + $0x12] sm:$0xff]
      %v526 = vld [vmem:[#allocation2 + $0x22] sm:$0xff]
      %v527 = vld [vmem:[#allocation2 + $0x32] sm:$0xff]
      %v528 = vpack.c.bf16 %v525, %v524
      %v529 = vpack.c.bf16 %v527, %v526
      %s530 = scalar_lea.vmem %s3, 128
      %v531 = vld [vmem:[%s530] sm:$0xf]
      %v532 = vld [vmem:[%s530 + $0x4] sm:$0xf]
      %v533 = vld [vmem:[%s530 + $0x8] sm:$0xf]
      %v534 = vld [vmem:[%s530 + $0xc] sm:$0xf]
      %v535 = vld [vmem:[%s530 + $0x10] sm:$0xf]
      %v536 = vld [vmem:[%s530 + $0x14] sm:$0xf]
      %v537 = vld [vmem:[%s530 + $0x18] sm:$0xf]
      %v538 = vld [vmem:[%s530 + $0x1c] sm:$0xf]
      %v539 = vld [vmem:[%s530 + $0x20] sm:$0xf]
      %v540 = vld [vmem:[%s530 + $0x24] sm:$0xf]
      %v541 = vld [vmem:[%s530 + $0x28] sm:$0xf]
      %v542 = vld [vmem:[%s530 + $0x2c] sm:$0xf]
      %v543 = vld [vmem:[%s530 + $0x30] sm:$0xf]
      %v544 = vld [vmem:[%s530 + $0x34] sm:$0xf]
      %v545 = vld [vmem:[%s530 + $0x38] sm:$0xf]
      %v546 = vld [vmem:[%s530 + $0x3c] sm:$0xf]
      %v563 = vunpack.c.l.b16 %v531
      %v564 = vunpack.c.l.b16 %v532
      %v565 = vunpack.c.l.b16 %v533
      %v566 = vunpack.c.l.b16 %v534
      %v567 = vunpack.c.l.b16 %v535
      %v568 = vunpack.c.l.b16 %v536
      %v569 = vunpack.c.l.b16 %v537
      %v570 = vunpack.c.l.b16 %v538
      %v571 = vunpack.c.l.b16 %v539
      %v572 = vunpack.c.l.b16 %v540
      %v573 = vunpack.c.l.b16 %v541
      %v574 = vunpack.c.l.b16 %v542
      %v575 = vunpack.c.l.b16 %v543
      %v576 = vunpack.c.l.b16 %v544
      %v577 = vunpack.c.l.b16 %v545
      %v578 = vunpack.c.l.b16 %v546
      %v579 = vpack.c.b16 %v564, %v563
      %v580 = vpack.c.b16 %v566, %v565
      %v581 = vpack.c.b16 %v568, %v567
      %v582 = vpack.c.b16 %v570, %v569
      %v583 = vpack.c.b16 %v572, %v571
      %v584 = vpack.c.b16 %v574, %v573
      %v585 = vpack.c.b16 %v576, %v575
      %v586 = vpack.c.b16 %v578, %v577
      %595 = vmatprep.subr.bf16.mxu0 0
      %596 = vmatpush1.bf16.msra.mxu0 %v586
      %597 = vmatprep.subr.bf16.mxu0 0
      %598 = vmatpush1.bf16.msra.mxu0 %v585
      %599 = vmatprep.subr.bf16.mxu0 0
      %600 = vmatpush1.bf16.msra.mxu0 %v584
      %601 = vmatprep.subr.bf16.mxu0 0
      %602 = vmatpush1.bf16.msra.mxu0 %v583
      %603 = vmatprep.subr.bf16.mxu0 0
      %604 = vmatpush1.bf16.msra.mxu0 %v582
      %605 = vmatprep.subr.bf16.mxu0 0
      %606 = vmatpush1.bf16.msra.mxu0 %v581
      %607 = vmatprep.subr.bf16.mxu0 0
      %608 = vmatpush1.bf16.msra.mxu0 %v580
      %609 = vmatprep.subr.bf16.mxu0 0
      %610 = vmatpush1.bf16.msra.mxu0 %v579
      %611 = vmatprep.subr.bf16.mxu0 0
      %612 = vmatpush2.bf16.msra.mxu0 0
      %613 = vmatprep.subr.bf16.mxu0 0
      %614 = vmatpush2.bf16.msra.mxu0 0
      %615 = vmatprep.subr.bf16.mxu0 0
      %616 = vmatpush2.bf16.msra.mxu0 0
      %617 = vmatprep.subr.bf16.mxu0 0
      %618 = vmatpush2.bf16.msra.mxu0 0
      %619 = vmatprep.subr.bf16.mxu0 0
      %620 = vmatpush2.bf16.msra.mxu0 0
      %621 = vmatprep.subr.bf16.mxu0 0
      %622 = vmatpush2.bf16.msra.mxu0 0
      %623 = vmatprep.subr.bf16.mxu0 0
      %624 = vmatpush2.bf16.msra.mxu0 0
      %625 = vmatprep.subr.bf16.mxu0 0
      %626 = vmatpush2.bf16.msra.mxu0 0
      %627 = vmatprep.mubr.bf16.mxu0 0
      %628 = vmatmul.mubr.bf16.gmra.mxu0 %v528
      %v629 = vpop.f32.mrf.mxu0
      %v630 = vadd.f32 0.0, %v629
      %v631 = vpop.f32.mrf.mxu0
      %v632 = vpop.f32.mrf.mxu0
      %v633 = vadd.f32 0.0, %v632
      %v634 = vpop.f32.mrf.mxu0
      %635 = vmatprep.mubr.bf16.mxu0 0
      %636 = vmatmul.mubr.bf16.gmra.mxu0 %v529
      %v637 = vpop.f32.mrf.mxu0
      %v638 = vadd.f32 0.0, %v637
      %v639 = vpop.f32.mrf.mxu0
      %v640 = vpop.f32.mrf.mxu0
      %v641 = vadd.f32 0.0, %v640
      %v642 = vpop.f32.mrf.mxu0
      %643 = vdwg.mxu0
      %v644 = vadd.f32 %v510, %v630
      %v645 = vadd.f32 %v513, %v633
      %v646 = vadd.f32 %v518, %v638
      %v647 = vadd.f32 %v521, %v641
      %v648 = vld [vmem:[%s272] sm:$0xff]
      %v649 = vld [vmem:[%s272 + $0x10] sm:$0xff]
      %v650 = vld [vmem:[%s272 + $0x20] sm:$0xff]
      %v651 = vld [vmem:[%s272 + $0x30] sm:$0xff]
      %v652 = vpack.c.bf16 %v649, %v648
      %v653 = vpack.c.bf16 %v651, %v650
      %s654 = scalar_lea.vmem %s3, 192
      %v655 = vld [vmem:[%s654] sm:$0xf]
      %v656 = vld [vmem:[%s654 + $0x4] sm:$0xf]
      %v657 = vld [vmem:[%s654 + $0x8] sm:$0xf]
      %v658 = vld [vmem:[%s654 + $0xc] sm:$0xf]
      %v659 = vld [vmem:[%s654 + $0x10] sm:$0xf]
      %v660 = vld [vmem:[%s654 + $0x14] sm:$0xf]
      %v661 = vld [vmem:[%s654 + $0x18] sm:$0xf]
      %v662 = vld [vmem:[%s654 + $0x1c] sm:$0xf]
      %v663 = vld [vmem:[%s654 + $0x20] sm:$0xf]
      %v664 = vld [vmem:[%s654 + $0x24] sm:$0xf]
      %v665 = vld [vmem:[%s654 + $0x28] sm:$0xf]
      %v666 = vld [vmem:[%s654 + $0x2c] sm:$0xf]
      %v667 = vld [vmem:[%s654 + $0x30] sm:$0xf]
      %v668 = vld [vmem:[%s654 + $0x34] sm:$0xf]
      %v669 = vld [vmem:[%s654 + $0x38] sm:$0xf]
      %v670 = vld [vmem:[%s654 + $0x3c] sm:$0xf]
      %v687 = vunpack.c.l.b16 %v655
      %v688 = vunpack.c.l.b16 %v656
      %v689 = vunpack.c.l.b16 %v657
      %v690 = vunpack.c.l.b16 %v658
      %v691 = vunpack.c.l.b16 %v659
      %v692 = vunpack.c.l.b16 %v660
      %v693 = vunpack.c.l.b16 %v661
      %v694 = vunpack.c.l.b16 %v662
      %v695 = vunpack.c.l.b16 %v663
      %v696 = vunpack.c.l.b16 %v664
      %v697 = vunpack.c.l.b16 %v665
      %v698 = vunpack.c.l.b16 %v666
      %v699 = vunpack.c.l.b16 %v667
      %v700 = vunpack.c.l.b16 %v668
      %v701 = vunpack.c.l.b16 %v669
      %v702 = vunpack.c.l.b16 %v670
      %v703 = vpack.c.b16 %v688, %v687
      %v704 = vpack.c.b16 %v690, %v689
      %v705 = vpack.c.b16 %v692, %v691
      %v706 = vpack.c.b16 %v694, %v693
      %v707 = vpack.c.b16 %v696, %v695
      %v708 = vpack.c.b16 %v698, %v697
      %v709 = vpack.c.b16 %v700, %v699
      %v710 = vpack.c.b16 %v702, %v701
      %719 = vmatprep.subr.bf16.mxu0 0
      %720 = vmatpush1.bf16.msra.mxu0 %v710
      %721 = vmatprep.subr.bf16.mxu0 0
      %722 = vmatpush1.bf16.msra.mxu0 %v709
      %723 = vmatprep.subr.bf16.mxu0 0
      %724 = vmatpush1.bf16.msra.mxu0 %v708
      %725 = vmatprep.subr.bf16.mxu0 0
      %726 = vmatpush1.bf16.msra.mxu0 %v707
      %727 = vmatprep.subr.bf16.mxu0 0
      %728 = vmatpush1.bf16.msra.mxu0 %v706
      %729 = vmatprep.subr.bf16.mxu0 0
      %730 = vmatpush1.bf16.msra.mxu0 %v705
      %731 = vmatprep.subr.bf16.mxu0 0
      %732 = vmatpush1.bf16.msra.mxu0 %v704
      %733 = vmatprep.subr.bf16.mxu0 0
      %734 = vmatpush1.bf16.msra.mxu0 %v703
      %735 = vmatprep.subr.bf16.mxu0 0
      %736 = vmatpush2.bf16.msra.mxu0 0
      %737 = vmatprep.subr.bf16.mxu0 0
      %738 = vmatpush2.bf16.msra.mxu0 0
      %739 = vmatprep.subr.bf16.mxu0 0
      %740 = vmatpush2.bf16.msra.mxu0 0
      %741 = vmatprep.subr.bf16.mxu0 0
      %742 = vmatpush2.bf16.msra.mxu0 0
      %743 = vmatprep.subr.bf16.mxu0 0
      %744 = vmatpush2.bf16.msra.mxu0 0
      %745 = vmatprep.subr.bf16.mxu0 0
      %746 = vmatpush2.bf16.msra.mxu0 0
      %747 = vmatprep.subr.bf16.mxu0 0
      %748 = vmatpush2.bf16.msra.mxu0 0
      %749 = vmatprep.subr.bf16.mxu0 0
      %750 = vmatpush2.bf16.msra.mxu0 0
      %751 = vmatprep.mubr.bf16.mxu0 0
      %752 = vmatmul.mubr.bf16.gmra.mxu0 %v652
      %v753 = vpop.f32.mrf.mxu0
      %v754 = vadd.f32 0.0, %v753
      %v755 = vpop.f32.mrf.mxu0
      %v756 = vpop.f32.mrf.mxu0
      %v757 = vadd.f32 0.0, %v756
      %v758 = vpop.f32.mrf.mxu0
      %759 = vmatprep.mubr.bf16.mxu0 0
      %760 = vmatmul.mubr.bf16.gmra.mxu0 %v653
      %v761 = vpop.f32.mrf.mxu0
      %v762 = vadd.f32 0.0, %v761
      %v763 = vpop.f32.mrf.mxu0
      %v764 = vpop.f32.mrf.mxu0
      %v765 = vadd.f32 0.0, %v764
      %v766 = vpop.f32.mrf.mxu0
      %767 = vdwg.mxu0
      %v768 = vadd.f32 %v644, %v754
      %v769 = vadd.f32 %v645, %v757
      %v770 = vadd.f32 %v646, %v762
      %v771 = vadd.f32 %v647, %v765
      %v772 = vld [vmem:[%s272 + $0x1] sm:$0xff]
      %v773 = vld [vmem:[%s272 + $0x11] sm:$0xff]
      %v774 = vld [vmem:[%s272 + $0x21] sm:$0xff]
      %v775 = vld [vmem:[%s272 + $0x31] sm:$0xff]
      %v776 = vpack.c.bf16 %v773, %v772
      %v777 = vpack.c.bf16 %v775, %v774
      %s778 = scalar_lea.vmem %s3, 256
      %v779 = vld [vmem:[%s778] sm:$0xf]
      %v780 = vld [vmem:[%s778 + $0x4] sm:$0xf]
      %v781 = vld [vmem:[%s778 + $0x8] sm:$0xf]
      %v782 = vld [vmem:[%s778 + $0xc] sm:$0xf]
      %v783 = vld [vmem:[%s778 + $0x10] sm:$0xf]
      %v784 = vld [vmem:[%s778 + $0x14] sm:$0xf]
      %v785 = vld [vmem:[%s778 + $0x18] sm:$0xf]
      %v786 = vld [vmem:[%s778 + $0x1c] sm:$0xf]
      %v787 = vld [vmem:[%s778 + $0x20] sm:$0xf]
      %v788 = vld [vmem:[%s778 + $0x24] sm:$0xf]
      %v789 = vld [vmem:[%s778 + $0x28] sm:$0xf]
      %v790 = vld [vmem:[%s778 + $0x2c] sm:$0xf]
      %v791 = vld [vmem:[%s778 + $0x30] sm:$0xf]
      %v792 = vld [vmem:[%s778 + $0x34] sm:$0xf]
      %v793 = vld [vmem:[%s778 + $0x38] sm:$0xf]
      %v794 = vld [vmem:[%s778 + $0x3c] sm:$0xf]
      %v811 = vunpack.c.l.b16 %v779
      %v812 = vunpack.c.l.b16 %v780
      %v813 = vunpack.c.l.b16 %v781
      %v814 = vunpack.c.l.b16 %v782
      %v815 = vunpack.c.l.b16 %v783
      %v816 = vunpack.c.l.b16 %v784
      %v817 = vunpack.c.l.b16 %v785
      %v818 = vunpack.c.l.b16 %v786
      %v819 = vunpack.c.l.b16 %v787
      %v820 = vunpack.c.l.b16 %v788
      %v821 = vunpack.c.l.b16 %v789
      %v822 = vunpack.c.l.b16 %v790
      %v823 = vunpack.c.l.b16 %v791
      %v824 = vunpack.c.l.b16 %v792
      %v825 = vunpack.c.l.b16 %v793
      %v826 = vunpack.c.l.b16 %v794
      %v827 = vpack.c.b16 %v812, %v811
      %v828 = vpack.c.b16 %v814, %v813
      %v829 = vpack.c.b16 %v816, %v815
      %v830 = vpack.c.b16 %v818, %v817
      %v831 = vpack.c.b16 %v820, %v819
      %v832 = vpack.c.b16 %v822, %v821
      %v833 = vpack.c.b16 %v824, %v823
      %v834 = vpack.c.b16 %v826, %v825
      %843 = vmatprep.subr.bf16.mxu0 0
      %844 = vmatpush1.bf16.msra.mxu0 %v834
      %845 = vmatprep.subr.bf16.mxu0 0
      %846 = vmatpush1.bf16.msra.mxu0 %v833
      %847 = vmatprep.subr.bf16.mxu0 0
      %848 = vmatpush1.bf16.msra.mxu0 %v832
      %849 = vmatprep.subr.bf16.mxu0 0
      %850 = vmatpush1.bf16.msra.mxu0 %v831
      %851 = vmatprep.subr.bf16.mxu0 0
      %852 = vmatpush1.bf16.msra.mxu0 %v830
      %853 = vmatprep.subr.bf16.mxu0 0
      %854 = vmatpush1.bf16.msra.mxu0 %v829
      %855 = vmatprep.subr.bf16.mxu0 0
      %856 = vmatpush1.bf16.msra.mxu0 %v828
      %857 = vmatprep.subr.bf16.mxu0 0
      %858 = vmatpush1.bf16.msra.mxu0 %v827
      %859 = vmatprep.subr.bf16.mxu0 0
      %860 = vmatpush2.bf16.msra.mxu0 0
      %861 = vmatprep.subr.bf16.mxu0 0
      %862 = vmatpush2.bf16.msra.mxu0 0
      %863 = vmatprep.subr.bf16.mxu0 0
      %864 = vmatpush2.bf16.msra.mxu0 0
      %865 = vmatprep.subr.bf16.mxu0 0
      %866 = vmatpush2.bf16.msra.mxu0 0
      %867 = vmatprep.subr.bf16.mxu0 0
      %868 = vmatpush2.bf16.msra.mxu0 0
      %869 = vmatprep.subr.bf16.mxu0 0
      %870 = vmatpush2.bf16.msra.mxu0 0
      %871 = vmatprep.subr.bf16.mxu0 0
      %872 = vmatpush2.bf16.msra.mxu0 0
      %873 = vmatprep.subr.bf16.mxu0 0
      %874 = vmatpush2.bf16.msra.mxu0 0
      %875 = vmatprep.mubr.bf16.mxu0 0
      %876 = vmatmul.mubr.bf16.gmra.mxu0 %v776
      %v877 = vpop.f32.mrf.mxu0
      %v878 = vadd.f32 0.0, %v877
      %v879 = vpop.f32.mrf.mxu0
      %v880 = vpop.f32.mrf.mxu0
      %v881 = vadd.f32 0.0, %v880
      %v882 = vpop.f32.mrf.mxu0
      %883 = vmatprep.mubr.bf16.mxu0 0
      %884 = vmatmul.mubr.bf16.gmra.mxu0 %v777
      %v885 = vpop.f32.mrf.mxu0
      %v886 = vadd.f32 0.0, %v885
      %v887 = vpop.f32.mrf.mxu0
      %v888 = vpop.f32.mrf.mxu0
      %v889 = vadd.f32 0.0, %v888
      %v890 = vpop.f32.mrf.mxu0
      %891 = vdwg.mxu0
      %v892 = vadd.f32 %v768, %v878
      %v893 = vadd.f32 %v769, %v881
      %v894 = vadd.f32 %v770, %v886
      %v895 = vadd.f32 %v771, %v889
      %v896 = vld [vmem:[%s272 + $0x2] sm:$0xff]
      %v897 = vld [vmem:[%s272 + $0x12] sm:$0xff]
      %v898 = vld [vmem:[%s272 + $0x22] sm:$0xff]
      %v899 = vld [vmem:[%s272 + $0x32] sm:$0xff]
      %v900 = vpack.c.bf16 %v897, %v896
      %v901 = vpack.c.bf16 %v899, %v898
      %s902 = scalar_lea.vmem %s3, 320
      %v903 = vld [vmem:[%s902] sm:$0xf]
      %v904 = vld [vmem:[%s902 + $0x4] sm:$0xf]
      %v905 = vld [vmem:[%s902 + $0x8] sm:$0xf]
      %v906 = vld [vmem:[%s902 + $0xc] sm:$0xf]
      %v907 = vld [vmem:[%s902 + $0x10] sm:$0xf]
      %v908 = vld [vmem:[%s902 + $0x14] sm:$0xf]
      %v909 = vld [vmem:[%s902 + $0x18] sm:$0xf]
      %v910 = vld [vmem:[%s902 + $0x1c] sm:$0xf]
      %v911 = vld [vmem:[%s902 + $0x20] sm:$0xf]
      %v912 = vld [vmem:[%s902 + $0x24] sm:$0xf]
      %v913 = vld [vmem:[%s902 + $0x28] sm:$0xf]
      %v914 = vld [vmem:[%s902 + $0x2c] sm:$0xf]
      %v915 = vld [vmem:[%s902 + $0x30] sm:$0xf]
      %v916 = vld [vmem:[%s902 + $0x34] sm:$0xf]
      %v917 = vld [vmem:[%s902 + $0x38] sm:$0xf]
      %v918 = vld [vmem:[%s902 + $0x3c] sm:$0xf]
      %v935 = vunpack.c.l.b16 %v903
      %v936 = vunpack.c.l.b16 %v904
      %v937 = vunpack.c.l.b16 %v905
      %v938 = vunpack.c.l.b16 %v906
      %v939 = vunpack.c.l.b16 %v907
      %v940 = vunpack.c.l.b16 %v908
      %v941 = vunpack.c.l.b16 %v909
      %v942 = vunpack.c.l.b16 %v910
      %v943 = vunpack.c.l.b16 %v911
      %v944 = vunpack.c.l.b16 %v912
      %v945 = vunpack.c.l.b16 %v913
      %v946 = vunpack.c.l.b16 %v914
      %v947 = vunpack.c.l.b16 %v915
      %v948 = vunpack.c.l.b16 %v916
      %v949 = vunpack.c.l.b16 %v917
      %v950 = vunpack.c.l.b16 %v918
      %v951 = vpack.c.b16 %v936, %v935
      %v952 = vpack.c.b16 %v938, %v937
      %v953 = vpack.c.b16 %v940, %v939
      %v954 = vpack.c.b16 %v942, %v941
      %v955 = vpack.c.b16 %v944, %v943
      %v956 = vpack.c.b16 %v946, %v945
      %v957 = vpack.c.b16 %v948, %v947
      %v958 = vpack.c.b16 %v950, %v949
      %967 = vmatprep.subr.bf16.mxu0 0
      %968 = vmatpush1.bf16.msra.mxu0 %v958
      %969 = vmatprep.subr.bf16.mxu0 0
      %970 = vmatpush1.bf16.msra.mxu0 %v957
      %971 = vmatprep.subr.bf16.mxu0 0
      %972 = vmatpush1.bf16.msra.mxu0 %v956
      %973 = vmatprep.subr.bf16.mxu0 0
      %974 = vmatpush1.bf16.msra.mxu0 %v955
      %975 = vmatprep.subr.bf16.mxu0 0
      %976 = vmatpush1.bf16.msra.mxu0 %v954
      %977 = vmatprep.subr.bf16.mxu0 0
      %978 = vmatpush1.bf16.msra.mxu0 %v953
      %979 = vmatprep.subr.bf16.mxu0 0
      %980 = vmatpush1.bf16.msra.mxu0 %v952
      %981 = vmatprep.subr.bf16.mxu0 0
      %982 = vmatpush1.bf16.msra.mxu0 %v951
      %983 = vmatprep.subr.bf16.mxu0 0
      %984 = vmatpush2.bf16.msra.mxu0 0
      %985 = vmatprep.subr.bf16.mxu0 0
      %986 = vmatpush2.bf16.msra.mxu0 0
      %987 = vmatprep.subr.bf16.mxu0 0
      %988 = vmatpush2.bf16.msra.mxu0 0
      %989 = vmatprep.subr.bf16.mxu0 0
      %990 = vmatpush2.bf16.msra.mxu0 0
      %991 = vmatprep.subr.bf16.mxu0 0
      %992 = vmatpush2.bf16.msra.mxu0 0
      %993 = vmatprep.subr.bf16.mxu0 0
      %994 = vmatpush2.bf16.msra.mxu0 0
      %995 = vmatprep.subr.bf16.mxu0 0
      %996 = vmatpush2.bf16.msra.mxu0 0
      %997 = vmatprep.subr.bf16.mxu0 0
      %998 = vmatpush2.bf16.msra.mxu0 0
      %999 = vmatprep.mubr.bf16.mxu0 0
      %1000 = vmatmul.mubr.bf16.gmra.mxu0 %v900
      %v1001 = vpop.f32.mrf.mxu0
      %v1002 = vadd.f32 0.0, %v1001
      %v1003 = vpop.f32.mrf.mxu0
      %v1004 = vpop.f32.mrf.mxu0
      %v1005 = vadd.f32 0.0, %v1004
      %v1006 = vpop.f32.mrf.mxu0
      %1007 = vmatprep.mubr.bf16.mxu0 0
      %1008 = vmatmul.mubr.bf16.gmra.mxu0 %v901
      %v1009 = vpop.f32.mrf.mxu0
      %v1010 = vadd.f32 0.0, %v1009
      %v1011 = vpop.f32.mrf.mxu0
      %v1012 = vpop.f32.mrf.mxu0
      %v1013 = vadd.f32 0.0, %v1012
      %v1014 = vpop.f32.mrf.mxu0
      %1015 = vdwg.mxu0
      %v1016 = vadd.f32 %v892, %v1002
      %v1017 = vadd.f32 %v893, %v1005
      %v1018 = vadd.f32 %v894, %v1010
      %v1019 = vadd.f32 %v895, %v1013
      %s1020 = scalar_lea.vmem [#allocation2], 32
      %v1021 = vld [vmem:[%s1020] sm:$0xff]
      %v1022 = vld [vmem:[%s1020 + $0x10] sm:$0xff]
      %v1023 = vld [vmem:[%s1020 + $0x20] sm:$0xff]
      %v1024 = vld [vmem:[%s1020 + $0x30] sm:$0xff]
      %v1025 = vpack.c.bf16 %v1022, %v1021
      %v1026 = vpack.c.bf16 %v1024, %v1023
      %s1027 = scalar_lea.vmem %s3, 384
      %v1028 = vld [vmem:[%s1027] sm:$0xf]
      %v1029 = vld [vmem:[%s1027 + $0x4] sm:$0xf]
      %v1030 = vld [vmem:[%s1027 + $0x8] sm:$0xf]
      %v1031 = vld [vmem:[%s1027 + $0xc] sm:$0xf]
      %v1032 = vld [vmem:[%s1027 + $0x10] sm:$0xf]
      %v1033 = vld [vmem:[%s1027 + $0x14] sm:$0xf]
      %v1034 = vld [vmem:[%s1027 + $0x18] sm:$0xf]
      %v1035 = vld [vmem:[%s1027 + $0x1c] sm:$0xf]
      %v1036 = vld [vmem:[%s1027 + $0x20] sm:$0xf]
      %v1037 = vld [vmem:[%s1027 + $0x24] sm:$0xf]
      %v1038 = vld [vmem:[%s1027 + $0x28] sm:$0xf]
      %v1039 = vld [vmem:[%s1027 + $0x2c] sm:$0xf]
      %v1040 = vld [vmem:[%s1027 + $0x30] sm:$0xf]
      %v1041 = vld [vmem:[%s1027 + $0x34] sm:$0xf]
      %v1042 = vld [vmem:[%s1027 + $0x38] sm:$0xf]
      %v1043 = vld [vmem:[%s1027 + $0x3c] sm:$0xf]
      %v1060 = vunpack.c.l.b16 %v1028
      %v1061 = vunpack.c.l.b16 %v1029
      %v1062 = vunpack.c.l.b16 %v1030
      %v1063 = vunpack.c.l.b16 %v1031
      %v1064 = vunpack.c.l.b16 %v1032
      %v1065 = vunpack.c.l.b16 %v1033
      %v1066 = vunpack.c.l.b16 %v1034
      %v1067 = vunpack.c.l.b16 %v1035
      %v1068 = vunpack.c.l.b16 %v1036
      %v1069 = vunpack.c.l.b16 %v1037
      %v1070 = vunpack.c.l.b16 %v1038
      %v1071 = vunpack.c.l.b16 %v1039
      %v1072 = vunpack.c.l.b16 %v1040
      %v1073 = vunpack.c.l.b16 %v1041
      %v1074 = vunpack.c.l.b16 %v1042
      %v1075 = vunpack.c.l.b16 %v1043
      %v1076 = vpack.c.b16 %v1061, %v1060
      %v1077 = vpack.c.b16 %v1063, %v1062
      %v1078 = vpack.c.b16 %v1065, %v1064
      %v1079 = vpack.c.b16 %v1067, %v1066
      %v1080 = vpack.c.b16 %v1069, %v1068
      %v1081 = vpack.c.b16 %v1071, %v1070
      %v1082 = vpack.c.b16 %v1073, %v1072
      %v1083 = vpack.c.b16 %v1075, %v1074
      %1092 = vmatprep.subr.bf16.mxu0 0
      %1093 = vmatpush1.bf16.msra.mxu0 %v1083
      %1094 = vmatprep.subr.bf16.mxu0 0
      %1095 = vmatpush1.bf16.msra.mxu0 %v1082
      %1096 = vmatprep.subr.bf16.mxu0 0
      %1097 = vmatpush1.bf16.msra.mxu0 %v1081
      %1098 = vmatprep.subr.bf16.mxu0 0
      %1099 = vmatpush1.bf16.msra.mxu0 %v1080
      %1100 = vmatprep.subr.bf16.mxu0 0
      %1101 = vmatpush1.bf16.msra.mxu0 %v1079
      %1102 = vmatprep.subr.bf16.mxu0 0
      %1103 = vmatpush1.bf16.msra.mxu0 %v1078
      %1104 = vmatprep.subr.bf16.mxu0 0
      %1105 = vmatpush1.bf16.msra.mxu0 %v1077
      %1106 = vmatprep.subr.bf16.mxu0 0
      %1107 = vmatpush1.bf16.msra.mxu0 %v1076
      %1108 = vmatprep.subr.bf16.mxu0 0
      %1109 = vmatpush2.bf16.msra.mxu0 0
      %1110 = vmatprep.subr.bf16.mxu0 0
      %1111 = vmatpush2.bf16.msra.mxu0 0
      %1112 = vmatprep.subr.bf16.mxu0 0
      %1113 = vmatpush2.bf16.msra.mxu0 0
      %1114 = vmatprep.subr.bf16.mxu0 0
      %1115 = vmatpush2.bf16.msra.mxu0 0
      %1116 = vmatprep.subr.bf16.mxu0 0
      %1117 = vmatpush2.bf16.msra.mxu0 0
      %1118 = vmatprep.subr.bf16.mxu0 0
      %1119 = vmatpush2.bf16.msra.mxu0 0
      %1120 = vmatprep.subr.bf16.mxu0 0
      %1121 = vmatpush2.bf16.msra.mxu0 0
      %1122 = vmatprep.subr.bf16.mxu0 0
      %1123 = vmatpush2.bf16.msra.mxu0 0
      %1124 = vmatprep.mubr.bf16.mxu0 0
      %1125 = vmatmul.mubr.bf16.gmra.mxu0 %v1025
      %v1126 = vpop.f32.mrf.mxu0
      %v1127 = vadd.f32 0.0, %v1126
      %v1128 = vpop.f32.mrf.mxu0
      %v1129 = vpop.f32.mrf.mxu0
      %v1130 = vadd.f32 0.0, %v1129
      %v1131 = vpop.f32.mrf.mxu0
      %1132 = vmatprep.mubr.bf16.mxu0 0
      %1133 = vmatmul.mubr.bf16.gmra.mxu0 %v1026
      %v1134 = vpop.f32.mrf.mxu0
      %v1135 = vadd.f32 0.0, %v1134
      %v1136 = vpop.f32.mrf.mxu0
      %v1137 = vpop.f32.mrf.mxu0
      %v1138 = vadd.f32 0.0, %v1137
      %v1139 = vpop.f32.mrf.mxu0
      %1140 = vdwg.mxu0
      %v1141 = vadd.f32 %v1016, %v1127
      %v1142 = vadd.f32 %v1017, %v1130
      %v1143 = vadd.f32 %v1018, %v1135
      %v1144 = vadd.f32 %v1019, %v1138
      %v1145 = vld [vmem:[%s1020 + $0x1] sm:$0xff]
      %v1146 = vld [vmem:[%s1020 + $0x11] sm:$0xff]
      %v1147 = vld [vmem:[%s1020 + $0x21] sm:$0xff]
      %v1148 = vld [vmem:[%s1020 + $0x31] sm:$0xff]
      %v1149 = vpack.c.bf16 %v1146, %v1145
      %v1150 = vpack.c.bf16 %v1148, %v1147
      %s1151 = scalar_lea.vmem %s3, 448
      %v1152 = vld [vmem:[%s1151] sm:$0xf]
      %v1153 = vld [vmem:[%s1151 + $0x4] sm:$0xf]
      %v1154 = vld [vmem:[%s1151 + $0x8] sm:$0xf]
      %v1155 = vld [vmem:[%s1151 + $0xc] sm:$0xf]
      %v1156 = vld [vmem:[%s1151 + $0x10] sm:$0xf]
      %v1157 = vld [vmem:[%s1151 + $0x14] sm:$0xf]
      %v1158 = vld [vmem:[%s1151 + $0x18] sm:$0xf]
      %v1159 = vld [vmem:[%s1151 + $0x1c] sm:$0xf]
      %v1160 = vld [vmem:[%s1151 + $0x20] sm:$0xf]
      %v1161 = vld [vmem:[%s1151 + $0x24] sm:$0xf]
      %v1162 = vld [vmem:[%s1151 + $0x28] sm:$0xf]
      %v1163 = vld [vmem:[%s1151 + $0x2c] sm:$0xf]
      %v1164 = vld [vmem:[%s1151 + $0x30] sm:$0xf]
      %v1165 = vld [vmem:[%s1151 + $0x34] sm:$0xf]
      %v1166 = vld [vmem:[%s1151 + $0x38] sm:$0xf]
      %v1167 = vld [vmem:[%s1151 + $0x3c] sm:$0xf]
      %v1184 = vunpack.c.l.b16 %v1152
      %v1185 = vunpack.c.l.b16 %v1153
      %v1186 = vunpack.c.l.b16 %v1154
      %v1187 = vunpack.c.l.b16 %v1155
      %v1188 = vunpack.c.l.b16 %v1156
      %v1189 = vunpack.c.l.b16 %v1157
      %v1190 = vunpack.c.l.b16 %v1158
      %v1191 = vunpack.c.l.b16 %v1159
      %v1192 = vunpack.c.l.b16 %v1160
      %v1193 = vunpack.c.l.b16 %v1161
      %v1194 = vunpack.c.l.b16 %v1162
      %v1195 = vunpack.c.l.b16 %v1163
      %v1196 = vunpack.c.l.b16 %v1164
      %v1197 = vunpack.c.l.b16 %v1165
      %v1198 = vunpack.c.l.b16 %v1166
      %v1199 = vunpack.c.l.b16 %v1167
      %v1200 = vpack.c.b16 %v1185, %v1184
      %v1201 = vpack.c.b16 %v1187, %v1186
      %v1202 = vpack.c.b16 %v1189, %v1188
      %v1203 = vpack.c.b16 %v1191, %v1190
      %v1204 = vpack.c.b16 %v1193, %v1192
      %v1205 = vpack.c.b16 %v1195, %v1194
      %v1206 = vpack.c.b16 %v1197, %v1196
      %v1207 = vpack.c.b16 %v1199, %v1198
      %1216 = vmatprep.subr.bf16.mxu0 0
      %1217 = vmatpush1.bf16.msra.mxu0 %v1207
      %1218 = vmatprep.subr.bf16.mxu0 0
      %1219 = vmatpush1.bf16.msra.mxu0 %v1206
      %1220 = vmatprep.subr.bf16.mxu0 0
      %1221 = vmatpush1.bf16.msra.mxu0 %v1205
      %1222 = vmatprep.subr.bf16.mxu0 0
      %1223 = vmatpush1.bf16.msra.mxu0 %v1204
      %1224 = vmatprep.subr.bf16.mxu0 0
      %1225 = vmatpush1.bf16.msra.mxu0 %v1203
      %1226 = vmatprep.subr.bf16.mxu0 0
      %1227 = vmatpush1.bf16.msra.mxu0 %v1202
      %1228 = vmatprep.subr.bf16.mxu0 0
      %1229 = vmatpush1.bf16.msra.mxu0 %v1201
      %1230 = vmatprep.subr.bf16.mxu0 0
      %1231 = vmatpush1.bf16.msra.mxu0 %v1200
      %1232 = vmatprep.subr.bf16.mxu0 0
      %1233 = vmatpush2.bf16.msra.mxu0 0
      %1234 = vmatprep.subr.bf16.mxu0 0
      %1235 = vmatpush2.bf16.msra.mxu0 0
      %1236 = vmatprep.subr.bf16.mxu0 0
      %1237 = vmatpush2.bf16.msra.mxu0 0
      %1238 = vmatprep.subr.bf16.mxu0 0
      %1239 = vmatpush2.bf16.msra.mxu0 0
      %1240 = vmatprep.subr.bf16.mxu0 0
      %1241 = vmatpush2.bf16.msra.mxu0 0
      %1242 = vmatprep.subr.bf16.mxu0 0
      %1243 = vmatpush2.bf16.msra.mxu0 0
      %1244 = vmatprep.subr.bf16.mxu0 0
      %1245 = vmatpush2.bf16.msra.mxu0 0
      %1246 = vmatprep.subr.bf16.mxu0 0
      %1247 = vmatpush2.bf16.msra.mxu0 0
      %1248 = vmatprep.mubr.bf16.mxu0 0
      %1249 = vmatmul.mubr.bf16.gmra.mxu0 %v1149
      %v1250 = vpop.f32.mrf.mxu0
      %v1251 = vadd.f32 0.0, %v1250
      %v1252 = vpop.f32.mrf.mxu0
      %v1253 = vpop.f32.mrf.mxu0
      %v1254 = vadd.f32 0.0, %v1253
      %v1255 = vpop.f32.mrf.mxu0
      %1256 = vmatprep.mubr.bf16.mxu0 0
      %1257 = vmatmul.mubr.bf16.gmra.mxu0 %v1150
      %v1258 = vpop.f32.mrf.mxu0
      %v1259 = vadd.f32 0.0, %v1258
      %v1260 = vpop.f32.mrf.mxu0
      %v1261 = vpop.f32.mrf.mxu0
      %v1262 = vadd.f32 0.0, %v1261
      %v1263 = vpop.f32.mrf.mxu0
      %1264 = vdwg.mxu0
      %v1265 = vadd.f32 %v1141, %v1251
      %v1266 = vadd.f32 %v1142, %v1254
      %v1267 = vadd.f32 %v1143, %v1259
      %v1268 = vadd.f32 %v1144, %v1262
      %v1269 = vld [vmem:[%s1020 + $0x2] sm:$0xff]
      %v1270 = vld [vmem:[%s1020 + $0x12] sm:$0xff]
      %v1271 = vld [vmem:[%s1020 + $0x22] sm:$0xff]
      %v1272 = vld [vmem:[%s1020 + $0x32] sm:$0xff]
      %v1273 = vpack.c.bf16 %v1270, %v1269
      %v1274 = vpack.c.bf16 %v1272, %v1271
      %s1275 = scalar_lea.vmem %s3, 512
      %v1276 = vld [vmem:[%s1275] sm:$0xf]
      %v1277 = vld [vmem:[%s1275 + $0x4] sm:$0xf]
      %v1278 = vld [vmem:[%s1275 + $0x8] sm:$0xf]
      %v1279 = vld [vmem:[%s1275 + $0xc] sm:$0xf]
      %v1280 = vld [vmem:[%s1275 + $0x10] sm:$0xf]
      %v1281 = vld [vmem:[%s1275 + $0x14] sm:$0xf]
      %v1282 = vld [vmem:[%s1275 + $0x18] sm:$0xf]
      %v1283 = vld [vmem:[%s1275 + $0x1c] sm:$0xf]
      %v1284 = vld [vmem:[%s1275 + $0x20] sm:$0xf]
      %v1285 = vld [vmem:[%s1275 + $0x24] sm:$0xf]
      %v1286 = vld [vmem:[%s1275 + $0x28] sm:$0xf]
      %v1287 = vld [vmem:[%s1275 + $0x2c] sm:$0xf]
      %v1288 = vld [vmem:[%s1275 + $0x30] sm:$0xf]
      %v1289 = vld [vmem:[%s1275 + $0x34] sm:$0xf]
      %v1290 = vld [vmem:[%s1275 + $0x38] sm:$0xf]
      %v1291 = vld [vmem:[%s1275 + $0x3c] sm:$0xf]
      %v1308 = vunpack.c.l.b16 %v1276
      %v1309 = vunpack.c.l.b16 %v1277
      %v1310 = vunpack.c.l.b16 %v1278
      %v1311 = vunpack.c.l.b16 %v1279
      %v1312 = vunpack.c.l.b16 %v1280
      %v1313 = vunpack.c.l.b16 %v1281
      %v1314 = vunpack.c.l.b16 %v1282
      %v1315 = vunpack.c.l.b16 %v1283
      %v1316 = vunpack.c.l.b16 %v1284
      %v1317 = vunpack.c.l.b16 %v1285
      %v1318 = vunpack.c.l.b16 %v1286
      %v1319 = vunpack.c.l.b16 %v1287
      %v1320 = vunpack.c.l.b16 %v1288
      %v1321 = vunpack.c.l.b16 %v1289
      %v1322 = vunpack.c.l.b16 %v1290
      %v1323 = vunpack.c.l.b16 %v1291
      %v1324 = vpack.c.b16 %v1309, %v1308
      %v1325 = vpack.c.b16 %v1311, %v1310
      %v1326 = vpack.c.b16 %v1313, %v1312
      %v1327 = vpack.c.b16 %v1315, %v1314
      %v1328 = vpack.c.b16 %v1317, %v1316
      %v1329 = vpack.c.b16 %v1319, %v1318
      %v1330 = vpack.c.b16 %v1321, %v1320
      %v1331 = vpack.c.b16 %v1323, %v1322
      %1340 = vmatprep.subr.bf16.mxu0 0
      %1341 = vmatpush1.bf16.msra.mxu0 %v1331
      %1342 = vmatprep.subr.bf16.mxu0 0
      %1343 = vmatpush1.bf16.msra.mxu0 %v1330
      %1344 = vmatprep.subr.bf16.mxu0 0
      %1345 = vmatpush1.bf16.msra.mxu0 %v1329
      %1346 = vmatprep.subr.bf16.mxu0 0
      %1347 = vmatpush1.bf16.msra.mxu0 %v1328
      %1348 = vmatprep.subr.bf16.mxu0 0
      %1349 = vmatpush1.bf16.msra.mxu0 %v1327
      %1350 = vmatprep.subr.bf16.mxu0 0
      %1351 = vmatpush1.bf16.msra.mxu0 %v1326
      %1352 = vmatprep.subr.bf16.mxu0 0
      %1353 = vmatpush1.bf16.msra.mxu0 %v1325
      %1354 = vmatprep.subr.bf16.mxu0 0
      %1355 = vmatpush1.bf16.msra.mxu0 %v1324
      %1356 = vmatprep.subr.bf16.mxu0 0
      %1357 = vmatpush2.bf16.msra.mxu0 0
      %1358 = vmatprep.subr.bf16.mxu0 0
      %1359 = vmatpush2.bf16.msra.mxu0 0
      %1360 = vmatprep.subr.bf16.mxu0 0
      %1361 = vmatpush2.bf16.msra.mxu0 0
      %1362 = vmatprep.subr.bf16.mxu0 0
      %1363 = vmatpush2.bf16.msra.mxu0 0
      %1364 = vmatprep.subr.bf16.mxu0 0
      %1365 = vmatpush2.bf16.msra.mxu0 0
      %1366 = vmatprep.subr.bf16.mxu0 0
      %1367 = vmatpush2.bf16.msra.mxu0 0
      %1368 = vmatprep.subr.bf16.mxu0 0
      %1369 = vmatpush2.bf16.msra.mxu0 0
      %1370 = vmatprep.subr.bf16.mxu0 0
      %1371 = vmatpush2.bf16.msra.mxu0 0
      %1372 = vmatprep.mubr.bf16.mxu0 0
      %1373 = vmatmul.mubr.bf16.gmra.mxu0 %v1273
      %v1374 = vpop.f32.mrf.mxu0
      %v1375 = vadd.f32 0.0, %v1374
      %v1376 = vpop.f32.mrf.mxu0
      %v1377 = vpop.f32.mrf.mxu0
      %v1378 = vadd.f32 0.0, %v1377
      %v1379 = vpop.f32.mrf.mxu0
      %1380 = vmatprep.mubr.bf16.mxu0 0
      %1381 = vmatmul.mubr.bf16.gmra.mxu0 %v1274
      %v1382 = vpop.f32.mrf.mxu0
      %v1383 = vadd.f32 0.0, %v1382
      %v1384 = vpop.f32.mrf.mxu0
      %v1385 = vpop.f32.mrf.mxu0
      %v1386 = vadd.f32 0.0, %v1385
      %v1387 = vpop.f32.mrf.mxu0
      %1388 = vdwg.mxu0
      %v1389 = vadd.f32 %v1265, %v1375
      %v1390 = vadd.f32 %v1266, %v1378
      %v1391 = vadd.f32 %v1267, %v1383
      %v1392 = vadd.f32 %v1268, %v1386
      %1393 = vst [vmem:[%s231] sm:$0xff] %v1389
      %1394 = vst [vmem:[%s231 + $0x8] sm:$0xff] %v1390
      %1395 = vst [vmem:[%s231 + $0x10] sm:$0xff] %v1391
      %1396 = vst [vmem:[%s231 + $0x18] sm:$0xff] %v1392
      %v1397 = vadd.f32 %v1389, %v1390
      %v1398 = vadd.f32 %v1397, %v1391
      %v1399 = vadd.f32 %v1398, %v1392
      %v1400 = vrot.slane %v1399, 4
      %v1401 = vadd.f32 %v1399, %v1400
      %v1402 = vrot.slane %v1401, 2
      %v1403 = vadd.f32 %v1401, %v1402
      %v1404 = vrot.slane %v1403, 1
      %v1405 = vadd.f32 %v1403, %v1404
      %v1406 = vmul.f32 %v1389, %v1389
      %v1407 = vmul.f32 %v1390, %v1390
      %v1408 = vmul.f32 %v1391, %v1391
      %v1409 = vmul.f32 %v1392, %v1392
      %v1410 = vadd.f32 %v1406, %v1407
      %v1411 = vadd.f32 %v1410, %v1408
      %v1412 = vadd.f32 %v1411, %v1409
      %v1413 = vrot.slane %v1412, 4
      %v1414 = vadd.f32 %v1412, %v1413
      %v1415 = vrot.slane %v1414, 2
      %v1416 = vadd.f32 %v1414, %v1415
      %v1417 = vrot.slane %v1416, 1
      %v1418 = vadd.f32 %v1416, %v1417
      %vm1419 = vcmask 1040384
      %v1420 = vsel %vm1419, %v1405, %v1418
      %vm1421 = vcmask 1041408
      %v1422 = vsel %vm1421, %v1420, 0.0
      %1423 = vst [vmem:[%s235] sm:$0xff] %v1422
      %p1424 = scmp.lt.s32.totalorder %s17, 1
      %s1425 = scalar_select %p1424, %s17, 1
      %s1426 = smul.addr %s1425, 4
      %s1427 = smul.addr %s1426, 8
      %s1428 = scalar_lea.vmem %s4, %s1427
      %p1429 = scmp.lt.s32.totalorder %s17, 1
      %s1430 = scalar_select %p1429, %s17, 1
      %s1431 = smul.addr %s1430, 8
      %s1432 = scalar_lea.vmem %s5, %s1431
      // Predicated region
      $region37: #{conv_block_3d.4} parent=35 // pred_check
        %p1433 = pneg %p124
      $region38: #{conv_block_3d.4} parent=35 // pred_check_branch
        %1435 = sbr.rel (%p1433) target = $region40
      $region39: #{conv_block_3d.4} parent=35 // pred_region
        _
      $region40: #{conv_block_3d.4} parent=35 // pred_fallthru
        _
      // Predicated region
      $region41: #{conv_block_3d.4} parent=35 // pred_check
        %p1436 = pneg %p150
      $region42: #{conv_block_3d.4} parent=35 // pred_check_branch
        %1438 = sbr.rel (%p1436) target = $region44
      $region43: #{conv_block_3d.4} parent=35 // pred_region
        _
      $region44: #{conv_block_3d.4} parent=35 // pred_fallthru
        _
    $region36: #{conv_block_3d.4} parent=5 // pred_fallthru
      _
    %p1439 = scmp.le.s32.totalorder 2, %s12
    // Predicated region
    $region45: #{conv_block_3d.4} parent=5 // pred_check
      %p1440 = pneg %p1439
    $region46: #{conv_block_3d.4} parent=5 // pred_check_branch
      %1442 = sbr.rel (%p1440) target = $region48
    $region47: #{conv_block_3d.4} parent=5 // pred_region
      %s1443 = ssub.s32 %s12, 2
      // Predicated region
      $region49: #{conv_block_3d.4} parent=47 // pred_check
        %p1444 = pneg %p130
      $region50: #{conv_block_3d.4} parent=47 // pred_check_branch
        %1446 = sbr.rel (%p1444) target = $region52
      $region51: #{conv_block_3d.4} parent=47 // pred_region
        %p1447 = scmp.lt.s32.totalorder %s18, 1
        %s1448 = scalar_select %p1447, %s18, 1
        %s1449 = smul.addr %s1448, 4
        %s1450 = smul.addr %s1449, 8
        %s1451 = scalar_lea.vmem %s4, %s1450
      $region52: #{conv_block_3d.4} parent=47 // pred_fallthru
        _
      // Predicated region
      $region53: #{conv_block_3d.4} parent=47 // pred_check
        %p1452 = pneg %p156
      $region54: #{conv_block_3d.4} parent=47 // pred_check_branch
        %1454 = sbr.rel (%p1452) target = $region56
      $region55: #{conv_block_3d.4} parent=47 // pred_region
        %p1455 = scmp.lt.s32.totalorder %s18, 1
        %s1456 = scalar_select %p1455, %s18, 1
        %s1457 = smul.addr %s1456, 8
        %s1458 = scalar_lea.vmem %s5, %s1457
      $region56: #{conv_block_3d.4} parent=47 // pred_fallthru
        _
    $region48: #{conv_block_3d.4} parent=5 // pred_fallthru
      _
  $region6: #{conv_block_3d.4} parent=0 // loop_footer
    %s16 = sadd.s32 1, %s12
  $region7: #{conv_block_3d.4} parent=0 // loop_footer_branch
    %11 = sbr.rel target = $region3
  $region8: #{conv_block_3d.4} parent=0 // loop_exit
    _

</llo_original>
